<compile_context>
chip_gen: v7x
topology: tpu7x:2x2x1
jax: 0.10.0
libtpu: 0.0.40
codegen_flags: <defaults>
</compile_context>

<pallas_src>
import jax
import jax.numpy as jnp
from jax.experimental import pallas as pl
from jax.experimental.pallas import tpu as pltpu


# ---------------------------------------------------------------------------
# Fused Pallas kernel: whole forward pass for G_BLK graphs per grid step
# ---------------------------------------------------------------------------
def make_fused_kernel(num_layers, nodes_per_graph, graphs_per_tile):
    nn_ = nodes_per_graph
    g_blk = graphs_per_tile
    inv_n = 1.0 / float(nn_)

    def kernel(a_ref, x_ref, *refs):
        # refs = [w1, b1, ..., w6, b6, w_enc, b_enc, w_dec, b_dec, o_ref]
        o_ref = refs[-1]
        layer_refs = refs[: 2 * num_layers]
        we_ref, be_ref, wd_ref, bd_ref = refs[2 * num_layers:-1]

        a = a_ref[...]                          # [T, T] bf16 block-diag A_hat tile
        h = x_ref[...].astype(jnp.float32)      # [T, F_in] f32
        hf = None
        for i in range(num_layers):             # unrolled: 6 GCN layers, all in VMEM
            w = layer_refs[2 * i][...]          # [F_in, F_out] f32
            b = layer_refs[2 * i + 1][...]      # [1, F_out]    f32
            xw = jnp.dot(h, w, preferred_element_type=jnp.float32)
            # single bf16 cast per layer (only the big A.XW operand); f32 accumulation
            hf = jnp.dot(a, xw.astype(jnp.bfloat16),
                         preferred_element_type=jnp.float32) + b
            if i < num_layers - 1:              # ReLU after conv1..conv5 only
                hf = jnp.maximum(hf, 0.0)
            h = hf                              # stays f32 (no relayout casts)

        # per-graph max / mean pooling over this tile's graphs.
        # nn_ == 8 aligns with the sublane tile, so this reshape does not cross
        # (8,128) tile boundaries.
        f_out = hf.shape[-1]
        hg = hf.reshape(g_blk, nn_, f_out)                 # [G_BLK, nn, F]
        maxp = jnp.max(hg, axis=1)                         # [G_BLK, F]
        meanp = jnp.sum(hg, axis=1) * inv_n                # [G_BLK, F] (static 1/nn)
        pooled = jnp.maximum(jnp.concatenate([maxp, meanp], axis=1), 0.0)  # [G_BLK, 2F]

        # batched encoder -> decoder -> ReLU (f32, MXU M-dim filled with G_BLK rows)
        z = jnp.dot(pooled, we_ref[...],
                    preferred_element_type=jnp.float32) + be_ref[...]
        y = jnp.dot(z, wd_ref[...],
                    preferred_element_type=jnp.float32) + bd_ref[...]
        o_ref[...] = jnp.maximum(y, 0.0)        # [G_BLK, out_pad] dense store

    return kernel


# ---------------------------------------------------------------------------
# Glue: block-diagonal normalized adjacency tiles, params, forward wrapper
# ---------------------------------------------------------------------------
def build_blockdiag_norm_adj_tiles(edge_index, num_graphs_padded,
                                   nodes_per_graph, graphs_per_tile):
    """[num_tiles, T, T] tiles of D^{-1/2}(A + I)D^{-1/2} (GCNConv default norm).

    Assumes PyG-style batching: no edges cross graphs, nodes sorted by graph,
    each graph has exactly `nodes_per_graph` nodes.  Edges are scattered
    directly into the per-tile block-diagonal layout (never materializes the
    full [N_total, N_total] adjacency).
    """
    T = graphs_per_tile * nodes_per_graph
    num_tiles = num_graphs_padded // graphs_per_tile
    src, dst = edge_index
    tile_id = dst // T                                    # src and dst share a tile
    a = jnp.zeros((num_tiles, T, T), jnp.float32)
    a = a.at[tile_id, dst % T, src % T].add(1.0)
    a = a + jnp.eye(T, dtype=jnp.float32)[None]           # self loops
    deg = jnp.sum(a, axis=2)                              # block-diag -> per-graph degree
    dinv = jnp.where(deg > 0, jax.lax.rsqrt(deg), 0.0)
    return dinv[:, :, None] * a * dinv[:, None, :]        # [num_tiles, T, T]


def init_params(key, num_features, embedding_sequence, latent_dim, num_nodes):
    dims = [num_features] + list(embedding_sequence)
    params = {"gcn_w": [], "gcn_b": []}
    for i in range(6):
        key, k1, k2 = jax.random.split(key, 3)
        fin, fout = dims[i], dims[i + 1]
        params["gcn_w"].append(
            jax.random.normal(k1, (fin, fout), jnp.float32) * (1.0 / jnp.sqrt(fin)))
        params["gcn_b"].append(
            jax.random.normal(k2, (1, fout), jnp.float32) * 0.01)
    key, k1, k2, k3, k4 = jax.random.split(key, 5)
    enc_in = 2 * embedding_sequence[-1]
    params["w_enc"] = jax.random.normal(k1, (enc_in, latent_dim), jnp.float32) * (1.0 / jnp.sqrt(enc_in))
    params["b_enc"] = jax.random.normal(k2, (1, latent_dim), jnp.float32) * 0.01
    params["w_dec"] = jax.random.normal(k3, (latent_dim, num_nodes), jnp.float32) * (1.0 / jnp.sqrt(latent_dim))
    params["b_dec"] = jax.random.normal(k4, (1, num_nodes), jnp.float32) * 0.01
    return params


def model4_variant5_forward(params, x, edge_index, batch_size, batch_index,
                            nodes_per_graph, graphs_per_tile=None):
    n_total, f_in = x.shape
    assert n_total == batch_size * nodes_per_graph
    nn_ = nodes_per_graph
    # batch_index is assumed to be sorted with fixed-size graphs (PyG batching);
    # it is therefore not needed inside the kernel.

    if graphs_per_tile is None:
        # MXU-friendly block-diagonal tile: T = G_BLK * nn ~= 128, and at least 8
        # graphs per tile so pooled / encoder / decoder / output blocks are
        # sublane-dense.  (Bump toward T=256-512 on v6e/v7x for big batches.)
        graphs_per_tile = max(8, (128 + nn_ - 1) // nn_)
    g_blk = graphs_per_tile
    num_graphs_padded = ((batch_size + g_blk - 1) // g_blk) * g_blk
    num_tiles = num_graphs_padded // g_blk
    T = g_blk * nn_

    # block-diagonal A_hat tiles (bf16 MXU operand), zero-padded features (f32)
    a_tiles = build_blockdiag_norm_adj_tiles(
        edge_index, num_graphs_padded, nn_, g_blk).astype(jnp.bfloat16)
    x_pad = jnp.zeros((num_graphs_padded * nn_, f_in), jnp.float32)
    x_pad = x_pad.at[:n_total].set(x.astype(jnp.float32))
    x_tiles = x_pad.reshape(num_tiles, T, f_in)

    gcn_ws = [w.astype(jnp.float32) for w in params["gcn_w"]]
    gcn_bs = [b.astype(jnp.float32) for b in params["gcn_b"]]
    w_enc = params["w_enc"].astype(jnp.float32)
    b_enc = params["b_enc"].astype(jnp.float32)

    # pad decoder output dim to a multiple of 128 lanes -> unmasked output stores
    num_nodes_out = params["w_dec"].shape[1]
    out_pad = ((num_nodes_out + 127) // 128) * 128
    w_dec = jnp.zeros((params["w_dec"].shape[0], out_pad), jnp.float32)
    w_dec = w_dec.at[:, :num_nodes_out].set(params["w_dec"].astype(jnp.float32))
    b_dec = jnp.zeros((1, out_pad), jnp.float32).at[:, :num_nodes_out].set(
        params["b_dec"].astype(jnp.float32))

    num_layers = len(gcn_ws)

    in_specs = [
        pl.BlockSpec((None, T, T), lambda t: (t, 0, 0)),     # A_hat tile t
        pl.BlockSpec((None, T, f_in), lambda t: (t, 0, 0)),  # features of tile t
    ]
    inputs = [a_tiles, x_tiles]
    for w, b in zip(gcn_ws, gcn_bs):                          # small weights, constant index
        in_specs.append(pl.BlockSpec(w.shape, lambda t: (0, 0)))
        in_specs.append(pl.BlockSpec(b.shape, lambda t: (0, 0)))
        inputs += [w, b]
    for tsr in (w_enc, b_enc, w_dec, b_dec):
        in_specs.append(pl.BlockSpec(tsr.shape, lambda t: (0, 0)))
        inputs.append(tsr)

    out = pl.pallas_call(
        make_fused_kernel(num_layers, nn_, g_blk),
        grid=(num_tiles,),
        in_specs=in_specs,
        out_specs=pl.BlockSpec((None, g_blk, out_pad), lambda t: (t, 0, 0)),
        out_shape=jax.ShapeDtypeStruct((num_tiles, g_blk, out_pad), jnp.float32),
        compiler_params=pltpu.CompilerParams(
            # tile axis is independent -> shards across the 2 TCs on v7x
            dimension_semantics=("parallel",),
            # per-step working set is a few hundred KiB; 32 MiB scope is plenty
            # on all generations (re-derive only if T is scaled past ~2k on v7x).
            vmem_limit_bytes=32 * 1024 * 1024,
        ),
    )(*inputs)

    out = out.reshape(num_graphs_padded, out_pad)
    return out[:batch_size, :num_nodes_out]


# ---------------------------------------------------------------------------
if __name__ == "__main__":
    # synthetic graph batch: 32 graphs x 8 nodes, 4 input features
    # -> G_BLK = 16 graphs/tile, T = 128, grid = (2,)
    num_nodes_per_graph = 8
    batch_size = 32
    num_features = 4
    embedding_sequence = (8, 8, 8, 8, 8, 8)
    latent_space_dim = 4
    n_total = num_nodes_per_graph * batch_size

    key = jax.random.PRNGKey(0)
    key, kx = jax.random.split(key)
    x = jax.random.normal(kx, (n_total, num_features), jnp.float32)

    # undirected ring inside each graph (deterministic edge_index, shape [2, E])
    srcs, dsts = [], []
    for g in range(batch_size):
        off = g * num_nodes_per_graph
        for i in range(num_nodes_per_graph):
            j = (i + 1) % num_nodes_per_graph
            srcs += [off + i, off + j]
            dsts += [off + j, off + i]
    edge_index = jnp.array([srcs, dsts], dtype=jnp.int32)

    batch_index = jnp.repeat(jnp.arange(batch_size, dtype=jnp.int32),
                             num_nodes_per_graph)

    params = init_params(key, num_features, embedding_sequence,
                         latent_space_dim, num_nodes_per_graph)

    out = model4_variant5_forward(params, x, edge_index, batch_size,
                                  batch_index, num_nodes_per_graph)
    out = jax.block_until_ready(out)
    assert out.shape == (batch_size, num_nodes_per_graph)
    print("KERNEL_OK")
</pallas_src>

<mosaic_0001>
module attributes {stable_mosaic.version = 11 : i64} {
  func.func @kernel(%arg0: i32, %arg1: memref<1x128x128xbf16, #tpu.memory_space<vmem>>, %arg2: memref<1x128x4xf32, #tpu.memory_space<vmem>>, %arg3: memref<4x8xf32, #tpu.memory_space<vmem>>, %arg4: memref<1x8xf32, #tpu.memory_space<vmem>>, %arg5: memref<8x8xf32, #tpu.memory_space<vmem>>, %arg6: memref<1x8xf32, #tpu.memory_space<vmem>>, %arg7: memref<8x8xf32, #tpu.memory_space<vmem>>, %arg8: memref<1x8xf32, #tpu.memory_space<vmem>>, %arg9: memref<8x8xf32, #tpu.memory_space<vmem>>, %arg10: memref<1x8xf32, #tpu.memory_space<vmem>>, %arg11: memref<8x8xf32, #tpu.memory_space<vmem>>, %arg12: memref<1x8xf32, #tpu.memory_space<vmem>>, %arg13: memref<8x8xf32, #tpu.memory_space<vmem>>, %arg14: memref<1x8xf32, #tpu.memory_space<vmem>>, %arg15: memref<16x4xf32, #tpu.memory_space<vmem>>, %arg16: memref<1x4xf32, #tpu.memory_space<vmem>>, %arg17: memref<4x128xf32, #tpu.memory_space<vmem>>, %arg18: memref<1x128xf32, #tpu.memory_space<vmem>>, %arg19: memref<1x16x128xf32, #tpu.memory_space<vmem>>) attributes {dimension_semantics = [#tpu.dimension_semantics<parallel>], iteration_bounds = array<i64: 2>, scalar_prefetch = 0 : i64, scratch_operands = 0 : i64, tpu.core_type = #tpu.core_type<tc>, window_params = [{transform_indices = @transform_0, window_bounds = array<i64: 1, 128, 128>}, {transform_indices = @transform_1, window_bounds = array<i64: 1, 128, 4>}, {pipeline_mode = #tpu.pipeline_mode<synchronous>, transform_indices = @transform_2, window_bounds = array<i64: 4, 8>}, {pipeline_mode = #tpu.pipeline_mode<synchronous>, transform_indices = @transform_3, window_bounds = array<i64: 1, 8>}, {pipeline_mode = #tpu.pipeline_mode<synchronous>, transform_indices = @transform_4, window_bounds = array<i64: 8, 8>}, {pipeline_mode = #tpu.pipeline_mode<synchronous>, transform_indices = @transform_5, window_bounds = array<i64: 1, 8>}, {pipeline_mode = #tpu.pipeline_mode<synchronous>, transform_indices = @transform_6, window_bounds = array<i64: 8, 8>}, {pipeline_mode = #tpu.pipeline_mode<synchronous>, transform_indices = @transform_7, window_bounds = array<i64: 1, 8>}, {pipeline_mode = #tpu.pipeline_mode<synchronous>, transform_indices = @transform_8, window_bounds = array<i64: 8, 8>}, {pipeline_mode = #tpu.pipeline_mode<synchronous>, transform_indices = @transform_9, window_bounds = array<i64: 1, 8>}, {pipeline_mode = #tpu.pipeline_mode<synchronous>, transform_indices = @transform_10, window_bounds = array<i64: 8, 8>}, {pipeline_mode = #tpu.pipeline_mode<synchronous>, transform_indices = @transform_11, window_bounds = array<i64: 1, 8>}, {pipeline_mode = #tpu.pipeline_mode<synchronous>, transform_indices = @transform_12, window_bounds = array<i64: 8, 8>}, {pipeline_mode = #tpu.pipeline_mode<synchronous>, transform_indices = @transform_13, window_bounds = array<i64: 1, 8>}, {pipeline_mode = #tpu.pipeline_mode<synchronous>, transform_indices = @transform_14, window_bounds = array<i64: 16, 4>}, {pipeline_mode = #tpu.pipeline_mode<synchronous>, transform_indices = @transform_15, window_bounds = array<i64: 1, 4>}, {pipeline_mode = #tpu.pipeline_mode<synchronous>, transform_indices = @transform_16, window_bounds = array<i64: 4, 128>}, {pipeline_mode = #tpu.pipeline_mode<synchronous>, transform_indices = @transform_17, window_bounds = array<i64: 1, 128>}, {transform_indices = @transform_18, window_bounds = array<i64: 1, 16, 128>}]} {
    %c0 = arith.constant 0 : index
    %c0_0 = arith.constant 0 : index
    %c0_1 = arith.constant 0 : index
    %0 = vector.load %arg1[%c0, %c0_0, %c0_1] : memref<1x128x128xbf16, #tpu.memory_space<vmem>>, vector<1x128x128xbf16>
    %1 = vector.shape_cast %0 : vector<1x128x128xbf16> to vector<128x128xbf16>
    %c0_2 = arith.constant 0 : index
    %c0_3 = arith.constant 0 : index
    %c0_4 = arith.constant 0 : index
    %2 = vector.load %arg2[%c0_2, %c0_3, %c0_4] : memref<1x128x4xf32, #tpu.memory_space<vmem>>, vector<1x128x4xf32>
    %3 = vector.shape_cast %2 : vector<1x128x4xf32> to vector<128x4xf32>
    %c0_5 = arith.constant 0 : index
    %c0_6 = arith.constant 0 : index
    %4 = vector.load %arg3[%c0_5, %c0_6] : memref<4x8xf32, #tpu.memory_space<vmem>>, vector<4x8xf32>
    %c0_7 = arith.constant 0 : index
    %c0_8 = arith.constant 0 : index
    %5 = vector.load %arg4[%c0_7, %c0_8] : memref<1x8xf32, #tpu.memory_space<vmem>>, vector<1x8xf32>
    %cst = arith.constant dense<0.000000e+00> : vector<128x8xf32>
    %6 = tpu.matmul %3, %4, %cst {dimension_numbers = #tpu.dot_dimension_numbers<[1], [0], [0], [1], [0, 0, 1, 1], [], []>} : vector<128x4xf32>, vector<4x8xf32>, vector<128x8xf32> -> vector<128x8xf32>
    %7 = arith.truncf %6 : vector<128x8xf32> to vector<128x8xbf16>
    %cst_9 = arith.constant dense<0.000000e+00> : vector<128x8xf32>
    %8 = tpu.matmul %1, %7, %cst_9 {dimension_numbers = #tpu.dot_dimension_numbers<[1], [0], [0], [1], [0, 0, 1, 1], [], []>} : vector<128x128xbf16>, vector<128x8xbf16>, vector<128x8xf32> -> vector<128x8xf32>
    %9 = vector.broadcast %5 : vector<1x8xf32> to vector<128x8xf32>
    %10 = arith.addf %8, %9 : vector<128x8xf32>
    %cst_10 = arith.constant 0.000000e+00 : f32
    %11 = vector.broadcast %cst_10 : f32 to vector<128x8xf32>
    %12 = arith.maximumf %10, %11 : vector<128x8xf32>
    %c0_11 = arith.constant 0 : index
    %c0_12 = arith.constant 0 : index
    %13 = vector.load %arg5[%c0_11, %c0_12] : memref<8x8xf32, #tpu.memory_space<vmem>>, vector<8x8xf32>
    %c0_13 = arith.constant 0 : index
    %c0_14 = arith.constant 0 : index
    %14 = vector.load %arg6[%c0_13, %c0_14] : memref<1x8xf32, #tpu.memory_space<vmem>>, vector<1x8xf32>
    %cst_15 = arith.constant dense<0.000000e+00> : vector<128x8xf32>
    %15 = tpu.matmul %12, %13, %cst_15 {dimension_numbers = #tpu.dot_dimension_numbers<[1], [0], [0], [1], [0, 0, 1, 1], [], []>} : vector<128x8xf32>, vector<8x8xf32>, vector<128x8xf32> -> vector<128x8xf32>
    %16 = arith.truncf %15 : vector<128x8xf32> to vector<128x8xbf16>
    %cst_16 = arith.constant dense<0.000000e+00> : vector<128x8xf32>
    %17 = tpu.matmul %1, %16, %cst_16 {dimension_numbers = #tpu.dot_dimension_numbers<[1], [0], [0], [1], [0, 0, 1, 1], [], []>} : vector<128x128xbf16>, vector<128x8xbf16>, vector<128x8xf32> -> vector<128x8xf32>
    %18 = vector.broadcast %14 : vector<1x8xf32> to vector<128x8xf32>
    %19 = arith.addf %17, %18 : vector<128x8xf32>
    %cst_17 = arith.constant 0.000000e+00 : f32
    %20 = vector.broadcast %cst_17 : f32 to vector<128x8xf32>
    %21 = arith.maximumf %19, %20 : vector<128x8xf32>
    %c0_18 = arith.constant 0 : index
    %c0_19 = arith.constant 0 : index
    %22 = vector.load %arg7[%c0_18, %c0_19] : memref<8x8xf32, #tpu.memory_space<vmem>>, vector<8x8xf32>
    %c0_20 = arith.constant 0 : index
    %c0_21 = arith.constant 0 : index
    %23 = vector.load %arg8[%c0_20, %c0_21] : memref<1x8xf32, #tpu.memory_space<vmem>>, vector<1x8xf32>
    %cst_22 = arith.constant dense<0.000000e+00> : vector<128x8xf32>
    %24 = tpu.matmul %21, %22, %cst_22 {dimension_numbers = #tpu.dot_dimension_numbers<[1], [0], [0], [1], [0, 0, 1, 1], [], []>} : vector<128x8xf32>, vector<8x8xf32>, vector<128x8xf32> -> vector<128x8xf32>
    %25 = arith.truncf %24 : vector<128x8xf32> to vector<128x8xbf16>
    %cst_23 = arith.constant dense<0.000000e+00> : vector<128x8xf32>
    %26 = tpu.matmul %1, %25, %cst_23 {dimension_numbers = #tpu.dot_dimension_numbers<[1], [0], [0], [1], [0, 0, 1, 1], [], []>} : vector<128x128xbf16>, vector<128x8xbf16>, vector<128x8xf32> -> vector<128x8xf32>
    %27 = vector.broadcast %23 : vector<1x8xf32> to vector<128x8xf32>
    %28 = arith.addf %26, %27 : vector<128x8xf32>
    %cst_24 = arith.constant 0.000000e+00 : f32
    %29 = vector.broadcast %cst_24 : f32 to vector<128x8xf32>
    %30 = arith.maximumf %28, %29 : vector<128x8xf32>
    %c0_25 = arith.constant 0 : index
    %c0_26 = arith.constant 0 : index
    %31 = vector.load %arg9[%c0_25, %c0_26] : memref<8x8xf32, #tpu.memory_space<vmem>>, vector<8x8xf32>
    %c0_27 = arith.constant 0 : index
    %c0_28 = arith.constant 0 : index
    %32 = vector.load %arg10[%c0_27, %c0_28] : memref<1x8xf32, #tpu.memory_space<vmem>>, vector<1x8xf32>
    %cst_29 = arith.constant dense<0.000000e+00> : vector<128x8xf32>
    %33 = tpu.matmul %30, %31, %cst_29 {dimension_numbers = #tpu.dot_dimension_numbers<[1], [0], [0], [1], [0, 0, 1, 1], [], []>} : vector<128x8xf32>, vector<8x8xf32>, vector<128x8xf32> -> vector<128x8xf32>
    %34 = arith.truncf %33 : vector<128x8xf32> to vector<128x8xbf16>
    %cst_30 = arith.constant dense<0.000000e+00> : vector<128x8xf32>
    %35 = tpu.matmul %1, %34, %cst_30 {dimension_numbers = #tpu.dot_dimension_numbers<[1], [0], [0], [1], [0, 0, 1, 1], [], []>} : vector<128x128xbf16>, vector<128x8xbf16>, vector<128x8xf32> -> vector<128x8xf32>
    %36 = vector.broadcast %32 : vector<1x8xf32> to vector<128x8xf32>
    %37 = arith.addf %35, %36 : vector<128x8xf32>
    %cst_31 = arith.constant 0.000000e+00 : f32
    %38 = vector.broadcast %cst_31 : f32 to vector<128x8xf32>
    %39 = arith.maximumf %37, %38 : vector<128x8xf32>
    %c0_32 = arith.constant 0 : index
    %c0_33 = arith.constant 0 : index
    %40 = vector.load %arg11[%c0_32, %c0_33] : memref<8x8xf32, #tpu.memory_space<vmem>>, vector<8x8xf32>
    %c0_34 = arith.constant 0 : index
    %c0_35 = arith.constant 0 : index
    %41 = vector.load %arg12[%c0_34, %c0_35] : memref<1x8xf32, #tpu.memory_space<vmem>>, vector<1x8xf32>
    %cst_36 = arith.constant dense<0.000000e+00> : vector<128x8xf32>
    %42 = tpu.matmul %39, %40, %cst_36 {dimension_numbers = #tpu.dot_dimension_numbers<[1], [0], [0], [1], [0, 0, 1, 1], [], []>} : vector<128x8xf32>, vector<8x8xf32>, vector<128x8xf32> -> vector<128x8xf32>
    %43 = arith.truncf %42 : vector<128x8xf32> to vector<128x8xbf16>
    %cst_37 = arith.constant dense<0.000000e+00> : vector<128x8xf32>
    %44 = tpu.matmul %1, %43, %cst_37 {dimension_numbers = #tpu.dot_dimension_numbers<[1], [0], [0], [1], [0, 0, 1, 1], [], []>} : vector<128x128xbf16>, vector<128x8xbf16>, vector<128x8xf32> -> vector<128x8xf32>
    %45 = vector.broadcast %41 : vector<1x8xf32> to vector<128x8xf32>
    %46 = arith.addf %44, %45 : vector<128x8xf32>
    %cst_38 = arith.constant 0.000000e+00 : f32
    %47 = vector.broadcast %cst_38 : f32 to vector<128x8xf32>
    %48 = arith.maximumf %46, %47 : vector<128x8xf32>
    %c0_39 = arith.constant 0 : index
    %c0_40 = arith.constant 0 : index
    %49 = vector.load %arg13[%c0_39, %c0_40] : memref<8x8xf32, #tpu.memory_space<vmem>>, vector<8x8xf32>
    %c0_41 = arith.constant 0 : index
    %c0_42 = arith.constant 0 : index
    %50 = vector.load %arg14[%c0_41, %c0_42] : memref<1x8xf32, #tpu.memory_space<vmem>>, vector<1x8xf32>
    %cst_43 = arith.constant dense<0.000000e+00> : vector<128x8xf32>
    %51 = tpu.matmul %48, %49, %cst_43 {dimension_numbers = #tpu.dot_dimension_numbers<[1], [0], [0], [1], [0, 0, 1, 1], [], []>} : vector<128x8xf32>, vector<8x8xf32>, vector<128x8xf32> -> vector<128x8xf32>
    %52 = arith.truncf %51 : vector<128x8xf32> to vector<128x8xbf16>
    %cst_44 = arith.constant dense<0.000000e+00> : vector<128x8xf32>
    %53 = tpu.matmul %1, %52, %cst_44 {dimension_numbers = #tpu.dot_dimension_numbers<[1], [0], [0], [1], [0, 0, 1, 1], [], []>} : vector<128x128xbf16>, vector<128x8xbf16>, vector<128x8xf32> -> vector<128x8xf32>
    %54 = vector.broadcast %50 : vector<1x8xf32> to vector<128x8xf32>
    %55 = arith.addf %53, %54 : vector<128x8xf32>
    %56 = vector.shape_cast %55 : vector<128x8xf32> to vector<16x8x8xf32>
    %cst_45 = arith.constant dense<0xFF800000> : vector<16x8xf32>
    %57 = vector.multi_reduction <maximumf>, %56, %cst_45 [1] : vector<16x8x8xf32> to vector<16x8xf32>
    %cst_46 = arith.constant dense<0.000000e+00> : vector<16x8xf32>
    %58 = vector.multi_reduction <add>, %56, %cst_46 [1] : vector<16x8x8xf32> to vector<16x8xf32>
    %cst_47 = arith.constant 1.250000e-01 : f32
    %59 = vector.broadcast %cst_47 : f32 to vector<16x8xf32>
    %60 = arith.mulf %58, %59 : vector<16x8xf32>
    %61 = tpu.concatenate %57, %60 in 1 : vector<16x8xf32>, vector<16x8xf32> -> vector<16x16xf32>
    %cst_48 = arith.constant 0.000000e+00 : f32
    %62 = vector.broadcast %cst_48 : f32 to vector<16x16xf32>
    %63 = arith.maximumf %61, %62 : vector<16x16xf32>
    %c0_49 = arith.constant 0 : index
    %c0_50 = arith.constant 0 : index
    %64 = vector.load %arg15[%c0_49, %c0_50] : memref<16x4xf32, #tpu.memory_space<vmem>>, vector<16x4xf32>
    %cst_51 = arith.constant dense<0.000000e+00> : vector<16x4xf32>
    %65 = tpu.matmul %63, %64, %cst_51 {dimension_numbers = #tpu.dot_dimension_numbers<[1], [0], [0], [1], [0, 0, 1, 1], [], []>} : vector<16x16xf32>, vector<16x4xf32>, vector<16x4xf32> -> vector<16x4xf32>
    %c0_52 = arith.constant 0 : index
    %c0_53 = arith.constant 0 : index
    %66 = vector.load %arg16[%c0_52, %c0_53] : memref<1x4xf32, #tpu.memory_space<vmem>>, vector<1x4xf32>
    %67 = vector.broadcast %66 : vector<1x4xf32> to vector<16x4xf32>
    %68 = arith.addf %65, %67 : vector<16x4xf32>
    %c0_54 = arith.constant 0 : index
    %c0_55 = arith.constant 0 : index
    %69 = vector.load %arg17[%c0_54, %c0_55] : memref<4x128xf32, #tpu.memory_space<vmem>>, vector<4x128xf32>
    %cst_56 = arith.constant dense<0.000000e+00> : vector<16x128xf32>
    %70 = tpu.matmul %68, %69, %cst_56 {dimension_numbers = #tpu.dot_dimension_numbers<[1], [0], [0], [1], [0, 0, 1, 1], [], []>} : vector<16x4xf32>, vector<4x128xf32>, vector<16x128xf32> -> vector<16x128xf32>
    %c0_57 = arith.constant 0 : index
    %c0_58 = arith.constant 0 : index
    %71 = vector.load %arg18[%c0_57, %c0_58] : memref<1x128xf32, #tpu.memory_space<vmem>>, vector<1x128xf32>
    %72 = vector.broadcast %71 : vector<1x128xf32> to vector<16x128xf32>
    %73 = arith.addf %70, %72 : vector<16x128xf32>
    %cst_59 = arith.constant 0.000000e+00 : f32
    %74 = vector.broadcast %cst_59 : f32 to vector<16x128xf32>
    %75 = arith.maximumf %73, %74 : vector<16x128xf32>
    %c0_60 = arith.constant 0 : index
    %c0_61 = arith.constant 0 : index
    %c0_62 = arith.constant 0 : index
    %76 = vector.load %arg19[%c0_60, %c0_61, %c0_62] : memref<1x16x128xf32, #tpu.memory_space<vmem>>, vector<1x16x128xf32>
    %77 = vector.shape_cast %76 : vector<1x16x128xf32> to vector<16x128xf32>
    %78 = vector.shape_cast %75 : vector<16x128xf32> to vector<1x16x128xf32>
    tpu.vector_store %arg19[%c0_60, %c0_61, %c0_62], %78 {strides = array<i32>} : memref<1x16x128xf32, #tpu.memory_space<vmem>>, vector<1x16x128xf32>,
    return
  }
  func.func @transform_0(%arg0: i32) -> (i32, i32, i32) {
    %c0_i32 = arith.constant 0 : i32
    %c0_i32_0 = arith.constant 0 : i32
    %c0_i32_1 = arith.constant 0 : i32
    return %arg0, %c0_i32, %c0_i32_0 : i32, i32, i32
  }
  func.func @transform_1(%arg0: i32) -> (i32, i32, i32) {
    %c0_i32 = arith.constant 0 : i32
    %c0_i32_0 = arith.constant 0 : i32
    %c0_i32_1 = arith.constant 0 : i32
    return %arg0, %c0_i32, %c0_i32_0 : i32, i32, i32
  }
  func.func @transform_2(%arg0: i32) -> (i32, i32) {
    %c0_i32 = arith.constant 0 : i32
    %c0_i32_0 = arith.constant 0 : i32
    %c0_i32_1 = arith.constant 0 : i32
    return %c0_i32, %c0_i32_0 : i32, i32
  }
  func.func @transform_3(%arg0: i32) -> (i32, i32) {
    %c0_i32 = arith.constant 0 : i32
    %c0_i32_0 = arith.constant 0 : i32
    %c0_i32_1 = arith.constant 0 : i32
    return %c0_i32, %c0_i32_0 : i32, i32
  }
  func.func @transform_4(%arg0: i32) -> (i32, i32) {
    %c0_i32 = arith.constant 0 : i32
    %c0_i32_0 = arith.constant 0 : i32
    %c0_i32_1 = arith.constant 0 : i32
    return %c0_i32, %c0_i32_0 : i32, i32
  }
  func.func @transform_5(%arg0: i32) -> (i32, i32) {
    %c0_i32 = arith.constant 0 : i32
    %c0_i32_0 = arith.constant 0 : i32
    %c0_i32_1 = arith.constant 0 : i32
    return %c0_i32, %c0_i32_0 : i32, i32
  }
  func.func @transform_6(%arg0: i32) -> (i32, i32) {
    %c0_i32 = arith.constant 0 : i32
    %c0_i32_0 = arith.constant 0 : i32
    %c0_i32_1 = arith.constant 0 : i32
    return %c0_i32, %c0_i32_0 : i32, i32
  }
  func.func @transform_7(%arg0: i32) -> (i32, i32) {
    %c0_i32 = arith.constant 0 : i32
    %c0_i32_0 = arith.constant 0 : i32
    %c0_i32_1 = arith.constant 0 : i32
    return %c0_i32, %c0_i32_0 : i32, i32
  }
  func.func @transform_8(%arg0: i32) -> (i32, i32) {
    %c0_i32 = arith.constant 0 : i32
    %c0_i32_0 = arith.constant 0 : i32
    %c0_i32_1 = arith.constant 0 : i32
    return %c0_i32, %c0_i32_0 : i32, i32
  }
  func.func @transform_9(%arg0: i32) -> (i32, i32) {
    %c0_i32 = arith.constant 0 : i32
    %c0_i32_0 = arith.constant 0 : i32
    %c0_i32_1 = arith.constant 0 : i32
    return %c0_i32, %c0_i32_0 : i32, i32
  }
  func.func @transform_10(%arg0: i32) -> (i32, i32) {
    %c0_i32 = arith.constant 0 : i32
    %c0_i32_0 = arith.constant 0 : i32
    %c0_i32_1 = arith.constant 0 : i32
    return %c0_i32, %c0_i32_0 : i32, i32
  }
  func.func @transform_11(%arg0: i32) -> (i32, i32) {
    %c0_i32 = arith.constant 0 : i32
    %c0_i32_0 = arith.constant 0 : i32
    %c0_i32_1 = arith.constant 0 : i32
    return %c0_i32, %c0_i32_0 : i32, i32
  }
  func.func @transform_12(%arg0: i32) -> (i32, i32) {
    %c0_i32 = arith.constant 0 : i32
    %c0_i32_0 = arith.constant 0 : i32
    %c0_i32_1 = arith.constant 0 : i32
    return %c0_i32, %c0_i32_0 : i32, i32
  }
  func.func @transform_13(%arg0: i32) -> (i32, i32) {
    %c0_i32 = arith.constant 0 : i32
    %c0_i32_0 = arith.constant 0 : i32
    %c0_i32_1 = arith.constant 0 : i32
    return %c0_i32, %c0_i32_0 : i32, i32
  }
  func.func @transform_14(%arg0: i32) -> (i32, i32) {
    %c0_i32 = arith.constant 0 : i32
    %c0_i32_0 = arith.constant 0 : i32
    %c0_i32_1 = arith.constant 0 : i32
    return %c0_i32, %c0_i32_0 : i32, i32
  }
  func.func @transform_15(%arg0: i32) -> (i32, i32) {
    %c0_i32 = arith.constant 0 : i32
    %c0_i32_0 = arith.constant 0 : i32
    %c0_i32_1 = arith.constant 0 : i32
    return %c0_i32, %c0_i32_0 : i32, i32
  }
  func.func @transform_16(%arg0: i32) -> (i32, i32) {
    %c0_i32 = arith.constant 0 : i32
    %c0_i32_0 = arith.constant 0 : i32
    %c0_i32_1 = arith.constant 0 : i32
    return %c0_i32, %c0_i32_0 : i32, i32
  }
  func.func @transform_17(%arg0: i32) -> (i32, i32) {
    %c0_i32 = arith.constant 0 : i32
    %c0_i32_0 = arith.constant 0 : i32
    %c0_i32_1 = arith.constant 0 : i32
    return %c0_i32, %c0_i32_0 : i32, i32
  }
  func.func @transform_18(%arg0: i32) -> (i32, i32, i32) {
    %c0_i32 = arith.constant 0 : i32
    %c0_i32_0 = arith.constant 0 : i32
    %c0_i32_1 = arith.constant 0 : i32
    return %arg0, %c0_i32, %c0_i32_0 : i32, i32, i32
  }
}

</mosaic_0001>

<llo_original>
// kernel: tpu_custom_call.1
$region0: #{tpu_custom_call.1}
  #allocation0 [shape = 'u32[]', space=smem, size = 0x4, offset = 0x4, fixed_abs, tag = 'smem constant byte address 0x4 - core index']
  #allocation1 [shape = 'u32[144,128]{1,0:T(1,128)}', space=vmem, size = 0x12000, scoped, tag = 'internal scratch']
  %s0 = inlined_call_operand.vmem [shape: bf16[2,128,128], index: 0, kind: input, shape index: {}]
  %s1 = inlined_call_operand.vmem [shape: f32[2,128,4], index: 1, kind: input, shape index: {}]
  %s2 = inlined_call_operand.vmem [shape: f32[4,8], index: 2, kind: input, shape index: {}]
  %s3 = inlined_call_operand.vmem [shape: f32[1,8], index: 3, kind: input, shape index: {}]
  %s4 = inlined_call_operand.vmem [shape: f32[8,8], index: 4, kind: input, shape index: {}]
  %s5 = inlined_call_operand.vmem [shape: f32[1,8], index: 5, kind: input, shape index: {}]
  %s6 = inlined_call_operand.vmem [shape: f32[8,8], index: 6, kind: input, shape index: {}]
  %s7 = inlined_call_operand.vmem [shape: f32[1,8], index: 7, kind: input, shape index: {}]
  %s8 = inlined_call_operand.vmem [shape: f32[8,8], index: 8, kind: input, shape index: {}]
  %s9 = inlined_call_operand.vmem [shape: f32[1,8], index: 9, kind: input, shape index: {}]
  %s10 = inlined_call_operand.vmem [shape: f32[8,8], index: 10, kind: input, shape index: {}]
  %s11 = inlined_call_operand.vmem [shape: f32[1,8], index: 11, kind: input, shape index: {}]
  %s12 = inlined_call_operand.vmem [shape: f32[8,8], index: 12, kind: input, shape index: {}]
  %s13 = inlined_call_operand.vmem [shape: f32[1,8], index: 13, kind: input, shape index: {}]
  %s14 = inlined_call_operand.vmem [shape: f32[16,4], index: 14, kind: input, shape index: {}]
  %s15 = inlined_call_operand.vmem [shape: f32[1,4], index: 15, kind: input, shape index: {}]
  %s16 = inlined_call_operand.vmem [shape: f32[4,128], index: 16, kind: input, shape index: {}]
  %s17 = inlined_call_operand.vmem [shape: f32[1,128], index: 17, kind: input, shape index: {}]
  %s18 = inlined_call_operand.hbm [shape: f32[2,16,128], index: 18, kind: output, shape index: {}]
  %s19 = sld [smem:[#allocation0]]
  $region105: #{tpu_custom_call.1} parent=0
    _
  %s21 = ssub.s32 1, %s19
  %s22 = scalar_select 0, %s21, %s19
  $region1: #{tpu_custom_call.1} parent=0
    #allocation2 [shape = 'u8[16384]{0}', space=vmem, size = 0x4000, scoped, tag = 'output window, operand 0']
    #allocation3 [shape = 's32[2]{0}', space=sflag, size = 0x8, scoped, tag = 'scoped memory for tpu_custom_call.1']
    %23 = vsyncpa [#allocation3], 0
    %s24 = scalar_lea.sflag [#allocation3], 1
    %25 = vsyncpa %s24, 0
    loop: start=0, step=1, limit=4
    $region2: #{tpu_custom_call.1} parent=1 // loop_pre_header
      _
    $region3: #{tpu_custom_call.1} parent=1 // loop_header
      %s27 = sphi 0, %s31
      %p28 = scmp.ge.s32.totalorder %s27, 4
      %s37 = sphi 0, %s39
      %s40 = sphi 0, %s37
      %s41 = sphi 0, %s40
      %s57 = sphi 0, %s41
      %s63 = sphi 0, %s65
      %s66 = sphi 0, %s63
      %s67 = sphi 0, %s66
      %s83 = sphi 0, %s67
      %s87 = sphi 0, %s87
      %s89 = sphi 0, %s87
      %s90 = sphi 0, %s89
      %s104 = sphi 0, %s90
      %s108 = sphi 0, %s108
      %s110 = sphi 0, %s108
      %s111 = sphi 0, %s110
      %s125 = sphi 0, %s111
      %s129 = sphi 0, %s129
      %s131 = sphi 0, %s129
      %s132 = sphi 0, %s131
      %s146 = sphi 0, %s132
      %s150 = sphi 0, %s150
      %s152 = sphi 0, %s150
      %s153 = sphi 0, %s152
      %s167 = sphi 0, %s153
      %s171 = sphi 0, %s171
      %s173 = sphi 0, %s171
      %s174 = sphi 0, %s173
      %s188 = sphi 0, %s174
      %s192 = sphi 0, %s192
      %s194 = sphi 0, %s192
      %s195 = sphi 0, %s194
      %s209 = sphi 0, %s195
      %s213 = sphi 0, %s213
      %s215 = sphi 0, %s213
      %s216 = sphi 0, %s215
      %s230 = sphi 0, %s216
      %s234 = sphi 0, %s234
      %s236 = sphi 0, %s234
      %s237 = sphi 0, %s236
      %s251 = sphi 0, %s237
      %s255 = sphi 0, %s255
      %s257 = sphi 0, %s255
      %s258 = sphi 0, %s257
      %s272 = sphi 0, %s258
      %s276 = sphi 0, %s276
      %s278 = sphi 0, %s276
      %s279 = sphi 0, %s278
      %s293 = sphi 0, %s279
      %s297 = sphi 0, %s297
      %s299 = sphi 0, %s297
      %s300 = sphi 0, %s299
      %s314 = sphi 0, %s300
      %s318 = sphi 0, %s318
      %s320 = sphi 0, %s318
      %s321 = sphi 0, %s320
      %s335 = sphi 0, %s321
      %s339 = sphi 0, %s339
      %s341 = sphi 0, %s339
      %s342 = sphi 0, %s341
      %s356 = sphi 0, %s342
      %s360 = sphi 0, %s360
      %s362 = sphi 0, %s360
      %s363 = sphi 0, %s362
      %s377 = sphi 0, %s363
      %s381 = sphi 0, %s381
      %s383 = sphi 0, %s381
      %s384 = sphi 0, %s383
      %s398 = sphi 0, %s384
      %s402 = sphi 0, %s402
      %s404 = sphi 0, %s402
      %s405 = sphi 0, %s404
      %s419 = sphi 0, %s405
      %s425 = sphi 0, %s427
      %s428 = sphi 0, %s425
      %s429 = sphi 0, %s428
      %s445 = sphi 0, %s429
    $region4: #{tpu_custom_call.1} parent=1 // loop_header_branch
      %30 = sbr.rel (%p28) target = $region8
    $region5: #{tpu_custom_call.1} parent=1 // loop_body
      %s32 = ssub.s32 %s27, 1
      %s33 = ssub.s32 %s27, 2
      %s34 = sadd.s32 %s27, 1
      %s35 = ssub.s32 %s27, %s34
      %p36 = scmp.eq.s32.totalorder %s35, 0
      %s38 = sadd.s32 %s37, 1
      %s39 = scalar_select %p36, %s37, %s38
      %p42 = pneg %p36
      %p43 = scmp.eq.s32.totalorder %s27, 1
      %p44 = por %p42, %p43
      %p45 = scmp.ne.s32.totalorder %s37, %s40
      %p46 = scmp.eq.s32.totalorder %s27, 0
      %p47 = por %p45, %p46
      %p48 = scmp.ne.s32.totalorder %s37, %s40
      %p49 = scmp.eq.s32.totalorder %s32, 1
      %p50 = por %p48, %p49
      %p51 = scmp.ne.s32.totalorder %s40, %s41
      %p52 = scmp.eq.s32.totalorder %s32, 0
      %p53 = por %p51, %p52
      %p54 = scmp.ne.s32.totalorder %s40, %s41
      %p55 = scmp.eq.s32.totalorder %s33, 1
      %p56 = por %p54, %p55
      %p58 = scmp.ne.s32.totalorder %s41, %s57
      %p59 = scmp.eq.s32.totalorder %s33, 0
      %p60 = por %p58, %p59
      %s61 = ssub.s32 %s27, %s34
      %p62 = scmp.eq.s32.totalorder %s61, 0
      %s64 = sadd.s32 %s63, 1
      %s65 = scalar_select %p62, %s63, %s64
      %p68 = pneg %p62
      %p69 = scmp.eq.s32.totalorder %s27, 1
      %p70 = por %p68, %p69
      %p71 = scmp.ne.s32.totalorder %s63, %s66
      %p72 = scmp.eq.s32.totalorder %s27, 0
      %p73 = por %p71, %p72
      %p74 = scmp.ne.s32.totalorder %s63, %s66
      %p75 = scmp.eq.s32.totalorder %s32, 1
      %p76 = por %p74, %p75
      %p77 = scmp.ne.s32.totalorder %s66, %s67
      %p78 = scmp.eq.s32.totalorder %s32, 0
      %p79 = por %p77, %p78
      %p80 = scmp.ne.s32.totalorder %s66, %s67
      %p81 = scmp.eq.s32.totalorder %s33, 1
      %p82 = por %p80, %p81
      %p84 = scmp.ne.s32.totalorder %s67, %s83
      %p85 = scmp.eq.s32.totalorder %s33, 0
      %p86 = por %p84, %p85
      %s88 = sadd.s32 %s87, 1
      %p91 = scmp.eq.s32.totalorder %s27, 1
      %p92 = scmp.ne.s32.totalorder %s87, %s89
      %p93 = scmp.eq.s32.totalorder %s27, 0
      %p94 = por %p92, %p93
      %p95 = scmp.ne.s32.totalorder %s87, %s89
      %p96 = scmp.eq.s32.totalorder %s32, 1
      %p97 = por %p95, %p96
      %p98 = scmp.ne.s32.totalorder %s89, %s90
      %p99 = scmp.eq.s32.totalorder %s32, 0
      %p100 = por %p98, %p99
      %p101 = scmp.ne.s32.totalorder %s89, %s90
      %p102 = scmp.eq.s32.totalorder %s33, 1
      %p103 = por %p101, %p102
      %p105 = scmp.ne.s32.totalorder %s90, %s104
      %p106 = scmp.eq.s32.totalorder %s33, 0
      %p107 = por %p105, %p106
      %s109 = sadd.s32 %s108, 1
      %p112 = scmp.eq.s32.totalorder %s27, 1
      %p113 = scmp.ne.s32.totalorder %s108, %s110
      %p114 = scmp.eq.s32.totalorder %s27, 0
      %p115 = por %p113, %p114
      %p116 = scmp.ne.s32.totalorder %s108, %s110
      %p117 = scmp.eq.s32.totalorder %s32, 1
      %p118 = por %p116, %p117
      %p119 = scmp.ne.s32.totalorder %s110, %s111
      %p120 = scmp.eq.s32.totalorder %s32, 0
      %p121 = por %p119, %p120
      %p122 = scmp.ne.s32.totalorder %s110, %s111
      %p123 = scmp.eq.s32.totalorder %s33, 1
      %p124 = por %p122, %p123
      %p126 = scmp.ne.s32.totalorder %s111, %s125
      %p127 = scmp.eq.s32.totalorder %s33, 0
      %p128 = por %p126, %p127
      %s130 = sadd.s32 %s129, 1
      %p133 = scmp.eq.s32.totalorder %s27, 1
      %p134 = scmp.ne.s32.totalorder %s129, %s131
      %p135 = scmp.eq.s32.totalorder %s27, 0
      %p136 = por %p134, %p135
      %p137 = scmp.ne.s32.totalorder %s129, %s131
      %p138 = scmp.eq.s32.totalorder %s32, 1
      %p139 = por %p137, %p138
      %p140 = scmp.ne.s32.totalorder %s131, %s132
      %p141 = scmp.eq.s32.totalorder %s32, 0
      %p142 = por %p140, %p141
      %p143 = scmp.ne.s32.totalorder %s131, %s132
      %p144 = scmp.eq.s32.totalorder %s33, 1
      %p145 = por %p143, %p144
      %p147 = scmp.ne.s32.totalorder %s132, %s146
      %p148 = scmp.eq.s32.totalorder %s33, 0
      %p149 = por %p147, %p148
      %s151 = sadd.s32 %s150, 1
      %p154 = scmp.eq.s32.totalorder %s27, 1
      %p155 = scmp.ne.s32.totalorder %s150, %s152
      %p156 = scmp.eq.s32.totalorder %s27, 0
      %p157 = por %p155, %p156
      %p158 = scmp.ne.s32.totalorder %s150, %s152
      %p159 = scmp.eq.s32.totalorder %s32, 1
      %p160 = por %p158, %p159
      %p161 = scmp.ne.s32.totalorder %s152, %s153
      %p162 = scmp.eq.s32.totalorder %s32, 0
      %p163 = por %p161, %p162
      %p164 = scmp.ne.s32.totalorder %s152, %s153
      %p165 = scmp.eq.s32.totalorder %s33, 1
      %p166 = por %p164, %p165
      %p168 = scmp.ne.s32.totalorder %s153, %s167
      %p169 = scmp.eq.s32.totalorder %s33, 0
      %p170 = por %p168, %p169
      %s172 = sadd.s32 %s171, 1
      %p175 = scmp.eq.s32.totalorder %s27, 1
      %p176 = scmp.ne.s32.totalorder %s171, %s173
      %p177 = scmp.eq.s32.totalorder %s27, 0
      %p178 = por %p176, %p177
      %p179 = scmp.ne.s32.totalorder %s171, %s173
      %p180 = scmp.eq.s32.totalorder %s32, 1
      %p181 = por %p179, %p180
      %p182 = scmp.ne.s32.totalorder %s173, %s174
      %p183 = scmp.eq.s32.totalorder %s32, 0
      %p184 = por %p182, %p183
      %p185 = scmp.ne.s32.totalorder %s173, %s174
      %p186 = scmp.eq.s32.totalorder %s33, 1
      %p187 = por %p185, %p186
      %p189 = scmp.ne.s32.totalorder %s174, %s188
      %p190 = scmp.eq.s32.totalorder %s33, 0
      %p191 = por %p189, %p190
      %s193 = sadd.s32 %s192, 1
      %p196 = scmp.eq.s32.totalorder %s27, 1
      %p197 = scmp.ne.s32.totalorder %s192, %s194
      %p198 = scmp.eq.s32.totalorder %s27, 0
      %p199 = por %p197, %p198
      %p200 = scmp.ne.s32.totalorder %s192, %s194
      %p201 = scmp.eq.s32.totalorder %s32, 1
      %p202 = por %p200, %p201
      %p203 = scmp.ne.s32.totalorder %s194, %s195
      %p204 = scmp.eq.s32.totalorder %s32, 0
      %p205 = por %p203, %p204
      %p206 = scmp.ne.s32.totalorder %s194, %s195
      %p207 = scmp.eq.s32.totalorder %s33, 1
      %p208 = por %p206, %p207
      %p210 = scmp.ne.s32.totalorder %s195, %s209
      %p211 = scmp.eq.s32.totalorder %s33, 0
      %p212 = por %p210, %p211
      %s214 = sadd.s32 %s213, 1
      %p217 = scmp.eq.s32.totalorder %s27, 1
      %p218 = scmp.ne.s32.totalorder %s213, %s215
      %p219 = scmp.eq.s32.totalorder %s27, 0
      %p220 = por %p218, %p219
      %p221 = scmp.ne.s32.totalorder %s213, %s215
      %p222 = scmp.eq.s32.totalorder %s32, 1
      %p223 = por %p221, %p222
      %p224 = scmp.ne.s32.totalorder %s215, %s216
      %p225 = scmp.eq.s32.totalorder %s32, 0
      %p226 = por %p224, %p225
      %p227 = scmp.ne.s32.totalorder %s215, %s216
      %p228 = scmp.eq.s32.totalorder %s33, 1
      %p229 = por %p227, %p228
      %p231 = scmp.ne.s32.totalorder %s216, %s230
      %p232 = scmp.eq.s32.totalorder %s33, 0
      %p233 = por %p231, %p232
      %s235 = sadd.s32 %s234, 1
      %p238 = scmp.eq.s32.totalorder %s27, 1
      %p239 = scmp.ne.s32.totalorder %s234, %s236
      %p240 = scmp.eq.s32.totalorder %s27, 0
      %p241 = por %p239, %p240
      %p242 = scmp.ne.s32.totalorder %s234, %s236
      %p243 = scmp.eq.s32.totalorder %s32, 1
      %p244 = por %p242, %p243
      %p245 = scmp.ne.s32.totalorder %s236, %s237
      %p246 = scmp.eq.s32.totalorder %s32, 0
      %p247 = por %p245, %p246
      %p248 = scmp.ne.s32.totalorder %s236, %s237
      %p249 = scmp.eq.s32.totalorder %s33, 1
      %p250 = por %p248, %p249
      %p252 = scmp.ne.s32.totalorder %s237, %s251
      %p253 = scmp.eq.s32.totalorder %s33, 0
      %p254 = por %p252, %p253
      %s256 = sadd.s32 %s255, 1
      %p259 = scmp.eq.s32.totalorder %s27, 1
      %p260 = scmp.ne.s32.totalorder %s255, %s257
      %p261 = scmp.eq.s32.totalorder %s27, 0
      %p262 = por %p260, %p261
      %p263 = scmp.ne.s32.totalorder %s255, %s257
      %p264 = scmp.eq.s32.totalorder %s32, 1
      %p265 = por %p263, %p264
      %p266 = scmp.ne.s32.totalorder %s257, %s258
      %p267 = scmp.eq.s32.totalorder %s32, 0
      %p268 = por %p266, %p267
      %p269 = scmp.ne.s32.totalorder %s257, %s258
      %p270 = scmp.eq.s32.totalorder %s33, 1
      %p271 = por %p269, %p270
      %p273 = scmp.ne.s32.totalorder %s258, %s272
      %p274 = scmp.eq.s32.totalorder %s33, 0
      %p275 = por %p273, %p274
      %s277 = sadd.s32 %s276, 1
      %p280 = scmp.eq.s32.totalorder %s27, 1
      %p281 = scmp.ne.s32.totalorder %s276, %s278
      %p282 = scmp.eq.s32.totalorder %s27, 0
      %p283 = por %p281, %p282
      %p284 = scmp.ne.s32.totalorder %s276, %s278
      %p285 = scmp.eq.s32.totalorder %s32, 1
      %p286 = por %p284, %p285
      %p287 = scmp.ne.s32.totalorder %s278, %s279
      %p288 = scmp.eq.s32.totalorder %s32, 0
      %p289 = por %p287, %p288
      %p290 = scmp.ne.s32.totalorder %s278, %s279
      %p291 = scmp.eq.s32.totalorder %s33, 1
      %p292 = por %p290, %p291
      %p294 = scmp.ne.s32.totalorder %s279, %s293
      %p295 = scmp.eq.s32.totalorder %s33, 0
      %p296 = por %p294, %p295
      %s298 = sadd.s32 %s297, 1
      %p301 = scmp.eq.s32.totalorder %s27, 1
      %p302 = scmp.ne.s32.totalorder %s297, %s299
      %p303 = scmp.eq.s32.totalorder %s27, 0
      %p304 = por %p302, %p303
      %p305 = scmp.ne.s32.totalorder %s297, %s299
      %p306 = scmp.eq.s32.totalorder %s32, 1
      %p307 = por %p305, %p306
      %p308 = scmp.ne.s32.totalorder %s299, %s300
      %p309 = scmp.eq.s32.totalorder %s32, 0
      %p310 = por %p308, %p309
      %p311 = scmp.ne.s32.totalorder %s299, %s300
      %p312 = scmp.eq.s32.totalorder %s33, 1
      %p313 = por %p311, %p312
      %p315 = scmp.ne.s32.totalorder %s300, %s314
      %p316 = scmp.eq.s32.totalorder %s33, 0
      %p317 = por %p315, %p316
      %s319 = sadd.s32 %s318, 1
      %p322 = scmp.eq.s32.totalorder %s27, 1
      %p323 = scmp.ne.s32.totalorder %s318, %s320
      %p324 = scmp.eq.s32.totalorder %s27, 0
      %p325 = por %p323, %p324
      %p326 = scmp.ne.s32.totalorder %s318, %s320
      %p327 = scmp.eq.s32.totalorder %s32, 1
      %p328 = por %p326, %p327
      %p329 = scmp.ne.s32.totalorder %s320, %s321
      %p330 = scmp.eq.s32.totalorder %s32, 0
      %p331 = por %p329, %p330
      %p332 = scmp.ne.s32.totalorder %s320, %s321
      %p333 = scmp.eq.s32.totalorder %s33, 1
      %p334 = por %p332, %p333
      %p336 = scmp.ne.s32.totalorder %s321, %s335
      %p337 = scmp.eq.s32.totalorder %s33, 0
      %p338 = por %p336, %p337
      %s340 = sadd.s32 %s339, 1
      %p343 = scmp.eq.s32.totalorder %s27, 1
      %p344 = scmp.ne.s32.totalorder %s339, %s341
      %p345 = scmp.eq.s32.totalorder %s27, 0
      %p346 = por %p344, %p345
      %p347 = scmp.ne.s32.totalorder %s339, %s341
      %p348 = scmp.eq.s32.totalorder %s32, 1
      %p349 = por %p347, %p348
      %p350 = scmp.ne.s32.totalorder %s341, %s342
      %p351 = scmp.eq.s32.totalorder %s32, 0
      %p352 = por %p350, %p351
      %p353 = scmp.ne.s32.totalorder %s341, %s342
      %p354 = scmp.eq.s32.totalorder %s33, 1
      %p355 = por %p353, %p354
      %p357 = scmp.ne.s32.totalorder %s342, %s356
      %p358 = scmp.eq.s32.totalorder %s33, 0
      %p359 = por %p357, %p358
      %s361 = sadd.s32 %s360, 1
      %p364 = scmp.eq.s32.totalorder %s27, 1
      %p365 = scmp.ne.s32.totalorder %s360, %s362
      %p366 = scmp.eq.s32.totalorder %s27, 0
      %p367 = por %p365, %p366
      %p368 = scmp.ne.s32.totalorder %s360, %s362
      %p369 = scmp.eq.s32.totalorder %s32, 1
      %p370 = por %p368, %p369
      %p371 = scmp.ne.s32.totalorder %s362, %s363
      %p372 = scmp.eq.s32.totalorder %s32, 0
      %p373 = por %p371, %p372
      %p374 = scmp.ne.s32.totalorder %s362, %s363
      %p375 = scmp.eq.s32.totalorder %s33, 1
      %p376 = por %p374, %p375
      %p378 = scmp.ne.s32.totalorder %s363, %s377
      %p379 = scmp.eq.s32.totalorder %s33, 0
      %p380 = por %p378, %p379
      %s382 = sadd.s32 %s381, 1
      %p385 = scmp.eq.s32.totalorder %s27, 1
      %p386 = scmp.ne.s32.totalorder %s381, %s383
      %p387 = scmp.eq.s32.totalorder %s27, 0
      %p388 = por %p386, %p387
      %p389 = scmp.ne.s32.totalorder %s381, %s383
      %p390 = scmp.eq.s32.totalorder %s32, 1
      %p391 = por %p389, %p390
      %p392 = scmp.ne.s32.totalorder %s383, %s384
      %p393 = scmp.eq.s32.totalorder %s32, 0
      %p394 = por %p392, %p393
      %p395 = scmp.ne.s32.totalorder %s383, %s384
      %p396 = scmp.eq.s32.totalorder %s33, 1
      %p397 = por %p395, %p396
      %p399 = scmp.ne.s32.totalorder %s384, %s398
      %p400 = scmp.eq.s32.totalorder %s33, 0
      %p401 = por %p399, %p400
      %s403 = sadd.s32 %s402, 1
      %p406 = scmp.eq.s32.totalorder %s27, 1
      %p407 = scmp.ne.s32.totalorder %s402, %s404
      %p408 = scmp.eq.s32.totalorder %s27, 0
      %p409 = por %p407, %p408
      %p410 = scmp.ne.s32.totalorder %s402, %s404
      %p411 = scmp.eq.s32.totalorder %s32, 1
      %p412 = por %p410, %p411
      %p413 = scmp.ne.s32.totalorder %s404, %s405
      %p414 = scmp.eq.s32.totalorder %s32, 0
      %p415 = por %p413, %p414
      %p416 = scmp.ne.s32.totalorder %s404, %s405
      %p417 = scmp.eq.s32.totalorder %s33, 1
      %p418 = por %p416, %p417
      %p420 = scmp.ne.s32.totalorder %s405, %s419
      %p421 = scmp.eq.s32.totalorder %s33, 0
      %p422 = por %p420, %p421
      %s423 = ssub.s32 %s27, %s34
      %p424 = scmp.eq.s32.totalorder %s423, 0
      %s426 = sadd.s32 %s425, 1
      %s427 = scalar_select %p424, %s425, %s426
      %p430 = pneg %p424
      %p431 = scmp.eq.s32.totalorder %s27, 1
      %p432 = por %p430, %p431
      %p433 = scmp.ne.s32.totalorder %s425, %s428
      %p434 = scmp.eq.s32.totalorder %s27, 0
      %p435 = por %p433, %p434
      %p436 = scmp.ne.s32.totalorder %s425, %s428
      %p437 = scmp.eq.s32.totalorder %s32, 1
      %p438 = por %p436, %p437
      %p439 = scmp.ne.s32.totalorder %s428, %s429
      %p440 = scmp.eq.s32.totalorder %s32, 0
      %p441 = por %p439, %p440
      %p442 = scmp.ne.s32.totalorder %s428, %s429
      %p443 = scmp.eq.s32.totalorder %s33, 1
      %p444 = por %p442, %p443
      %p446 = scmp.ne.s32.totalorder %s429, %s445
      %p447 = scmp.eq.s32.totalorder %s33, 0
      %p448 = por %p446, %p447
      %p449 = scmp.le.s32.totalorder 1, %s27
      %p450 = scmp.lt.s32.totalorder %s27, 3
      %p451 = pnand %p449, %p450
      %p452 = pneg %p451
      // Predicated region
      $region9: #{tpu_custom_call.1} parent=5 // pred_check
        _
      $region10: #{tpu_custom_call.1} parent=5 // pred_check_branch
        %454 = sbr.rel (%p451) target = $region12
      $region11: #{tpu_custom_call.1} parent=5 // pred_region
        %s455 = ssub.s32 %s27, 1
        // Predicated region
        $region13: #{tpu_custom_call.1} parent=11 // pred_check
          %p456 = pneg %p100
        $region14: #{tpu_custom_call.1} parent=11 // pred_check_branch
          %458 = sbr.rel (%p456) target = $region16
        $region15: #{tpu_custom_call.1} parent=11 // pred_region
          _
        $region16: #{tpu_custom_call.1} parent=11 // pred_fallthru
          _
        // Predicated region
        $region17: #{tpu_custom_call.1} parent=11 // pred_check
          %p459 = pneg %p121
        $region18: #{tpu_custom_call.1} parent=11 // pred_check_branch
          %461 = sbr.rel (%p459) target = $region20
        $region19: #{tpu_custom_call.1} parent=11 // pred_region
          _
        $region20: #{tpu_custom_call.1} parent=11 // pred_fallthru
          _
        // Predicated region
        $region21: #{tpu_custom_call.1} parent=11 // pred_check
          %p462 = pneg %p142
        $region22: #{tpu_custom_call.1} parent=11 // pred_check_branch
          %464 = sbr.rel (%p462) target = $region24
        $region23: #{tpu_custom_call.1} parent=11 // pred_region
          _
        $region24: #{tpu_custom_call.1} parent=11 // pred_fallthru
          _
        // Predicated region
        $region25: #{tpu_custom_call.1} parent=11 // pred_check
          %p465 = pneg %p163
        $region26: #{tpu_custom_call.1} parent=11 // pred_check_branch
          %467 = sbr.rel (%p465) target = $region28
        $region27: #{tpu_custom_call.1} parent=11 // pred_region
          _
        $region28: #{tpu_custom_call.1} parent=11 // pred_fallthru
          _
        // Predicated region
        $region29: #{tpu_custom_call.1} parent=11 // pred_check
          %p468 = pneg %p184
        $region30: #{tpu_custom_call.1} parent=11 // pred_check_branch
          %470 = sbr.rel (%p468) target = $region32
        $region31: #{tpu_custom_call.1} parent=11 // pred_region
          _
        $region32: #{tpu_custom_call.1} parent=11 // pred_fallthru
          _
        // Predicated region
        $region33: #{tpu_custom_call.1} parent=11 // pred_check
          %p471 = pneg %p205
        $region34: #{tpu_custom_call.1} parent=11 // pred_check_branch
          %473 = sbr.rel (%p471) target = $region36
        $region35: #{tpu_custom_call.1} parent=11 // pred_region
          _
        $region36: #{tpu_custom_call.1} parent=11 // pred_fallthru
          _
        // Predicated region
        $region37: #{tpu_custom_call.1} parent=11 // pred_check
          %p474 = pneg %p226
        $region38: #{tpu_custom_call.1} parent=11 // pred_check_branch
          %476 = sbr.rel (%p474) target = $region40
        $region39: #{tpu_custom_call.1} parent=11 // pred_region
          _
        $region40: #{tpu_custom_call.1} parent=11 // pred_fallthru
          _
        // Predicated region
        $region41: #{tpu_custom_call.1} parent=11 // pred_check
          %p477 = pneg %p247
        $region42: #{tpu_custom_call.1} parent=11 // pred_check_branch
          %479 = sbr.rel (%p477) target = $region44
        $region43: #{tpu_custom_call.1} parent=11 // pred_region
          _
        $region44: #{tpu_custom_call.1} parent=11 // pred_fallthru
          _
        // Predicated region
        $region45: #{tpu_custom_call.1} parent=11 // pred_check
          %p480 = pneg %p268
        $region46: #{tpu_custom_call.1} parent=11 // pred_check_branch
          %482 = sbr.rel (%p480) target = $region48
        $region47: #{tpu_custom_call.1} parent=11 // pred_region
          _
        $region48: #{tpu_custom_call.1} parent=11 // pred_fallthru
          _
        // Predicated region
        $region49: #{tpu_custom_call.1} parent=11 // pred_check
          %p483 = pneg %p289
        $region50: #{tpu_custom_call.1} parent=11 // pred_check_branch
          %485 = sbr.rel (%p483) target = $region52
        $region51: #{tpu_custom_call.1} parent=11 // pred_region
          _
        $region52: #{tpu_custom_call.1} parent=11 // pred_fallthru
          _
        // Predicated region
        $region53: #{tpu_custom_call.1} parent=11 // pred_check
          %p486 = pneg %p310
        $region54: #{tpu_custom_call.1} parent=11 // pred_check_branch
          %488 = sbr.rel (%p486) target = $region56
        $region55: #{tpu_custom_call.1} parent=11 // pred_region
          _
        $region56: #{tpu_custom_call.1} parent=11 // pred_fallthru
          _
        // Predicated region
        $region57: #{tpu_custom_call.1} parent=11 // pred_check
          %p489 = pneg %p331
        $region58: #{tpu_custom_call.1} parent=11 // pred_check_branch
          %491 = sbr.rel (%p489) target = $region60
        $region59: #{tpu_custom_call.1} parent=11 // pred_region
          _
        $region60: #{tpu_custom_call.1} parent=11 // pred_fallthru
          _
        // Predicated region
        $region61: #{tpu_custom_call.1} parent=11 // pred_check
          %p492 = pneg %p352
        $region62: #{tpu_custom_call.1} parent=11 // pred_check_branch
          %494 = sbr.rel (%p492) target = $region64
        $region63: #{tpu_custom_call.1} parent=11 // pred_region
          _
        $region64: #{tpu_custom_call.1} parent=11 // pred_fallthru
          _
        // Predicated region
        $region65: #{tpu_custom_call.1} parent=11 // pred_check
          %p495 = pneg %p373
        $region66: #{tpu_custom_call.1} parent=11 // pred_check_branch
          %497 = sbr.rel (%p495) target = $region68
        $region67: #{tpu_custom_call.1} parent=11 // pred_region
          _
        $region68: #{tpu_custom_call.1} parent=11 // pred_fallthru
          _
        // Predicated region
        $region69: #{tpu_custom_call.1} parent=11 // pred_check
          %p498 = pneg %p394
        $region70: #{tpu_custom_call.1} parent=11 // pred_check_branch
          %500 = sbr.rel (%p498) target = $region72
        $region71: #{tpu_custom_call.1} parent=11 // pred_region
          _
        $region72: #{tpu_custom_call.1} parent=11 // pred_fallthru
          _
        // Predicated region
        $region73: #{tpu_custom_call.1} parent=11 // pred_check
          %p501 = pneg %p415
        $region74: #{tpu_custom_call.1} parent=11 // pred_check_branch
          %503 = sbr.rel (%p501) target = $region76
        $region75: #{tpu_custom_call.1} parent=11 // pred_region
          _
        $region76: #{tpu_custom_call.1} parent=11 // pred_fallthru
          _
      $region12: #{tpu_custom_call.1} parent=5 // pred_fallthru
        _
      %p504 = scmp.lt.s32.totalorder %s27, 2
      // Predicated region
      $region77: #{tpu_custom_call.1} parent=5 // pred_check
        %p505 = pneg %p504
      $region78: #{tpu_custom_call.1} parent=5 // pred_check_branch
        %507 = sbr.rel (%p505) target = $region80
      $region79: #{tpu_custom_call.1} parent=5 // pred_region
        // Predicated region
        $region81: #{tpu_custom_call.1} parent=79 // pred_check
          %p508 = pneg %p47
        $region82: #{tpu_custom_call.1} parent=79 // pred_check_branch
          %510 = sbr.rel (%p508) target = $region84
        $region83: #{tpu_custom_call.1} parent=79 // pred_region
          %p511 = scmp.lt.s32.totalorder %s27, 1
          %s512 = scalar_select %p511, %s27, 1
          %s513 = smul.addr %s512, 16
          %s514 = smul.addr %s513, 4
          %s515 = scalar_lea.vmem %s0, %s514
        $region84: #{tpu_custom_call.1} parent=79 // pred_fallthru
          _
        // Predicated region
        $region85: #{tpu_custom_call.1} parent=79 // pred_check
          %p516 = pneg %p73
        $region86: #{tpu_custom_call.1} parent=79 // pred_check_branch
          %518 = sbr.rel (%p516) target = $region88
        $region87: #{tpu_custom_call.1} parent=79 // pred_region
          %p519 = scmp.lt.s32.totalorder %s27, 1
          %s520 = scalar_select %p519, %s27, 1
          %s521 = smul.addr %s520, 16
          %s522 = smul.addr %s521, 8
          %s523 = scalar_lea.vmem %s1, %s522
        $region88: #{tpu_custom_call.1} parent=79 // pred_fallthru
          _
      $region80: #{tpu_custom_call.1} parent=5 // pred_fallthru
        _
      %p524 = scmp.le.s32.totalorder 1, %s27
      %p525 = scmp.lt.s32.totalorder %s27, 3
      %p526 = pnand %p524, %p525
      %p527 = pneg %p526
      // Predicated region
      $region89: #{tpu_custom_call.1} parent=5 // pred_check
        _
      $region90: #{tpu_custom_call.1} parent=5 // pred_check_branch
        %529 = sbr.rel (%p526) target = $region92
      $region91: #{tpu_custom_call.1} parent=5 // pred_region
        %s530 = ssub.s32 %s27, 1
        %p531 = scmp.lt.s32.totalorder %s32, 1
        %s532 = scalar_select %p531, %s32, 1
        %s533 = smul.addr %s532, 16
        %s534 = smul.addr %s533, 4
        %s535 = scalar_lea.vmem %s0, %s534
        %p536 = pneg %p53
        %p537 = pneg %p50
        %p538 = scmp.lt.s32.totalorder %s32, 1
        %s539 = scalar_select %p538, %s32, 1
        %s540 = smul.addr %s539, 16
        %s541 = smul.addr %s540, 8
        %s542 = scalar_lea.vmem %s1, %s541
        %p543 = pneg %p79
        %p544 = pneg %p76
        %p545 = pneg %p100
        %p546 = pneg %p97
        %p547 = pneg %p121
        %p548 = pneg %p118
        %p549 = pneg %p142
        %p550 = pneg %p139
        %p551 = pneg %p163
        %p552 = pneg %p160
        %p553 = pneg %p184
        %p554 = pneg %p181
        %p555 = pneg %p205
        %p556 = pneg %p202
        %p557 = pneg %p226
        %p558 = pneg %p223
        %p559 = pneg %p247
        %p560 = pneg %p244
        %p561 = pneg %p268
        %p562 = pneg %p265
        %p563 = pneg %p289
        %p564 = pneg %p286
        %p565 = pneg %p310
        %p566 = pneg %p307
        %p567 = pneg %p331
        %p568 = pneg %p328
        %p569 = pneg %p352
        %p570 = pneg %p349
        %p571 = pneg %p373
        %p572 = pneg %p370
        %p573 = pneg %p394
        %p574 = pneg %p391
        %p575 = pneg %p415
        %p576 = pneg %p412
        %p577 = pneg %p441
        %p578 = pneg %p438
        %s579 = sand.u32 %s428, 1
        %s580 = scalar_lea.sflag [#allocation3], %s579
        %s581 = sand.u32 %s428, 1
        %s582 = smul.addr %s581, 16
        %s583 = scalar_lea.vmem [#allocation2], %s582
        %p584 = scmp.lt.s32.totalorder %s32, 1
        %s585 = scalar_select %p584, %s32, 1
        %s586 = smul.addr %s585, 16
        %s587 = smul.addr %s586, 4
        %s588 = scalar_lea.vmem %s0, %s587
        %p589 = scmp.lt.s32.totalorder %s32, 1
        %s590 = scalar_select %p589, %s32, 1
        %s591 = smul.addr %s590, 16
        %s592 = smul.addr %s591, 8
        %s593 = scalar_lea.vmem %s1, %s592
        %v595 = vld [vmem:[%s588] sm:$0xf]
        %v596 = vld [vmem:[%s588 + $0x4] sm:$0xf]
        %v597 = vld [vmem:[%s588 + $0x8] sm:$0xf]
        %v598 = vld [vmem:[%s588 + $0xc] sm:$0xf]
        %v599 = vld [vmem:[%s588 + $0x10] sm:$0xf]
        %v600 = vld [vmem:[%s588 + $0x14] sm:$0xf]
        %v601 = vld [vmem:[%s588 + $0x18] sm:$0xf]
        %v602 = vld [vmem:[%s588 + $0x1c] sm:$0xf]
        %v603 = vld [vmem:[%s588 + $0x20] sm:$0xf]
        %v604 = vld [vmem:[%s588 + $0x24] sm:$0xf]
        %v605 = vld [vmem:[%s588 + $0x28] sm:$0xf]
        %v606 = vld [vmem:[%s588 + $0x2c] sm:$0xf]
        %v607 = vld [vmem:[%s588 + $0x30] sm:$0xf]
        %v608 = vld [vmem:[%s588 + $0x34] sm:$0xf]
        %v609 = vld [vmem:[%s588 + $0x38] sm:$0xf]
        %v610 = vld [vmem:[%s588 + $0x3c] sm:$0xf]
        %v611 = vld [vmem:[%s593] sm:$0xff]
        %v612 = vld [vmem:[%s593 + $0x8] sm:$0xff]
        %v613 = vld [vmem:[%s593 + $0x10] sm:$0xff]
        %v614 = vld [vmem:[%s593 + $0x18] sm:$0xff]
        %v615 = vld [vmem:[%s593 + $0x20] sm:$0xff]
        %v616 = vld [vmem:[%s593 + $0x28] sm:$0xff]
        %v617 = vld [vmem:[%s593 + $0x30] sm:$0xff]
        %v618 = vld [vmem:[%s593 + $0x38] sm:$0xff]
        %v619 = vld [vmem:[%s593 + $0x40] sm:$0xff]
        %v620 = vld [vmem:[%s593 + $0x48] sm:$0xff]
        %v621 = vld [vmem:[%s593 + $0x50] sm:$0xff]
        %v622 = vld [vmem:[%s593 + $0x58] sm:$0xff]
        %v623 = vld [vmem:[%s593 + $0x60] sm:$0xff]
        %v624 = vld [vmem:[%s593 + $0x68] sm:$0xff]
        %v625 = vld [vmem:[%s593 + $0x70] sm:$0xff]
        %v626 = vld [vmem:[%s593 + $0x78] sm:$0xff]
        %v627 = vld [vmem:[%s2] sm:$0xf]
        %v628 = vld [vmem:[%s3] sm:$0x1]
        %vm629 = vcmask 31744
        %v631 = vsel %vm629, %v611, 0
        %v634 = vsel %vm629, %v612, 0
        %v637 = vsel %vm629, %v613, 0
        %v640 = vsel %vm629, %v614, 0
        %v643 = vsel %vm629, %v615, 0
        %v646 = vsel %vm629, %v616, 0
        %v649 = vsel %vm629, %v617, 0
        %v652 = vsel %vm629, %v618, 0
        %v655 = vsel %vm629, %v619, 0
        %v658 = vsel %vm629, %v620, 0
        %v661 = vsel %vm629, %v621, 0
        %v664 = vsel %vm629, %v622, 0
        %v667 = vsel %vm629, %v623, 0
        %v670 = vsel %vm629, %v624, 0
        %v673 = vsel %vm629, %v625, 0
        %v676 = vsel %vm629, %v626, 0
        %vm678 = vcmask 1043456
        %v680 = vsel %vm678, %v627, 0
        %682 = vmatprep.subr.mxu0 0.0
        %683 = vmatpush1.msra.mxu0 %v680
        %684 = vmatprep.subr.mxu0 0.0
        %685 = vmatpush1.msra.mxu0 0.0
        %686 = vmatprep.subr.mxu0 0.0
        %687 = vmatpush1.msra.mxu0 0.0
        %688 = vmatprep.subr.mxu0 0.0
        %689 = vmatpush1.msra.mxu0 0.0
        %690 = vmatprep.subr.mxu0 0.0
        %691 = vmatpush1.msra.mxu0 0.0
        %692 = vmatprep.subr.mxu0 0.0
        %693 = vmatpush1.msra.mxu0 0.0
        %694 = vmatprep.subr.mxu0 0.0
        %695 = vmatpush1.msra.mxu0 0.0
        %696 = vmatprep.subr.mxu0 0.0
        %697 = vmatpush1.msra.mxu0 0.0
        %698 = vmatprep.subr.mxu0 0.0
        %699 = vmatpush1.msra.mxu0 0.0
        %700 = vmatprep.subr.mxu0 0.0
        %701 = vmatpush1.msra.mxu0 0.0
        %702 = vmatprep.subr.mxu0 0.0
        %703 = vmatpush1.msra.mxu0 0.0
        %704 = vmatprep.subr.mxu0 0.0
        %705 = vmatpush1.msra.mxu0 0.0
        %706 = vmatprep.subr.mxu0 0.0
        %707 = vmatpush1.msra.mxu0 0.0
        %708 = vmatprep.subr.mxu0 0.0
        %709 = vmatpush1.msra.mxu0 0.0
        %710 = vmatprep.subr.mxu0 0.0
        %711 = vmatpush1.msra.mxu0 0.0
        %712 = vmatprep.subr.mxu0 0.0
        %713 = vmatpush1.msra.mxu0 0.0
        %714 = vmatprep.subr.mxu0 0.0
        %715 = vmatpush1.msra.mxu0 0.0
        %716 = vmatprep.subr.mxu0 0.0
        %717 = vmatpush1.msra.mxu0 0.0
        %718 = vmatprep.subr.mxu0 0.0
        %719 = vmatpush1.msra.mxu0 0.0
        %720 = vmatprep.subr.mxu0 0.0
        %721 = vmatpush1.msra.mxu0 0.0
        %722 = vmatprep.subr.mxu0 0.0
        %723 = vmatpush1.msra.mxu0 0.0
        %724 = vmatprep.subr.mxu0 0.0
        %725 = vmatpush1.msra.mxu0 0.0
        %726 = vmatprep.subr.mxu0 0.0
        %727 = vmatpush1.msra.mxu0 0.0
        %728 = vmatprep.subr.mxu0 0.0
        %729 = vmatpush1.msra.mxu0 0.0
        %730 = vmatprep.subr.mxu0 0.0
        %731 = vmatpush1.msra.mxu0 0.0
        %732 = vmatprep.subr.mxu0 0.0
        %733 = vmatpush1.msra.mxu0 0.0
        %734 = vmatprep.subr.mxu0 0.0
        %735 = vmatpush1.msra.mxu0 0.0
        %736 = vmatprep.subr.mxu0 0.0
        %737 = vmatpush1.msra.mxu0 0.0
        %738 = vmatprep.subr.mxu0 0.0
        %739 = vmatpush1.msra.mxu0 0.0
        %740 = vmatprep.subr.mxu0 0.0
        %741 = vmatpush1.msra.mxu0 0.0
        %742 = vmatprep.subr.mxu0 0.0
        %743 = vmatpush1.msra.mxu0 0.0
        %744 = vmatprep.subr.mxu0 0.0
        %745 = vmatpush1.msra.mxu0 0.0
        %746 = vmatprep.mubr.f32.mxu0 0.0
        %747 = vmatmul.mubr.f32.gmra.mrb[0].mxu0 %v631
        %v748 = vpop.f32.mrb[0].mxu0
        %v749 = vadd.f32 0.0, %v748
        %v750 = vpop.f32.mrb[0].mxu0
        %751 = vmatprep.mubr.f32.mxu0 0.0
        %752 = vmatmul.mubr.f32.gmra.mrb[0].mxu0 %v634
        %v753 = vpop.f32.mrb[0].mxu0
        %v754 = vadd.f32 0.0, %v753
        %v755 = vpop.f32.mrb[0].mxu0
        %756 = vmatprep.mubr.f32.mxu0 0.0
        %757 = vmatmul.mubr.f32.gmra.mrb[0].mxu0 %v637
        %v758 = vpop.f32.mrb[0].mxu0
        %v759 = vadd.f32 0.0, %v758
        %v760 = vpop.f32.mrb[0].mxu0
        %761 = vmatprep.mubr.f32.mxu0 0.0
        %762 = vmatmul.mubr.f32.gmra.mrb[0].mxu0 %v640
        %v763 = vpop.f32.mrb[0].mxu0
        %v764 = vadd.f32 0.0, %v763
        %v765 = vpop.f32.mrb[0].mxu0
        %766 = vmatprep.mubr.f32.mxu0 0.0
        %767 = vmatmul.mubr.f32.gmra.mrb[0].mxu0 %v643
        %v768 = vpop.f32.mrb[0].mxu0
        %v769 = vadd.f32 0.0, %v768
        %v770 = vpop.f32.mrb[0].mxu0
        %771 = vmatprep.mubr.f32.mxu0 0.0
        %772 = vmatmul.mubr.f32.gmra.mrb[0].mxu0 %v646
        %v773 = vpop.f32.mrb[0].mxu0
        %v774 = vadd.f32 0.0, %v773
        %v775 = vpop.f32.mrb[0].mxu0
        %776 = vmatprep.mubr.f32.mxu0 0.0
        %777 = vmatmul.mubr.f32.gmra.mrb[0].mxu0 %v649
        %v778 = vpop.f32.mrb[0].mxu0
        %v779 = vadd.f32 0.0, %v778
        %v780 = vpop.f32.mrb[0].mxu0
        %781 = vmatprep.mubr.f32.mxu0 0.0
        %782 = vmatmul.mubr.f32.gmra.mrb[0].mxu0 %v652
        %v783 = vpop.f32.mrb[0].mxu0
        %v784 = vadd.f32 0.0, %v783
        %v785 = vpop.f32.mrb[0].mxu0
        %786 = vmatprep.mubr.f32.mxu0 0.0
        %787 = vmatmul.mubr.f32.gmra.mrb[0].mxu0 %v655
        %v788 = vpop.f32.mrb[0].mxu0
        %v789 = vadd.f32 0.0, %v788
        %v790 = vpop.f32.mrb[0].mxu0
        %791 = vmatprep.mubr.f32.mxu0 0.0
        %792 = vmatmul.mubr.f32.gmra.mrb[0].mxu0 %v658
        %v793 = vpop.f32.mrb[0].mxu0
        %v794 = vadd.f32 0.0, %v793
        %v795 = vpop.f32.mrb[0].mxu0
        %796 = vmatprep.mubr.f32.mxu0 0.0
        %797 = vmatmul.mubr.f32.gmra.mrb[0].mxu0 %v661
        %v798 = vpop.f32.mrb[0].mxu0
        %v799 = vadd.f32 0.0, %v798
        %v800 = vpop.f32.mrb[0].mxu0
        %801 = vmatprep.mubr.f32.mxu0 0.0
        %802 = vmatmul.mubr.f32.gmra.mrb[0].mxu0 %v664
        %v803 = vpop.f32.mrb[0].mxu0
        %v804 = vadd.f32 0.0, %v803
        %v805 = vpop.f32.mrb[0].mxu0
        %806 = vmatprep.mubr.f32.mxu0 0.0
        %807 = vmatmul.mubr.f32.gmra.mrb[0].mxu0 %v667
        %v808 = vpop.f32.mrb[0].mxu0
        %v809 = vadd.f32 0.0, %v808
        %v810 = vpop.f32.mrb[0].mxu0
        %811 = vmatprep.mubr.f32.mxu0 0.0
        %812 = vmatmul.mubr.f32.gmra.mrb[0].mxu0 %v670
        %v813 = vpop.f32.mrb[0].mxu0
        %v814 = vadd.f32 0.0, %v813
        %v815 = vpop.f32.mrb[0].mxu0
        %816 = vmatprep.mubr.f32.mxu0 0.0
        %817 = vmatmul.mubr.f32.gmra.mrb[0].mxu0 %v673
        %v818 = vpop.f32.mrb[0].mxu0
        %v819 = vadd.f32 0.0, %v818
        %v820 = vpop.f32.mrb[0].mxu0
        %821 = vmatprep.mubr.f32.mxu0 0.0
        %822 = vmatmul.mubr.f32.gmra.mrb[0].mxu0 %v676
        %v823 = vpop.f32.mrb[0].mxu0
        %v824 = vadd.f32 0.0, %v823
        %v825 = vpop.f32.mrb[0].mxu0
        %826 = vdwg.mxu0
        %v827 = vpack.c.bf16 %v754, %v749
        %v828 = vpack.c.bf16 %v764, %v759
        %v829 = vpack.c.bf16 %v774, %v769
        %v830 = vpack.c.bf16 %v784, %v779
        %v831 = vpack.c.bf16 %v794, %v789
        %v832 = vpack.c.bf16 %v804, %v799
        %v833 = vpack.c.bf16 %v814, %v809
        %v834 = vpack.c.bf16 %v824, %v819
        %v836 = vlaneseq
        %v837 = vshrl.u32 %v836, 7
        %v838 = vsub.s32 0, %v837
        %v839 = vrot.slane %v628, %v838
        %v857 = vunpack.c.l.b16 %v595
        %v858 = vunpack.c.l.b16 %v596
        %v859 = vunpack.c.l.b16 %v597
        %v860 = vunpack.c.l.b16 %v598
        %v861 = vunpack.c.l.b16 %v599
        %v862 = vunpack.c.l.b16 %v600
        %v863 = vunpack.c.l.b16 %v601
        %v864 = vunpack.c.l.b16 %v602
        %v865 = vunpack.c.l.b16 %v603
        %v866 = vunpack.c.l.b16 %v604
        %v867 = vunpack.c.l.b16 %v605
        %v868 = vunpack.c.l.b16 %v606
        %v869 = vunpack.c.l.b16 %v607
        %v870 = vunpack.c.l.b16 %v608
        %v871 = vunpack.c.l.b16 %v609
        %v872 = vunpack.c.l.b16 %v610
        %v873 = vpack.c.b16 %v858, %v857
        %v874 = vpack.c.b16 %v860, %v859
        %v875 = vpack.c.b16 %v862, %v861
        %v876 = vpack.c.b16 %v864, %v863
        %v877 = vpack.c.b16 %v866, %v865
        %v878 = vpack.c.b16 %v868, %v867
        %v879 = vpack.c.b16 %v870, %v869
        %v880 = vpack.c.b16 %v872, %v871
        %889 = vmatprep.subr.bf16.mxu0 0
        %890 = vmatpush1.bf16.msra.mxu0 %v827
        %891 = vmatprep.subr.bf16.mxu0 0
        %892 = vmatpush1.bf16.msra.mxu0 %v828
        %893 = vmatprep.subr.bf16.mxu0 0
        %894 = vmatpush1.bf16.msra.mxu0 %v829
        %895 = vmatprep.subr.bf16.mxu0 0
        %896 = vmatpush1.bf16.msra.mxu0 %v830
        %897 = vmatprep.subr.bf16.mxu0 0
        %898 = vmatpush1.bf16.msra.mxu0 %v831
        %899 = vmatprep.subr.bf16.mxu0 0
        %900 = vmatpush1.bf16.msra.mxu0 %v832
        %901 = vmatprep.subr.bf16.mxu0 0
        %902 = vmatpush1.bf16.msra.mxu0 %v833
        %903 = vmatprep.subr.bf16.mxu0 0
        %904 = vmatpush1.bf16.msra.mxu0 %v834
        %905 = vmatprep.subr.bf16.mxu0 0
        %906 = vmatpush1.bf16.msra.mxu0 0
        %907 = vmatprep.subr.bf16.mxu0 0
        %908 = vmatpush1.bf16.msra.mxu0 0
        %909 = vmatprep.subr.bf16.mxu0 0
        %910 = vmatpush1.bf16.msra.mxu0 0
        %911 = vmatprep.subr.bf16.mxu0 0
        %912 = vmatpush1.bf16.msra.mxu0 0
        %913 = vmatprep.subr.bf16.mxu0 0
        %914 = vmatpush1.bf16.msra.mxu0 0
        %915 = vmatprep.subr.bf16.mxu0 0
        %916 = vmatpush1.bf16.msra.mxu0 0
        %917 = vmatprep.subr.bf16.mxu0 0
        %918 = vmatpush1.bf16.msra.mxu0 0
        %919 = vmatprep.subr.bf16.mxu0 0
        %920 = vmatpush1.bf16.msra.mxu0 0
        %921 = vmatprep.mubr.bf16.mxu0 0
        %922 = vmatmul.mubr.bf16.gmra.mrb[0].mxu0 %v873
        %v923 = vpop.f32.mrb[0].mxu0
        %v924 = vadd.f32 %v839, %v923
        %v925 = vpop.f32.mrb[0].mxu0
        %v926 = vpop.f32.mrb[0].mxu0
        %v927 = vadd.f32 %v839, %v926
        %v928 = vpop.f32.mrb[0].mxu0
        %929 = vmatprep.mubr.bf16.mxu0 0
        %930 = vmatmul.mubr.bf16.gmra.mrb[0].mxu0 %v874
        %v931 = vpop.f32.mrb[0].mxu0
        %v932 = vadd.f32 %v839, %v931
        %v933 = vpop.f32.mrb[0].mxu0
        %v934 = vpop.f32.mrb[0].mxu0
        %v935 = vadd.f32 %v839, %v934
        %v936 = vpop.f32.mrb[0].mxu0
        %937 = vmatprep.mubr.bf16.mxu0 0
        %938 = vmatmul.mubr.bf16.gmra.mrb[0].mxu0 %v875
        %v939 = vpop.f32.mrb[0].mxu0
        %v940 = vadd.f32 %v839, %v939
        %v941 = vpop.f32.mrb[0].mxu0
        %v942 = vpop.f32.mrb[0].mxu0
        %v943 = vadd.f32 %v839, %v942
        %v944 = vpop.f32.mrb[0].mxu0
        %945 = vmatprep.mubr.bf16.mxu0 0
        %946 = vmatmul.mubr.bf16.gmra.mrb[0].mxu0 %v876
        %v947 = vpop.f32.mrb[0].mxu0
        %v948 = vadd.f32 %v839, %v947
        %v949 = vpop.f32.mrb[0].mxu0
        %v950 = vpop.f32.mrb[0].mxu0
        %v951 = vadd.f32 %v839, %v950
        %v952 = vpop.f32.mrb[0].mxu0
        %953 = vmatprep.mubr.bf16.mxu0 0
        %954 = vmatmul.mubr.bf16.gmra.mrb[0].mxu0 %v877
        %v955 = vpop.f32.mrb[0].mxu0
        %v956 = vadd.f32 %v839, %v955
        %v957 = vpop.f32.mrb[0].mxu0
        %v958 = vpop.f32.mrb[0].mxu0
        %v959 = vadd.f32 %v839, %v958
        %v960 = vpop.f32.mrb[0].mxu0
        %961 = vmatprep.mubr.bf16.mxu0 0
        %962 = vmatmul.mubr.bf16.gmra.mrb[0].mxu0 %v878
        %v963 = vpop.f32.mrb[0].mxu0
        %v964 = vadd.f32 %v839, %v963
        %v965 = vpop.f32.mrb[0].mxu0
        %v966 = vpop.f32.mrb[0].mxu0
        %v967 = vadd.f32 %v839, %v966
        %v968 = vpop.f32.mrb[0].mxu0
        %969 = vmatprep.mubr.bf16.mxu0 0
        %970 = vmatmul.mubr.bf16.gmra.mrb[0].mxu0 %v879
        %v971 = vpop.f32.mrb[0].mxu0
        %v972 = vadd.f32 %v839, %v971
        %v973 = vpop.f32.mrb[0].mxu0
        %v974 = vpop.f32.mrb[0].mxu0
        %v975 = vadd.f32 %v839, %v974
        %v976 = vpop.f32.mrb[0].mxu0
        %977 = vmatprep.mubr.bf16.mxu0 0
        %978 = vmatmul.mubr.bf16.gmra.mrb[0].mxu0 %v880
        %v979 = vpop.f32.mrb[0].mxu0
        %v980 = vadd.f32 %v839, %v979
        %v981 = vpop.f32.mrb[0].mxu0
        %v982 = vpop.f32.mrb[0].mxu0
        %v983 = vadd.f32 %v839, %v982
        %v984 = vpop.f32.mrb[0].mxu0
        %985 = vdwg.mxu0
        %v986 = vmax.f32 %v924, 0.0
        %v987 = vmax.f32 %v927, 0.0
        %v988 = vmax.f32 %v932, 0.0
        %v989 = vmax.f32 %v935, 0.0
        %v990 = vmax.f32 %v940, 0.0
        %v991 = vmax.f32 %v943, 0.0
        %v992 = vmax.f32 %v948, 0.0
        %v993 = vmax.f32 %v951, 0.0
        %v994 = vmax.f32 %v956, 0.0
        %v995 = vmax.f32 %v959, 0.0
        %v996 = vmax.f32 %v964, 0.0
        %v997 = vmax.f32 %v967, 0.0
        %v998 = vmax.f32 %v972, 0.0
        %v999 = vmax.f32 %v975, 0.0
        %v1000 = vmax.f32 %v980, 0.0
        %v1001 = vmax.f32 %v983, 0.0
        %v1002 = vld [vmem:[%s4] sm:$0xff]
        %v1003 = vld [vmem:[%s5] sm:$0x1]
        %vm1004 = vcmask 64512
        %v1006 = vsel %vm1004, %v986, 0
        %v1009 = vsel %vm1004, %v987, 0
        %v1012 = vsel %vm1004, %v988, 0
        %v1015 = vsel %vm1004, %v989, 0
        %v1018 = vsel %vm1004, %v990, 0
        %v1021 = vsel %vm1004, %v991, 0
        %v1024 = vsel %vm1004, %v992, 0
        %v1027 = vsel %vm1004, %v993, 0
        %v1030 = vsel %vm1004, %v994, 0
        %v1033 = vsel %vm1004, %v995, 0
        %v1036 = vsel %vm1004, %v996, 0
        %v1039 = vsel %vm1004, %v997, 0
        %v1042 = vsel %vm1004, %v998, 0
        %v1045 = vsel %vm1004, %v999, 0
        %v1048 = vsel %vm1004, %v1000, 0
        %v1051 = vsel %vm1004, %v1001, 0
        %1053 = vmatprep.subr.mxu0 0.0
        %1054 = vmatpush1.msra.mxu0 %v1002
        %1055 = vmatprep.subr.mxu0 0.0
        %1056 = vmatpush1.msra.mxu0 0.0
        %1057 = vmatprep.subr.mxu0 0.0
        %1058 = vmatpush1.msra.mxu0 0.0
        %1059 = vmatprep.subr.mxu0 0.0
        %1060 = vmatpush1.msra.mxu0 0.0
        %1061 = vmatprep.subr.mxu0 0.0
        %1062 = vmatpush1.msra.mxu0 0.0
        %1063 = vmatprep.subr.mxu0 0.0
        %1064 = vmatpush1.msra.mxu0 0.0
        %1065 = vmatprep.subr.mxu0 0.0
        %1066 = vmatpush1.msra.mxu0 0.0
        %1067 = vmatprep.subr.mxu0 0.0
        %1068 = vmatpush1.msra.mxu0 0.0
        %1069 = vmatprep.subr.mxu0 0.0
        %1070 = vmatpush1.msra.mxu0 0.0
        %1071 = vmatprep.subr.mxu0 0.0
        %1072 = vmatpush1.msra.mxu0 0.0
        %1073 = vmatprep.subr.mxu0 0.0
        %1074 = vmatpush1.msra.mxu0 0.0
        %1075 = vmatprep.subr.mxu0 0.0
        %1076 = vmatpush1.msra.mxu0 0.0
        %1077 = vmatprep.subr.mxu0 0.0
        %1078 = vmatpush1.msra.mxu0 0.0
        %1079 = vmatprep.subr.mxu0 0.0
        %1080 = vmatpush1.msra.mxu0 0.0
        %1081 = vmatprep.subr.mxu0 0.0
        %1082 = vmatpush1.msra.mxu0 0.0
        %1083 = vmatprep.subr.mxu0 0.0
        %1084 = vmatpush1.msra.mxu0 0.0
        %1085 = vmatprep.subr.mxu0 0.0
        %1086 = vmatpush1.msra.mxu0 0.0
        %1087 = vmatprep.subr.mxu0 0.0
        %1088 = vmatpush1.msra.mxu0 0.0
        %1089 = vmatprep.subr.mxu0 0.0
        %1090 = vmatpush1.msra.mxu0 0.0
        %1091 = vmatprep.subr.mxu0 0.0
        %1092 = vmatpush1.msra.mxu0 0.0
        %1093 = vmatprep.subr.mxu0 0.0
        %1094 = vmatpush1.msra.mxu0 0.0
        %1095 = vmatprep.subr.mxu0 0.0
        %1096 = vmatpush1.msra.mxu0 0.0
        %1097 = vmatprep.subr.mxu0 0.0
        %1098 = vmatpush1.msra.mxu0 0.0
        %1099 = vmatprep.subr.mxu0 0.0
        %1100 = vmatpush1.msra.mxu0 0.0
        %1101 = vmatprep.subr.mxu0 0.0
        %1102 = vmatpush1.msra.mxu0 0.0
        %1103 = vmatprep.subr.mxu0 0.0
        %1104 = vmatpush1.msra.mxu0 0.0
        %1105 = vmatprep.subr.mxu0 0.0
        %1106 = vmatpush1.msra.mxu0 0.0
        %1107 = vmatprep.subr.mxu0 0.0
        %1108 = vmatpush1.msra.mxu0 0.0
        %1109 = vmatprep.subr.mxu0 0.0
        %1110 = vmatpush1.msra.mxu0 0.0
        %1111 = vmatprep.subr.mxu0 0.0
        %1112 = vmatpush1.msra.mxu0 0.0
        %1113 = vmatprep.subr.mxu0 0.0
        %1114 = vmatpush1.msra.mxu0 0.0
        %1115 = vmatprep.subr.mxu0 0.0
        %1116 = vmatpush1.msra.mxu0 0.0
        %1117 = vmatprep.mubr.f32.mxu0 0.0
        %1118 = vmatmul.mubr.f32.gmra.mrb[0].mxu0 %v1006
        %v1119 = vpop.f32.mrb[0].mxu0
        %v1120 = vadd.f32 0.0, %v1119
        %v1121 = vpop.f32.mrb[0].mxu0
        %1122 = vmatprep.mubr.f32.mxu0 0.0
        %1123 = vmatmul.mubr.f32.gmra.mrb[0].mxu0 %v1009
        %v1124 = vpop.f32.mrb[0].mxu0
        %v1125 = vadd.f32 0.0, %v1124
        %v1126 = vpop.f32.mrb[0].mxu0
        %1127 = vmatprep.mubr.f32.mxu0 0.0
        %1128 = vmatmul.mubr.f32.gmra.mrb[0].mxu0 %v1012
        %v1129 = vpop.f32.mrb[0].mxu0
        %v1130 = vadd.f32 0.0, %v1129
        %v1131 = vpop.f32.mrb[0].mxu0
        %1132 = vmatprep.mubr.f32.mxu0 0.0
        %1133 = vmatmul.mubr.f32.gmra.mrb[0].mxu0 %v1015
        %v1134 = vpop.f32.mrb[0].mxu0
        %v1135 = vadd.f32 0.0, %v1134
        %v1136 = vpop.f32.mrb[0].mxu0
        %1137 = vmatprep.mubr.f32.mxu0 0.0
        %1138 = vmatmul.mubr.f32.gmra.mrb[0].mxu0 %v1018
        %v1139 = vpop.f32.mrb[0].mxu0
        %v1140 = vadd.f32 0.0, %v1139
        %v1141 = vpop.f32.mrb[0].mxu0
        %1142 = vmatprep.mubr.f32.mxu0 0.0
        %1143 = vmatmul.mubr.f32.gmra.mrb[0].mxu0 %v1021
        %v1144 = vpop.f32.mrb[0].mxu0
        %v1145 = vadd.f32 0.0, %v1144
        %v1146 = vpop.f32.mrb[0].mxu0
        %1147 = vmatprep.mubr.f32.mxu0 0.0
        %1148 = vmatmul.mubr.f32.gmra.mrb[0].mxu0 %v1024
        %v1149 = vpop.f32.mrb[0].mxu0
        %v1150 = vadd.f32 0.0, %v1149
        %v1151 = vpop.f32.mrb[0].mxu0
        %1152 = vmatprep.mubr.f32.mxu0 0.0
        %1153 = vmatmul.mubr.f32.gmra.mrb[0].mxu0 %v1027
        %v1154 = vpop.f32.mrb[0].mxu0
        %v1155 = vadd.f32 0.0, %v1154
        %v1156 = vpop.f32.mrb[0].mxu0
        %1157 = vmatprep.mubr.f32.mxu0 0.0
        %1158 = vmatmul.mubr.f32.gmra.mrb[0].mxu0 %v1030
        %v1159 = vpop.f32.mrb[0].mxu0
        %v1160 = vadd.f32 0.0, %v1159
        %v1161 = vpop.f32.mrb[0].mxu0
        %1162 = vmatprep.mubr.f32.mxu0 0.0
        %1163 = vmatmul.mubr.f32.gmra.mrb[0].mxu0 %v1033
        %v1164 = vpop.f32.mrb[0].mxu0
        %v1165 = vadd.f32 0.0, %v1164
        %v1166 = vpop.f32.mrb[0].mxu0
        %1167 = vmatprep.mubr.f32.mxu0 0.0
        %1168 = vmatmul.mubr.f32.gmra.mrb[0].mxu0 %v1036
        %v1169 = vpop.f32.mrb[0].mxu0
        %v1170 = vadd.f32 0.0, %v1169
        %v1171 = vpop.f32.mrb[0].mxu0
        %1172 = vmatprep.mubr.f32.mxu0 0.0
        %1173 = vmatmul.mubr.f32.gmra.mrb[0].mxu0 %v1039
        %v1174 = vpop.f32.mrb[0].mxu0
        %v1175 = vadd.f32 0.0, %v1174
        %v1176 = vpop.f32.mrb[0].mxu0
        %1177 = vmatprep.mubr.f32.mxu0 0.0
        %1178 = vmatmul.mubr.f32.gmra.mrb[0].mxu0 %v1042
        %v1179 = vpop.f32.mrb[0].mxu0
        %v1180 = vadd.f32 0.0, %v1179
        %v1181 = vpop.f32.mrb[0].mxu0
        %1182 = vmatprep.mubr.f32.mxu0 0.0
        %1183 = vmatmul.mubr.f32.gmra.mrb[0].mxu0 %v1045
        %v1184 = vpop.f32.mrb[0].mxu0
        %v1185 = vadd.f32 0.0, %v1184
        %v1186 = vpop.f32.mrb[0].mxu0
        %1187 = vmatprep.mubr.f32.mxu0 0.0
        %1188 = vmatmul.mubr.f32.gmra.mrb[0].mxu0 %v1048
        %v1189 = vpop.f32.mrb[0].mxu0
        %v1190 = vadd.f32 0.0, %v1189
        %v1191 = vpop.f32.mrb[0].mxu0
        %1192 = vmatprep.mubr.f32.mxu0 0.0
        %1193 = vmatmul.mubr.f32.gmra.mrb[0].mxu0 %v1051
        %v1194 = vpop.f32.mrb[0].mxu0
        %v1195 = vadd.f32 0.0, %v1194
        %v1196 = vpop.f32.mrb[0].mxu0
        %1197 = vdwg.mxu0
        %v1198 = vpack.c.bf16 %v1125, %v1120
        %v1199 = vpack.c.bf16 %v1135, %v1130
        %v1200 = vpack.c.bf16 %v1145, %v1140
        %v1201 = vpack.c.bf16 %v1155, %v1150
        %v1202 = vpack.c.bf16 %v1165, %v1160
        %v1203 = vpack.c.bf16 %v1175, %v1170
        %v1204 = vpack.c.bf16 %v1185, %v1180
        %v1205 = vpack.c.bf16 %v1195, %v1190
        %v1207 = vlaneseq
        %v1208 = vshrl.u32 %v1207, 7
        %v1209 = vsub.s32 0, %v1208
        %v1210 = vrot.slane %v1003, %v1209
        %1212 = vmatprep.subr.bf16.mxu0 0
        %1213 = vmatpush1.bf16.msra.mxu0 %v1198
        %1214 = vmatprep.subr.bf16.mxu0 0
        %1215 = vmatpush1.bf16.msra.mxu0 %v1199
        %1216 = vmatprep.subr.bf16.mxu0 0
        %1217 = vmatpush1.bf16.msra.mxu0 %v1200
        %1218 = vmatprep.subr.bf16.mxu0 0
        %1219 = vmatpush1.bf16.msra.mxu0 %v1201
        %1220 = vmatprep.subr.bf16.mxu0 0
        %1221 = vmatpush1.bf16.msra.mxu0 %v1202
        %1222 = vmatprep.subr.bf16.mxu0 0
        %1223 = vmatpush1.bf16.msra.mxu0 %v1203
        %1224 = vmatprep.subr.bf16.mxu0 0
        %1225 = vmatpush1.bf16.msra.mxu0 %v1204
        %1226 = vmatprep.subr.bf16.mxu0 0
        %1227 = vmatpush1.bf16.msra.mxu0 %v1205
        %1228 = vmatprep.subr.bf16.mxu0 0
        %1229 = vmatpush1.bf16.msra.mxu0 0
        %1230 = vmatprep.subr.bf16.mxu0 0
        %1231 = vmatpush1.bf16.msra.mxu0 0
        %1232 = vmatprep.subr.bf16.mxu0 0
        %1233 = vmatpush1.bf16.msra.mxu0 0
        %1234 = vmatprep.subr.bf16.mxu0 0
        %1235 = vmatpush1.bf16.msra.mxu0 0
        %1236 = vmatprep.subr.bf16.mxu0 0
        %1237 = vmatpush1.bf16.msra.mxu0 0
        %1238 = vmatprep.subr.bf16.mxu0 0
        %1239 = vmatpush1.bf16.msra.mxu0 0
        %1240 = vmatprep.subr.bf16.mxu0 0
        %1241 = vmatpush1.bf16.msra.mxu0 0
        %1242 = vmatprep.subr.bf16.mxu0 0
        %1243 = vmatpush1.bf16.msra.mxu0 0
        %1244 = vmatprep.mubr.bf16.mxu0 0
        %1245 = vmatmul.mubr.bf16.gmra.mrb[0].mxu0 %v873
        %v1246 = vpop.f32.mrb[0].mxu0
        %v1247 = vadd.f32 %v1210, %v1246
        %v1248 = vpop.f32.mrb[0].mxu0
        %v1249 = vpop.f32.mrb[0].mxu0
        %v1250 = vadd.f32 %v1210, %v1249
        %v1251 = vpop.f32.mrb[0].mxu0
        %1252 = vmatprep.mubr.bf16.mxu0 0
        %1253 = vmatmul.mubr.bf16.gmra.mrb[0].mxu0 %v874
        %v1254 = vpop.f32.mrb[0].mxu0
        %v1255 = vadd.f32 %v1210, %v1254
        %v1256 = vpop.f32.mrb[0].mxu0
        %v1257 = vpop.f32.mrb[0].mxu0
        %v1258 = vadd.f32 %v1210, %v1257
        %v1259 = vpop.f32.mrb[0].mxu0
        %1260 = vmatprep.mubr.bf16.mxu0 0
        %1261 = vmatmul.mubr.bf16.gmra.mrb[0].mxu0 %v875
        %v1262 = vpop.f32.mrb[0].mxu0
        %v1263 = vadd.f32 %v1210, %v1262
        %v1264 = vpop.f32.mrb[0].mxu0
        %v1265 = vpop.f32.mrb[0].mxu0
        %v1266 = vadd.f32 %v1210, %v1265
        %v1267 = vpop.f32.mrb[0].mxu0
        %1268 = vmatprep.mubr.bf16.mxu0 0
        %1269 = vmatmul.mubr.bf16.gmra.mrb[0].mxu0 %v876
        %v1270 = vpop.f32.mrb[0].mxu0
        %v1271 = vadd.f32 %v1210, %v1270
        %v1272 = vpop.f32.mrb[0].mxu0
        %v1273 = vpop.f32.mrb[0].mxu0
        %v1274 = vadd.f32 %v1210, %v1273
        %v1275 = vpop.f32.mrb[0].mxu0
        %1276 = vmatprep.mubr.bf16.mxu0 0
        %1277 = vmatmul.mubr.bf16.gmra.mrb[0].mxu0 %v877
        %v1278 = vpop.f32.mrb[0].mxu0
        %v1279 = vadd.f32 %v1210, %v1278
        %v1280 = vpop.f32.mrb[0].mxu0
        %v1281 = vpop.f32.mrb[0].mxu0
        %v1282 = vadd.f32 %v1210, %v1281
        %v1283 = vpop.f32.mrb[0].mxu0
        %1284 = vmatprep.mubr.bf16.mxu0 0
        %1285 = vmatmul.mubr.bf16.gmra.mrb[0].mxu0 %v878
        %v1286 = vpop.f32.mrb[0].mxu0
        %v1287 = vadd.f32 %v1210, %v1286
        %v1288 = vpop.f32.mrb[0].mxu0
        %v1289 = vpop.f32.mrb[0].mxu0
        %v1290 = vadd.f32 %v1210, %v1289
        %v1291 = vpop.f32.mrb[0].mxu0
        %1292 = vmatprep.mubr.bf16.mxu0 0
        %1293 = vmatmul.mubr.bf16.gmra.mrb[0].mxu0 %v879
        %v1294 = vpop.f32.mrb[0].mxu0
        %v1295 = vadd.f32 %v1210, %v1294
        %v1296 = vpop.f32.mrb[0].mxu0
        %v1297 = vpop.f32.mrb[0].mxu0
        %v1298 = vadd.f32 %v1210, %v1297
        %v1299 = vpop.f32.mrb[0].mxu0
        %1300 = vmatprep.mubr.bf16.mxu0 0
        %1301 = vmatmul.mubr.bf16.gmra.mrb[0].mxu0 %v880
        %v1302 = vpop.f32.mrb[0].mxu0
        %v1303 = vadd.f32 %v1210, %v1302
        %v1304 = vpop.f32.mrb[0].mxu0
        %v1305 = vpop.f32.mrb[0].mxu0
        %v1306 = vadd.f32 %v1210, %v1305
        %v1307 = vpop.f32.mrb[0].mxu0
        %1308 = vdwg.mxu0
        %v1309 = vmax.f32 %v1247, 0.0
        %v1310 = vmax.f32 %v1250, 0.0
        %v1311 = vmax.f32 %v1255, 0.0
        %v1312 = vmax.f32 %v1258, 0.0
        %v1313 = vmax.f32 %v1263, 0.0
        %v1314 = vmax.f32 %v1266, 0.0
        %v1315 = vmax.f32 %v1271, 0.0
        %v1316 = vmax.f32 %v1274, 0.0
        %v1317 = vmax.f32 %v1279, 0.0
        %v1318 = vmax.f32 %v1282, 0.0
        %v1319 = vmax.f32 %v1287, 0.0
        %v1320 = vmax.f32 %v1290, 0.0
        %v1321 = vmax.f32 %v1295, 0.0
        %v1322 = vmax.f32 %v1298, 0.0
        %v1323 = vmax.f32 %v1303, 0.0
        %v1324 = vmax.f32 %v1306, 0.0
        %v1325 = vld [vmem:[%s6] sm:$0xff]
        %v1326 = vld [vmem:[%s7] sm:$0x1]
        %v1328 = vsel %vm1004, %v1309, 0
        %v1331 = vsel %vm1004, %v1310, 0
        %v1334 = vsel %vm1004, %v1311, 0
        %v1337 = vsel %vm1004, %v1312, 0
        %v1340 = vsel %vm1004, %v1313, 0
        %v1343 = vsel %vm1004, %v1314, 0
        %v1346 = vsel %vm1004, %v1315, 0
        %v1349 = vsel %vm1004, %v1316, 0
        %v1352 = vsel %vm1004, %v1317, 0
        %v1355 = vsel %vm1004, %v1318, 0
        %v1358 = vsel %vm1004, %v1319, 0
        %v1361 = vsel %vm1004, %v1320, 0
        %v1364 = vsel %vm1004, %v1321, 0
        %v1367 = vsel %vm1004, %v1322, 0
        %v1370 = vsel %vm1004, %v1323, 0
        %v1373 = vsel %vm1004, %v1324, 0
        %1375 = vmatprep.subr.mxu0 0.0
        %1376 = vmatpush1.msra.mxu0 %v1325
        %1377 = vmatprep.subr.mxu0 0.0
        %1378 = vmatpush1.msra.mxu0 0.0
        %1379 = vmatprep.subr.mxu0 0.0
        %1380 = vmatpush1.msra.mxu0 0.0
        %1381 = vmatprep.subr.mxu0 0.0
        %1382 = vmatpush1.msra.mxu0 0.0
        %1383 = vmatprep.subr.mxu0 0.0
        %1384 = vmatpush1.msra.mxu0 0.0
        %1385 = vmatprep.subr.mxu0 0.0
        %1386 = vmatpush1.msra.mxu0 0.0
        %1387 = vmatprep.subr.mxu0 0.0
        %1388 = vmatpush1.msra.mxu0 0.0
        %1389 = vmatprep.subr.mxu0 0.0
        %1390 = vmatpush1.msra.mxu0 0.0
        %1391 = vmatprep.subr.mxu0 0.0
        %1392 = vmatpush1.msra.mxu0 0.0
        %1393 = vmatprep.subr.mxu0 0.0
        %1394 = vmatpush1.msra.mxu0 0.0
        %1395 = vmatprep.subr.mxu0 0.0
        %1396 = vmatpush1.msra.mxu0 0.0
        %1397 = vmatprep.subr.mxu0 0.0
        %1398 = vmatpush1.msra.mxu0 0.0
        %1399 = vmatprep.subr.mxu0 0.0
        %1400 = vmatpush1.msra.mxu0 0.0
        %1401 = vmatprep.subr.mxu0 0.0
        %1402 = vmatpush1.msra.mxu0 0.0
        %1403 = vmatprep.subr.mxu0 0.0
        %1404 = vmatpush1.msra.mxu0 0.0
        %1405 = vmatprep.subr.mxu0 0.0
        %1406 = vmatpush1.msra.mxu0 0.0
        %1407 = vmatprep.subr.mxu0 0.0
        %1408 = vmatpush1.msra.mxu0 0.0
        %1409 = vmatprep.subr.mxu0 0.0
        %1410 = vmatpush1.msra.mxu0 0.0
        %1411 = vmatprep.subr.mxu0 0.0
        %1412 = vmatpush1.msra.mxu0 0.0
        %1413 = vmatprep.subr.mxu0 0.0
        %1414 = vmatpush1.msra.mxu0 0.0
        %1415 = vmatprep.subr.mxu0 0.0
        %1416 = vmatpush1.msra.mxu0 0.0
        %1417 = vmatprep.subr.mxu0 0.0
        %1418 = vmatpush1.msra.mxu0 0.0
        %1419 = vmatprep.subr.mxu0 0.0
        %1420 = vmatpush1.msra.mxu0 0.0
        %1421 = vmatprep.subr.mxu0 0.0
        %1422 = vmatpush1.msra.mxu0 0.0
        %1423 = vmatprep.subr.mxu0 0.0
        %1424 = vmatpush1.msra.mxu0 0.0
        %1425 = vmatprep.subr.mxu0 0.0
        %1426 = vmatpush1.msra.mxu0 0.0
        %1427 = vmatprep.subr.mxu0 0.0
        %1428 = vmatpush1.msra.mxu0 0.0
        %1429 = vmatprep.subr.mxu0 0.0
        %1430 = vmatpush1.msra.mxu0 0.0
        %1431 = vmatprep.subr.mxu0 0.0
        %1432 = vmatpush1.msra.mxu0 0.0
        %1433 = vmatprep.subr.mxu0 0.0
        %1434 = vmatpush1.msra.mxu0 0.0
        %1435 = vmatprep.subr.mxu0 0.0
        %1436 = vmatpush1.msra.mxu0 0.0
        %1437 = vmatprep.subr.mxu0 0.0
        %1438 = vmatpush1.msra.mxu0 0.0
        %1439 = vmatprep.mubr.f32.mxu0 0.0
        %1440 = vmatmul.mubr.f32.gmra.mrb[0].mxu0 %v1328
        %v1441 = vpop.f32.mrb[0].mxu0
        %v1442 = vadd.f32 0.0, %v1441
        %v1443 = vpop.f32.mrb[0].mxu0
        %1444 = vmatprep.mubr.f32.mxu0 0.0
        %1445 = vmatmul.mubr.f32.gmra.mrb[0].mxu0 %v1331
        %v1446 = vpop.f32.mrb[0].mxu0
        %v1447 = vadd.f32 0.0, %v1446
        %v1448 = vpop.f32.mrb[0].mxu0
        %1449 = vmatprep.mubr.f32.mxu0 0.0
        %1450 = vmatmul.mubr.f32.gmra.mrb[0].mxu0 %v1334
        %v1451 = vpop.f32.mrb[0].mxu0
        %v1452 = vadd.f32 0.0, %v1451
        %v1453 = vpop.f32.mrb[0].mxu0
        %1454 = vmatprep.mubr.f32.mxu0 0.0
        %1455 = vmatmul.mubr.f32.gmra.mrb[0].mxu0 %v1337
        %v1456 = vpop.f32.mrb[0].mxu0
        %v1457 = vadd.f32 0.0, %v1456
        %v1458 = vpop.f32.mrb[0].mxu0
        %1459 = vmatprep.mubr.f32.mxu0 0.0
        %1460 = vmatmul.mubr.f32.gmra.mrb[0].mxu0 %v1340
        %v1461 = vpop.f32.mrb[0].mxu0
        %v1462 = vadd.f32 0.0, %v1461
        %v1463 = vpop.f32.mrb[0].mxu0
        %1464 = vmatprep.mubr.f32.mxu0 0.0
        %1465 = vmatmul.mubr.f32.gmra.mrb[0].mxu0 %v1343
        %v1466 = vpop.f32.mrb[0].mxu0
        %v1467 = vadd.f32 0.0, %v1466
        %v1468 = vpop.f32.mrb[0].mxu0
        %1469 = vmatprep.mubr.f32.mxu0 0.0
        %1470 = vmatmul.mubr.f32.gmra.mrb[0].mxu0 %v1346
        %v1471 = vpop.f32.mrb[0].mxu0
        %v1472 = vadd.f32 0.0, %v1471
        %v1473 = vpop.f32.mrb[0].mxu0
        %1474 = vmatprep.mubr.f32.mxu0 0.0
        %1475 = vmatmul.mubr.f32.gmra.mrb[0].mxu0 %v1349
        %v1476 = vpop.f32.mrb[0].mxu0
        %v1477 = vadd.f32 0.0, %v1476
        %v1478 = vpop.f32.mrb[0].mxu0
        %1479 = vmatprep.mubr.f32.mxu0 0.0
        %1480 = vmatmul.mubr.f32.gmra.mrb[0].mxu0 %v1352
        %v1481 = vpop.f32.mrb[0].mxu0
        %v1482 = vadd.f32 0.0, %v1481
        %v1483 = vpop.f32.mrb[0].mxu0
        %1484 = vmatprep.mubr.f32.mxu0 0.0
        %1485 = vmatmul.mubr.f32.gmra.mrb[0].mxu0 %v1355
        %v1486 = vpop.f32.mrb[0].mxu0
        %v1487 = vadd.f32 0.0, %v1486
        %v1488 = vpop.f32.mrb[0].mxu0
        %1489 = vmatprep.mubr.f32.mxu0 0.0
        %1490 = vmatmul.mubr.f32.gmra.mrb[0].mxu0 %v1358
        %v1491 = vpop.f32.mrb[0].mxu0
        %v1492 = vadd.f32 0.0, %v1491
        %v1493 = vpop.f32.mrb[0].mxu0
        %1494 = vmatprep.mubr.f32.mxu0 0.0
        %1495 = vmatmul.mubr.f32.gmra.mrb[0].mxu0 %v1361
        %v1496 = vpop.f32.mrb[0].mxu0
        %v1497 = vadd.f32 0.0, %v1496
        %v1498 = vpop.f32.mrb[0].mxu0
        %1499 = vmatprep.mubr.f32.mxu0 0.0
        %1500 = vmatmul.mubr.f32.gmra.mrb[0].mxu0 %v1364
        %v1501 = vpop.f32.mrb[0].mxu0
        %v1502 = vadd.f32 0.0, %v1501
        %v1503 = vpop.f32.mrb[0].mxu0
        %1504 = vmatprep.mubr.f32.mxu0 0.0
        %1505 = vmatmul.mubr.f32.gmra.mrb[0].mxu0 %v1367
        %v1506 = vpop.f32.mrb[0].mxu0
        %v1507 = vadd.f32 0.0, %v1506
        %v1508 = vpop.f32.mrb[0].mxu0
        %1509 = vmatprep.mubr.f32.mxu0 0.0
        %1510 = vmatmul.mubr.f32.gmra.mrb[0].mxu0 %v1370
        %v1511 = vpop.f32.mrb[0].mxu0
        %v1512 = vadd.f32 0.0, %v1511
        %v1513 = vpop.f32.mrb[0].mxu0
        %1514 = vmatprep.mubr.f32.mxu0 0.0
        %1515 = vmatmul.mubr.f32.gmra.mrb[0].mxu0 %v1373
        %v1516 = vpop.f32.mrb[0].mxu0
        %v1517 = vadd.f32 0.0, %v1516
        %v1518 = vpop.f32.mrb[0].mxu0
        %1519 = vdwg.mxu0
        %v1520 = vpack.c.bf16 %v1447, %v1442
        %v1521 = vpack.c.bf16 %v1457, %v1452
        %v1522 = vpack.c.bf16 %v1467, %v1462
        %v1523 = vpack.c.bf16 %v1477, %v1472
        %v1524 = vpack.c.bf16 %v1487, %v1482
        %v1525 = vpack.c.bf16 %v1497, %v1492
        %v1526 = vpack.c.bf16 %v1507, %v1502
        %v1527 = vpack.c.bf16 %v1517, %v1512
        %v1529 = vlaneseq
        %v1530 = vshrl.u32 %v1529, 7
        %v1531 = vsub.s32 0, %v1530
        %v1532 = vrot.slane %v1326, %v1531
        %1534 = vmatprep.subr.bf16.mxu0 0
        %1535 = vmatpush1.bf16.msra.mxu0 %v1520
        %1536 = vmatprep.subr.bf16.mxu0 0
        %1537 = vmatpush1.bf16.msra.mxu0 %v1521
        %1538 = vmatprep.subr.bf16.mxu0 0
        %1539 = vmatpush1.bf16.msra.mxu0 %v1522
        %1540 = vmatprep.subr.bf16.mxu0 0
        %1541 = vmatpush1.bf16.msra.mxu0 %v1523
        %1542 = vmatprep.subr.bf16.mxu0 0
        %1543 = vmatpush1.bf16.msra.mxu0 %v1524
        %1544 = vmatprep.subr.bf16.mxu0 0
        %1545 = vmatpush1.bf16.msra.mxu0 %v1525
        %1546 = vmatprep.subr.bf16.mxu0 0
        %1547 = vmatpush1.bf16.msra.mxu0 %v1526
        %1548 = vmatprep.subr.bf16.mxu0 0
        %1549 = vmatpush1.bf16.msra.mxu0 %v1527
        %1550 = vmatprep.subr.bf16.mxu0 0
        %1551 = vmatpush1.bf16.msra.mxu0 0
        %1552 = vmatprep.subr.bf16.mxu0 0
        %1553 = vmatpush1.bf16.msra.mxu0 0
        %1554 = vmatprep.subr.bf16.mxu0 0
        %1555 = vmatpush1.bf16.msra.mxu0 0
        %1556 = vmatprep.subr.bf16.mxu0 0
        %1557 = vmatpush1.bf16.msra.mxu0 0
        %1558 = vmatprep.subr.bf16.mxu0 0
        %1559 = vmatpush1.bf16.msra.mxu0 0
        %1560 = vmatprep.subr.bf16.mxu0 0
        %1561 = vmatpush1.bf16.msra.mxu0 0
        %1562 = vmatprep.subr.bf16.mxu0 0
        %1563 = vmatpush1.bf16.msra.mxu0 0
        %1564 = vmatprep.subr.bf16.mxu0 0
        %1565 = vmatpush1.bf16.msra.mxu0 0
        %1566 = vmatprep.mubr.bf16.mxu0 0
        %1567 = vmatmul.mubr.bf16.gmra.mrb[0].mxu0 %v873
        %v1568 = vpop.f32.mrb[0].mxu0
        %v1569 = vadd.f32 %v1532, %v1568
        %v1570 = vpop.f32.mrb[0].mxu0
        %v1571 = vpop.f32.mrb[0].mxu0
        %v1572 = vadd.f32 %v1532, %v1571
        %v1573 = vpop.f32.mrb[0].mxu0
        %1574 = vmatprep.mubr.bf16.mxu0 0
        %1575 = vmatmul.mubr.bf16.gmra.mrb[0].mxu0 %v874
        %v1576 = vpop.f32.mrb[0].mxu0
        %v1577 = vadd.f32 %v1532, %v1576
        %v1578 = vpop.f32.mrb[0].mxu0
        %v1579 = vpop.f32.mrb[0].mxu0
        %v1580 = vadd.f32 %v1532, %v1579
        %v1581 = vpop.f32.mrb[0].mxu0
        %1582 = vmatprep.mubr.bf16.mxu0 0
        %1583 = vmatmul.mubr.bf16.gmra.mrb[0].mxu0 %v875
        %v1584 = vpop.f32.mrb[0].mxu0
        %v1585 = vadd.f32 %v1532, %v1584
        %v1586 = vpop.f32.mrb[0].mxu0
        %v1587 = vpop.f32.mrb[0].mxu0
        %v1588 = vadd.f32 %v1532, %v1587
        %v1589 = vpop.f32.mrb[0].mxu0
        %1590 = vmatprep.mubr.bf16.mxu0 0
        %1591 = vmatmul.mubr.bf16.gmra.mrb[0].mxu0 %v876
        %v1592 = vpop.f32.mrb[0].mxu0
        %v1593 = vadd.f32 %v1532, %v1592
        %v1594 = vpop.f32.mrb[0].mxu0
        %v1595 = vpop.f32.mrb[0].mxu0
        %v1596 = vadd.f32 %v1532, %v1595
        %v1597 = vpop.f32.mrb[0].mxu0
        %1598 = vmatprep.mubr.bf16.mxu0 0
        %1599 = vmatmul.mubr.bf16.gmra.mrb[0].mxu0 %v877
        %v1600 = vpop.f32.mrb[0].mxu0
        %v1601 = vadd.f32 %v1532, %v1600
        %v1602 = vpop.f32.mrb[0].mxu0
        %v1603 = vpop.f32.mrb[0].mxu0
        %v1604 = vadd.f32 %v1532, %v1603
        %v1605 = vpop.f32.mrb[0].mxu0
        %1606 = vmatprep.mubr.bf16.mxu0 0
        %1607 = vmatmul.mubr.bf16.gmra.mrb[0].mxu0 %v878
        %v1608 = vpop.f32.mrb[0].mxu0
        %v1609 = vadd.f32 %v1532, %v1608
        %v1610 = vpop.f32.mrb[0].mxu0
        %v1611 = vpop.f32.mrb[0].mxu0
        %v1612 = vadd.f32 %v1532, %v1611
        %v1613 = vpop.f32.mrb[0].mxu0
        %1614 = vmatprep.mubr.bf16.mxu0 0
        %1615 = vmatmul.mubr.bf16.gmra.mrb[0].mxu0 %v879
        %v1616 = vpop.f32.mrb[0].mxu0
        %v1617 = vadd.f32 %v1532, %v1616
        %v1618 = vpop.f32.mrb[0].mxu0
        %v1619 = vpop.f32.mrb[0].mxu0
        %v1620 = vadd.f32 %v1532, %v1619
        %v1621 = vpop.f32.mrb[0].mxu0
        %1622 = vmatprep.mubr.bf16.mxu0 0
        %1623 = vmatmul.mubr.bf16.gmra.mrb[0].mxu0 %v880
        %v1624 = vpop.f32.mrb[0].mxu0
        %v1625 = vadd.f32 %v1532, %v1624
        %v1626 = vpop.f32.mrb[0].mxu0
        %v1627 = vpop.f32.mrb[0].mxu0
        %v1628 = vadd.f32 %v1532, %v1627
        %v1629 = vpop.f32.mrb[0].mxu0
        %1630 = vdwg.mxu0
        %v1631 = vmax.f32 %v1569, 0.0
        %v1632 = vmax.f32 %v1572, 0.0
        %v1633 = vmax.f32 %v1577, 0.0
        %v1634 = vmax.f32 %v1580, 0.0
        %v1635 = vmax.f32 %v1585, 0.0
        %v1636 = vmax.f32 %v1588, 0.0
        %v1637 = vmax.f32 %v1593, 0.0
        %v1638 = vmax.f32 %v1596, 0.0
        %v1639 = vmax.f32 %v1601, 0.0
        %v1640 = vmax.f32 %v1604, 0.0
        %v1641 = vmax.f32 %v1609, 0.0
        %v1642 = vmax.f32 %v1612, 0.0
        %v1643 = vmax.f32 %v1617, 0.0
        %v1644 = vmax.f32 %v1620, 0.0
        %v1645 = vmax.f32 %v1625, 0.0
        %v1646 = vmax.f32 %v1628, 0.0
        %v1647 = vld [vmem:[%s8] sm:$0xff]
        %v1648 = vld [vmem:[%s9] sm:$0x1]
        %v1650 = vsel %vm1004, %v1631, 0
        %v1653 = vsel %vm1004, %v1632, 0
        %v1656 = vsel %vm1004, %v1633, 0
        %v1659 = vsel %vm1004, %v1634, 0
        %v1662 = vsel %vm1004, %v1635, 0
        %v1665 = vsel %vm1004, %v1636, 0
        %v1668 = vsel %vm1004, %v1637, 0
        %v1671 = vsel %vm1004, %v1638, 0
        %v1674 = vsel %vm1004, %v1639, 0
        %v1677 = vsel %vm1004, %v1640, 0
        %v1680 = vsel %vm1004, %v1641, 0
        %v1683 = vsel %vm1004, %v1642, 0
        %v1686 = vsel %vm1004, %v1643, 0
        %v1689 = vsel %vm1004, %v1644, 0
        %v1692 = vsel %vm1004, %v1645, 0
        %v1695 = vsel %vm1004, %v1646, 0
        %1697 = vmatprep.subr.mxu0 0.0
        %1698 = vmatpush1.msra.mxu0 %v1647
        %1699 = vmatprep.subr.mxu0 0.0
        %1700 = vmatpush1.msra.mxu0 0.0
        %1701 = vmatprep.subr.mxu0 0.0
        %1702 = vmatpush1.msra.mxu0 0.0
        %1703 = vmatprep.subr.mxu0 0.0
        %1704 = vmatpush1.msra.mxu0 0.0
        %1705 = vmatprep.subr.mxu0 0.0
        %1706 = vmatpush1.msra.mxu0 0.0
        %1707 = vmatprep.subr.mxu0 0.0
        %1708 = vmatpush1.msra.mxu0 0.0
        %1709 = vmatprep.subr.mxu0 0.0
        %1710 = vmatpush1.msra.mxu0 0.0
        %1711 = vmatprep.subr.mxu0 0.0
        %1712 = vmatpush1.msra.mxu0 0.0
        %1713 = vmatprep.subr.mxu0 0.0
        %1714 = vmatpush1.msra.mxu0 0.0
        %1715 = vmatprep.subr.mxu0 0.0
        %1716 = vmatpush1.msra.mxu0 0.0
        %1717 = vmatprep.subr.mxu0 0.0
        %1718 = vmatpush1.msra.mxu0 0.0
        %1719 = vmatprep.subr.mxu0 0.0
        %1720 = vmatpush1.msra.mxu0 0.0
        %1721 = vmatprep.subr.mxu0 0.0
        %1722 = vmatpush1.msra.mxu0 0.0
        %1723 = vmatprep.subr.mxu0 0.0
        %1724 = vmatpush1.msra.mxu0 0.0
        %1725 = vmatprep.subr.mxu0 0.0
        %1726 = vmatpush1.msra.mxu0 0.0
        %1727 = vmatprep.subr.mxu0 0.0
        %1728 = vmatpush1.msra.mxu0 0.0
        %1729 = vmatprep.subr.mxu0 0.0
        %1730 = vmatpush1.msra.mxu0 0.0
        %1731 = vmatprep.subr.mxu0 0.0
        %1732 = vmatpush1.msra.mxu0 0.0
        %1733 = vmatprep.subr.mxu0 0.0
        %1734 = vmatpush1.msra.mxu0 0.0
        %1735 = vmatprep.subr.mxu0 0.0
        %1736 = vmatpush1.msra.mxu0 0.0
        %1737 = vmatprep.subr.mxu0 0.0
        %1738 = vmatpush1.msra.mxu0 0.0
        %1739 = vmatprep.subr.mxu0 0.0
        %1740 = vmatpush1.msra.mxu0 0.0
        %1741 = vmatprep.subr.mxu0 0.0
        %1742 = vmatpush1.msra.mxu0 0.0
        %1743 = vmatprep.subr.mxu0 0.0
        %1744 = vmatpush1.msra.mxu0 0.0
        %1745 = vmatprep.subr.mxu0 0.0
        %1746 = vmatpush1.msra.mxu0 0.0
        %1747 = vmatprep.subr.mxu0 0.0
        %1748 = vmatpush1.msra.mxu0 0.0
        %1749 = vmatprep.subr.mxu0 0.0
        %1750 = vmatpush1.msra.mxu0 0.0
        %1751 = vmatprep.subr.mxu0 0.0
        %1752 = vmatpush1.msra.mxu0 0.0
        %1753 = vmatprep.subr.mxu0 0.0
        %1754 = vmatpush1.msra.mxu0 0.0
        %1755 = vmatprep.subr.mxu0 0.0
        %1756 = vmatpush1.msra.mxu0 0.0
        %1757 = vmatprep.subr.mxu0 0.0
        %1758 = vmatpush1.msra.mxu0 0.0
        %1759 = vmatprep.subr.mxu0 0.0
        %1760 = vmatpush1.msra.mxu0 0.0
        %1761 = vmatprep.mubr.f32.mxu0 0.0
        %1762 = vmatmul.mubr.f32.gmra.mrb[0].mxu0 %v1650
        %v1763 = vpop.f32.mrb[0].mxu0
        %v1764 = vadd.f32 0.0, %v1763
        %v1765 = vpop.f32.mrb[0].mxu0
        %1766 = vmatprep.mubr.f32.mxu0 0.0
        %1767 = vmatmul.mubr.f32.gmra.mrb[0].mxu0 %v1653
        %v1768 = vpop.f32.mrb[0].mxu0
        %v1769 = vadd.f32 0.0, %v1768
        %v1770 = vpop.f32.mrb[0].mxu0
        %1771 = vmatprep.mubr.f32.mxu0 0.0
        %1772 = vmatmul.mubr.f32.gmra.mrb[0].mxu0 %v1656
        %v1773 = vpop.f32.mrb[0].mxu0
        %v1774 = vadd.f32 0.0, %v1773
        %v1775 = vpop.f32.mrb[0].mxu0
        %1776 = vmatprep.mubr.f32.mxu0 0.0
        %1777 = vmatmul.mubr.f32.gmra.mrb[0].mxu0 %v1659
        %v1778 = vpop.f32.mrb[0].mxu0
        %v1779 = vadd.f32 0.0, %v1778
        %v1780 = vpop.f32.mrb[0].mxu0
        %1781 = vmatprep.mubr.f32.mxu0 0.0
        %1782 = vmatmul.mubr.f32.gmra.mrb[0].mxu0 %v1662
        %v1783 = vpop.f32.mrb[0].mxu0
        %v1784 = vadd.f32 0.0, %v1783
        %v1785 = vpop.f32.mrb[0].mxu0
        %1786 = vmatprep.mubr.f32.mxu0 0.0
        %1787 = vmatmul.mubr.f32.gmra.mrb[0].mxu0 %v1665
        %v1788 = vpop.f32.mrb[0].mxu0
        %v1789 = vadd.f32 0.0, %v1788
        %v1790 = vpop.f32.mrb[0].mxu0
        %1791 = vmatprep.mubr.f32.mxu0 0.0
        %1792 = vmatmul.mubr.f32.gmra.mrb[0].mxu0 %v1668
        %v1793 = vpop.f32.mrb[0].mxu0
        %v1794 = vadd.f32 0.0, %v1793
        %v1795 = vpop.f32.mrb[0].mxu0
        %1796 = vmatprep.mubr.f32.mxu0 0.0
        %1797 = vmatmul.mubr.f32.gmra.mrb[0].mxu0 %v1671
        %v1798 = vpop.f32.mrb[0].mxu0
        %v1799 = vadd.f32 0.0, %v1798
        %v1800 = vpop.f32.mrb[0].mxu0
        %1801 = vmatprep.mubr.f32.mxu0 0.0
        %1802 = vmatmul.mubr.f32.gmra.mrb[0].mxu0 %v1674
        %v1803 = vpop.f32.mrb[0].mxu0
        %v1804 = vadd.f32 0.0, %v1803
        %v1805 = vpop.f32.mrb[0].mxu0
        %1806 = vmatprep.mubr.f32.mxu0 0.0
        %1807 = vmatmul.mubr.f32.gmra.mrb[0].mxu0 %v1677
        %v1808 = vpop.f32.mrb[0].mxu0
        %v1809 = vadd.f32 0.0, %v1808
        %v1810 = vpop.f32.mrb[0].mxu0
        %1811 = vmatprep.mubr.f32.mxu0 0.0
        %1812 = vmatmul.mubr.f32.gmra.mrb[0].mxu0 %v1680
        %v1813 = vpop.f32.mrb[0].mxu0
        %v1814 = vadd.f32 0.0, %v1813
        %v1815 = vpop.f32.mrb[0].mxu0
        %1816 = vmatprep.mubr.f32.mxu0 0.0
        %1817 = vmatmul.mubr.f32.gmra.mrb[0].mxu0 %v1683
        %v1818 = vpop.f32.mrb[0].mxu0
        %v1819 = vadd.f32 0.0, %v1818
        %v1820 = vpop.f32.mrb[0].mxu0
        %1821 = vmatprep.mubr.f32.mxu0 0.0
        %1822 = vmatmul.mubr.f32.gmra.mrb[0].mxu0 %v1686
        %v1823 = vpop.f32.mrb[0].mxu0
        %v1824 = vadd.f32 0.0, %v1823
        %v1825 = vpop.f32.mrb[0].mxu0
        %1826 = vmatprep.mubr.f32.mxu0 0.0
        %1827 = vmatmul.mubr.f32.gmra.mrb[0].mxu0 %v1689
        %v1828 = vpop.f32.mrb[0].mxu0
        %v1829 = vadd.f32 0.0, %v1828
        %v1830 = vpop.f32.mrb[0].mxu0
        %1831 = vmatprep.mubr.f32.mxu0 0.0
        %1832 = vmatmul.mubr.f32.gmra.mrb[0].mxu0 %v1692
        %v1833 = vpop.f32.mrb[0].mxu0
        %v1834 = vadd.f32 0.0, %v1833
        %v1835 = vpop.f32.mrb[0].mxu0
        %1836 = vmatprep.mubr.f32.mxu0 0.0
        %1837 = vmatmul.mubr.f32.gmra.mrb[0].mxu0 %v1695
        %v1838 = vpop.f32.mrb[0].mxu0
        %v1839 = vadd.f32 0.0, %v1838
        %v1840 = vpop.f32.mrb[0].mxu0
        %1841 = vdwg.mxu0
        %v1842 = vpack.c.bf16 %v1769, %v1764
        %v1843 = vpack.c.bf16 %v1779, %v1774
        %v1844 = vpack.c.bf16 %v1789, %v1784
        %v1845 = vpack.c.bf16 %v1799, %v1794
        %v1846 = vpack.c.bf16 %v1809, %v1804
        %v1847 = vpack.c.bf16 %v1819, %v1814
        %v1848 = vpack.c.bf16 %v1829, %v1824
        %v1849 = vpack.c.bf16 %v1839, %v1834
        %v1851 = vlaneseq
        %v1852 = vshrl.u32 %v1851, 7
        %v1853 = vsub.s32 0, %v1852
        %v1854 = vrot.slane %v1648, %v1853
        %1856 = vmatprep.subr.bf16.mxu0 0
        %1857 = vmatpush1.bf16.msra.mxu0 %v1842
        %1858 = vmatprep.subr.bf16.mxu0 0
        %1859 = vmatpush1.bf16.msra.mxu0 %v1843
        %1860 = vmatprep.subr.bf16.mxu0 0
        %1861 = vmatpush1.bf16.msra.mxu0 %v1844
        %1862 = vmatprep.subr.bf16.mxu0 0
        %1863 = vmatpush1.bf16.msra.mxu0 %v1845
        %1864 = vmatprep.subr.bf16.mxu0 0
        %1865 = vmatpush1.bf16.msra.mxu0 %v1846
        %1866 = vmatprep.subr.bf16.mxu0 0
        %1867 = vmatpush1.bf16.msra.mxu0 %v1847
        %1868 = vmatprep.subr.bf16.mxu0 0
        %1869 = vmatpush1.bf16.msra.mxu0 %v1848
        %1870 = vmatprep.subr.bf16.mxu0 0
        %1871 = vmatpush1.bf16.msra.mxu0 %v1849
        %1872 = vmatprep.subr.bf16.mxu0 0
        %1873 = vmatpush1.bf16.msra.mxu0 0
        %1874 = vmatprep.subr.bf16.mxu0 0
        %1875 = vmatpush1.bf16.msra.mxu0 0
        %1876 = vmatprep.subr.bf16.mxu0 0
        %1877 = vmatpush1.bf16.msra.mxu0 0
        %1878 = vmatprep.subr.bf16.mxu0 0
        %1879 = vmatpush1.bf16.msra.mxu0 0
        %1880 = vmatprep.subr.bf16.mxu0 0
        %1881 = vmatpush1.bf16.msra.mxu0 0
        %1882 = vmatprep.subr.bf16.mxu0 0
        %1883 = vmatpush1.bf16.msra.mxu0 0
        %1884 = vmatprep.subr.bf16.mxu0 0
        %1885 = vmatpush1.bf16.msra.mxu0 0
        %1886 = vmatprep.subr.bf16.mxu0 0
        %1887 = vmatpush1.bf16.msra.mxu0 0
        %1888 = vmatprep.mubr.bf16.mxu0 0
        %1889 = vmatmul.mubr.bf16.gmra.mrb[0].mxu0 %v873
        %v1890 = vpop.f32.mrb[0].mxu0
        %v1891 = vadd.f32 %v1854, %v1890
        %v1892 = vpop.f32.mrb[0].mxu0
        %v1893 = vpop.f32.mrb[0].mxu0
        %v1894 = vadd.f32 %v1854, %v1893
        %v1895 = vpop.f32.mrb[0].mxu0
        %1896 = vmatprep.mubr.bf16.mxu0 0
        %1897 = vmatmul.mubr.bf16.gmra.mrb[0].mxu0 %v874
        %v1898 = vpop.f32.mrb[0].mxu0
        %v1899 = vadd.f32 %v1854, %v1898
        %v1900 = vpop.f32.mrb[0].mxu0
        %v1901 = vpop.f32.mrb[0].mxu0
        %v1902 = vadd.f32 %v1854, %v1901
        %v1903 = vpop.f32.mrb[0].mxu0
        %1904 = vmatprep.mubr.bf16.mxu0 0
        %1905 = vmatmul.mubr.bf16.gmra.mrb[0].mxu0 %v875
        %v1906 = vpop.f32.mrb[0].mxu0
        %v1907 = vadd.f32 %v1854, %v1906
        %v1908 = vpop.f32.mrb[0].mxu0
        %v1909 = vpop.f32.mrb[0].mxu0
        %v1910 = vadd.f32 %v1854, %v1909
        %v1911 = vpop.f32.mrb[0].mxu0
        %1912 = vmatprep.mubr.bf16.mxu0 0
        %1913 = vmatmul.mubr.bf16.gmra.mrb[0].mxu0 %v876
        %v1914 = vpop.f32.mrb[0].mxu0
        %v1915 = vadd.f32 %v1854, %v1914
        %v1916 = vpop.f32.mrb[0].mxu0
        %v1917 = vpop.f32.mrb[0].mxu0
        %v1918 = vadd.f32 %v1854, %v1917
        %v1919 = vpop.f32.mrb[0].mxu0
        %1920 = vmatprep.mubr.bf16.mxu0 0
        %1921 = vmatmul.mubr.bf16.gmra.mrb[0].mxu0 %v877
        %v1922 = vpop.f32.mrb[0].mxu0
        %v1923 = vadd.f32 %v1854, %v1922
        %v1924 = vpop.f32.mrb[0].mxu0
        %v1925 = vpop.f32.mrb[0].mxu0
        %v1926 = vadd.f32 %v1854, %v1925
        %v1927 = vpop.f32.mrb[0].mxu0
        %1928 = vmatprep.mubr.bf16.mxu0 0
        %1929 = vmatmul.mubr.bf16.gmra.mrb[0].mxu0 %v878
        %v1930 = vpop.f32.mrb[0].mxu0
        %v1931 = vadd.f32 %v1854, %v1930
        %v1932 = vpop.f32.mrb[0].mxu0
        %v1933 = vpop.f32.mrb[0].mxu0
        %v1934 = vadd.f32 %v1854, %v1933
        %v1935 = vpop.f32.mrb[0].mxu0
        %1936 = vmatprep.mubr.bf16.mxu0 0
        %1937 = vmatmul.mubr.bf16.gmra.mrb[0].mxu0 %v879
        %v1938 = vpop.f32.mrb[0].mxu0
        %v1939 = vadd.f32 %v1854, %v1938
        %v1940 = vpop.f32.mrb[0].mxu0
        %v1941 = vpop.f32.mrb[0].mxu0
        %v1942 = vadd.f32 %v1854, %v1941
        %v1943 = vpop.f32.mrb[0].mxu0
        %1944 = vmatprep.mubr.bf16.mxu0 0
        %1945 = vmatmul.mubr.bf16.gmra.mrb[0].mxu0 %v880
        %v1946 = vpop.f32.mrb[0].mxu0
        %v1947 = vadd.f32 %v1854, %v1946
        %v1948 = vpop.f32.mrb[0].mxu0
        %v1949 = vpop.f32.mrb[0].mxu0
        %v1950 = vadd.f32 %v1854, %v1949
        %v1951 = vpop.f32.mrb[0].mxu0
        %1952 = vdwg.mxu0
        %v1953 = vmax.f32 %v1891, 0.0
        %v1954 = vmax.f32 %v1894, 0.0
        %v1955 = vmax.f32 %v1899, 0.0
        %v1956 = vmax.f32 %v1902, 0.0
        %v1957 = vmax.f32 %v1907, 0.0
        %v1958 = vmax.f32 %v1910, 0.0
        %v1959 = vmax.f32 %v1915, 0.0
        %v1960 = vmax.f32 %v1918, 0.0
        %v1961 = vmax.f32 %v1923, 0.0
        %v1962 = vmax.f32 %v1926, 0.0
        %v1963 = vmax.f32 %v1931, 0.0
        %v1964 = vmax.f32 %v1934, 0.0
        %v1965 = vmax.f32 %v1939, 0.0
        %v1966 = vmax.f32 %v1942, 0.0
        %v1967 = vmax.f32 %v1947, 0.0
        %v1968 = vmax.f32 %v1950, 0.0
        %v1969 = vld [vmem:[%s10] sm:$0xff]
        %v1970 = vld [vmem:[%s11] sm:$0x1]
        %v1972 = vsel %vm1004, %v1953, 0
        %v1975 = vsel %vm1004, %v1954, 0
        %v1978 = vsel %vm1004, %v1955, 0
        %v1981 = vsel %vm1004, %v1956, 0
        %v1984 = vsel %vm1004, %v1957, 0
        %v1987 = vsel %vm1004, %v1958, 0
        %v1990 = vsel %vm1004, %v1959, 0
        %v1993 = vsel %vm1004, %v1960, 0
        %v1996 = vsel %vm1004, %v1961, 0
        %v1999 = vsel %vm1004, %v1962, 0
        %v2002 = vsel %vm1004, %v1963, 0
        %v2005 = vsel %vm1004, %v1964, 0
        %v2008 = vsel %vm1004, %v1965, 0
        %v2011 = vsel %vm1004, %v1966, 0
        %v2014 = vsel %vm1004, %v1967, 0
        %v2017 = vsel %vm1004, %v1968, 0
        %2019 = vmatprep.subr.mxu0 0.0
        %2020 = vmatpush1.msra.mxu0 %v1969
        %2021 = vmatprep.subr.mxu0 0.0
        %2022 = vmatpush1.msra.mxu0 0.0
        %2023 = vmatprep.subr.mxu0 0.0
        %2024 = vmatpush1.msra.mxu0 0.0
        %2025 = vmatprep.subr.mxu0 0.0
        %2026 = vmatpush1.msra.mxu0 0.0
        %2027 = vmatprep.subr.mxu0 0.0
        %2028 = vmatpush1.msra.mxu0 0.0
        %2029 = vmatprep.subr.mxu0 0.0
        %2030 = vmatpush1.msra.mxu0 0.0
        %2031 = vmatprep.subr.mxu0 0.0
        %2032 = vmatpush1.msra.mxu0 0.0
        %2033 = vmatprep.subr.mxu0 0.0
        %2034 = vmatpush1.msra.mxu0 0.0
        %2035 = vmatprep.subr.mxu0 0.0
        %2036 = vmatpush1.msra.mxu0 0.0
        %2037 = vmatprep.subr.mxu0 0.0
        %2038 = vmatpush1.msra.mxu0 0.0
        %2039 = vmatprep.subr.mxu0 0.0
        %2040 = vmatpush1.msra.mxu0 0.0
        %2041 = vmatprep.subr.mxu0 0.0
        %2042 = vmatpush1.msra.mxu0 0.0
        %2043 = vmatprep.subr.mxu0 0.0
        %2044 = vmatpush1.msra.mxu0 0.0
        %2045 = vmatprep.subr.mxu0 0.0
        %2046 = vmatpush1.msra.mxu0 0.0
        %2047 = vmatprep.subr.mxu0 0.0
        %2048 = vmatpush1.msra.mxu0 0.0
        %2049 = vmatprep.subr.mxu0 0.0
        %2050 = vmatpush1.msra.mxu0 0.0
        %2051 = vmatprep.subr.mxu0 0.0
        %2052 = vmatpush1.msra.mxu0 0.0
        %2053 = vmatprep.subr.mxu0 0.0
        %2054 = vmatpush1.msra.mxu0 0.0
        %2055 = vmatprep.subr.mxu0 0.0
        %2056 = vmatpush1.msra.mxu0 0.0
        %2057 = vmatprep.subr.mxu0 0.0
        %2058 = vmatpush1.msra.mxu0 0.0
        %2059 = vmatprep.subr.mxu0 0.0
        %2060 = vmatpush1.msra.mxu0 0.0
        %2061 = vmatprep.subr.mxu0 0.0
        %2062 = vmatpush1.msra.mxu0 0.0
        %2063 = vmatprep.subr.mxu0 0.0
        %2064 = vmatpush1.msra.mxu0 0.0
        %2065 = vmatprep.subr.mxu0 0.0
        %2066 = vmatpush1.msra.mxu0 0.0
        %2067 = vmatprep.subr.mxu0 0.0
        %2068 = vmatpush1.msra.mxu0 0.0
        %2069 = vmatprep.subr.mxu0 0.0
        %2070 = vmatpush1.msra.mxu0 0.0
        %2071 = vmatprep.subr.mxu0 0.0
        %2072 = vmatpush1.msra.mxu0 0.0
        %2073 = vmatprep.subr.mxu0 0.0
        %2074 = vmatpush1.msra.mxu0 0.0
        %2075 = vmatprep.subr.mxu0 0.0
        %2076 = vmatpush1.msra.mxu0 0.0
        %2077 = vmatprep.subr.mxu0 0.0
        %2078 = vmatpush1.msra.mxu0 0.0
        %2079 = vmatprep.subr.mxu0 0.0
        %2080 = vmatpush1.msra.mxu0 0.0
        %2081 = vmatprep.subr.mxu0 0.0
        %2082 = vmatpush1.msra.mxu0 0.0
        %2083 = vmatprep.mubr.f32.mxu0 0.0
        %2084 = vmatmul.mubr.f32.gmra.mrb[0].mxu0 %v1972
        %v2085 = vpop.f32.mrb[0].mxu0
        %v2086 = vadd.f32 0.0, %v2085
        %v2087 = vpop.f32.mrb[0].mxu0
        %2088 = vmatprep.mubr.f32.mxu0 0.0
        %2089 = vmatmul.mubr.f32.gmra.mrb[0].mxu0 %v1975
        %v2090 = vpop.f32.mrb[0].mxu0
        %v2091 = vadd.f32 0.0, %v2090
        %v2092 = vpop.f32.mrb[0].mxu0
        %2093 = vmatprep.mubr.f32.mxu0 0.0
        %2094 = vmatmul.mubr.f32.gmra.mrb[0].mxu0 %v1978
        %v2095 = vpop.f32.mrb[0].mxu0
        %v2096 = vadd.f32 0.0, %v2095
        %v2097 = vpop.f32.mrb[0].mxu0
        %2098 = vmatprep.mubr.f32.mxu0 0.0
        %2099 = vmatmul.mubr.f32.gmra.mrb[0].mxu0 %v1981
        %v2100 = vpop.f32.mrb[0].mxu0
        %v2101 = vadd.f32 0.0, %v2100
        %v2102 = vpop.f32.mrb[0].mxu0
        %2103 = vmatprep.mubr.f32.mxu0 0.0
        %2104 = vmatmul.mubr.f32.gmra.mrb[0].mxu0 %v1984
        %v2105 = vpop.f32.mrb[0].mxu0
        %v2106 = vadd.f32 0.0, %v2105
        %v2107 = vpop.f32.mrb[0].mxu0
        %2108 = vmatprep.mubr.f32.mxu0 0.0
        %2109 = vmatmul.mubr.f32.gmra.mrb[0].mxu0 %v1987
        %v2110 = vpop.f32.mrb[0].mxu0
        %v2111 = vadd.f32 0.0, %v2110
        %v2112 = vpop.f32.mrb[0].mxu0
        %2113 = vmatprep.mubr.f32.mxu0 0.0
        %2114 = vmatmul.mubr.f32.gmra.mrb[0].mxu0 %v1990
        %v2115 = vpop.f32.mrb[0].mxu0
        %v2116 = vadd.f32 0.0, %v2115
        %v2117 = vpop.f32.mrb[0].mxu0
        %2118 = vmatprep.mubr.f32.mxu0 0.0
        %2119 = vmatmul.mubr.f32.gmra.mrb[0].mxu0 %v1993
        %v2120 = vpop.f32.mrb[0].mxu0
        %v2121 = vadd.f32 0.0, %v2120
        %v2122 = vpop.f32.mrb[0].mxu0
        %2123 = vmatprep.mubr.f32.mxu0 0.0
        %2124 = vmatmul.mubr.f32.gmra.mrb[0].mxu0 %v1996
        %v2125 = vpop.f32.mrb[0].mxu0
        %v2126 = vadd.f32 0.0, %v2125
        %v2127 = vpop.f32.mrb[0].mxu0
        %2128 = vmatprep.mubr.f32.mxu0 0.0
        %2129 = vmatmul.mubr.f32.gmra.mrb[0].mxu0 %v1999
        %v2130 = vpop.f32.mrb[0].mxu0
        %v2131 = vadd.f32 0.0, %v2130
        %v2132 = vpop.f32.mrb[0].mxu0
        %2133 = vmatprep.mubr.f32.mxu0 0.0
        %2134 = vmatmul.mubr.f32.gmra.mrb[0].mxu0 %v2002
        %v2135 = vpop.f32.mrb[0].mxu0
        %v2136 = vadd.f32 0.0, %v2135
        %v2137 = vpop.f32.mrb[0].mxu0
        %2138 = vmatprep.mubr.f32.mxu0 0.0
        %2139 = vmatmul.mubr.f32.gmra.mrb[0].mxu0 %v2005
        %v2140 = vpop.f32.mrb[0].mxu0
        %v2141 = vadd.f32 0.0, %v2140
        %v2142 = vpop.f32.mrb[0].mxu0
        %2143 = vmatprep.mubr.f32.mxu0 0.0
        %2144 = vmatmul.mubr.f32.gmra.mrb[0].mxu0 %v2008
        %v2145 = vpop.f32.mrb[0].mxu0
        %v2146 = vadd.f32 0.0, %v2145
        %v2147 = vpop.f32.mrb[0].mxu0
        %2148 = vmatprep.mubr.f32.mxu0 0.0
        %2149 = vmatmul.mubr.f32.gmra.mrb[0].mxu0 %v2011
        %v2150 = vpop.f32.mrb[0].mxu0
        %v2151 = vadd.f32 0.0, %v2150
        %v2152 = vpop.f32.mrb[0].mxu0
        %2153 = vmatprep.mubr.f32.mxu0 0.0
        %2154 = vmatmul.mubr.f32.gmra.mrb[0].mxu0 %v2014
        %v2155 = vpop.f32.mrb[0].mxu0
        %v2156 = vadd.f32 0.0, %v2155
        %v2157 = vpop.f32.mrb[0].mxu0
        %2158 = vmatprep.mubr.f32.mxu0 0.0
        %2159 = vmatmul.mubr.f32.gmra.mrb[0].mxu0 %v2017
        %v2160 = vpop.f32.mrb[0].mxu0
        %v2161 = vadd.f32 0.0, %v2160
        %v2162 = vpop.f32.mrb[0].mxu0
        %2163 = vdwg.mxu0
        %v2164 = vpack.c.bf16 %v2091, %v2086
        %v2165 = vpack.c.bf16 %v2101, %v2096
        %v2166 = vpack.c.bf16 %v2111, %v2106
        %v2167 = vpack.c.bf16 %v2121, %v2116
        %v2168 = vpack.c.bf16 %v2131, %v2126
        %v2169 = vpack.c.bf16 %v2141, %v2136
        %v2170 = vpack.c.bf16 %v2151, %v2146
        %v2171 = vpack.c.bf16 %v2161, %v2156
        %v2173 = vlaneseq
        %v2174 = vshrl.u32 %v2173, 7
        %v2175 = vsub.s32 0, %v2174
        %v2176 = vrot.slane %v1970, %v2175
        %2178 = vmatprep.subr.bf16.mxu0 0
        %2179 = vmatpush1.bf16.msra.mxu0 %v2164
        %2180 = vmatprep.subr.bf16.mxu0 0
        %2181 = vmatpush1.bf16.msra.mxu0 %v2165
        %2182 = vmatprep.subr.bf16.mxu0 0
        %2183 = vmatpush1.bf16.msra.mxu0 %v2166
        %2184 = vmatprep.subr.bf16.mxu0 0
        %2185 = vmatpush1.bf16.msra.mxu0 %v2167
        %2186 = vmatprep.subr.bf16.mxu0 0
        %2187 = vmatpush1.bf16.msra.mxu0 %v2168
        %2188 = vmatprep.subr.bf16.mxu0 0
        %2189 = vmatpush1.bf16.msra.mxu0 %v2169
        %2190 = vmatprep.subr.bf16.mxu0 0
        %2191 = vmatpush1.bf16.msra.mxu0 %v2170
        %2192 = vmatprep.subr.bf16.mxu0 0
        %2193 = vmatpush1.bf16.msra.mxu0 %v2171
        %2194 = vmatprep.subr.bf16.mxu0 0
        %2195 = vmatpush1.bf16.msra.mxu0 0
        %2196 = vmatprep.subr.bf16.mxu0 0
        %2197 = vmatpush1.bf16.msra.mxu0 0
        %2198 = vmatprep.subr.bf16.mxu0 0
        %2199 = vmatpush1.bf16.msra.mxu0 0
        %2200 = vmatprep.subr.bf16.mxu0 0
        %2201 = vmatpush1.bf16.msra.mxu0 0
        %2202 = vmatprep.subr.bf16.mxu0 0
        %2203 = vmatpush1.bf16.msra.mxu0 0
        %2204 = vmatprep.subr.bf16.mxu0 0
        %2205 = vmatpush1.bf16.msra.mxu0 0
        %2206 = vmatprep.subr.bf16.mxu0 0
        %2207 = vmatpush1.bf16.msra.mxu0 0
        %2208 = vmatprep.subr.bf16.mxu0 0
        %2209 = vmatpush1.bf16.msra.mxu0 0
        %2210 = vmatprep.mubr.bf16.mxu0 0
        %2211 = vmatmul.mubr.bf16.gmra.mrb[0].mxu0 %v873
        %v2212 = vpop.f32.mrb[0].mxu0
        %v2213 = vadd.f32 %v2176, %v2212
        %v2214 = vpop.f32.mrb[0].mxu0
        %v2215 = vpop.f32.mrb[0].mxu0
        %v2216 = vadd.f32 %v2176, %v2215
        %v2217 = vpop.f32.mrb[0].mxu0
        %2218 = vmatprep.mubr.bf16.mxu0 0
        %2219 = vmatmul.mubr.bf16.gmra.mrb[0].mxu0 %v874
        %v2220 = vpop.f32.mrb[0].mxu0
        %v2221 = vadd.f32 %v2176, %v2220
        %v2222 = vpop.f32.mrb[0].mxu0
        %v2223 = vpop.f32.mrb[0].mxu0
        %v2224 = vadd.f32 %v2176, %v2223
        %v2225 = vpop.f32.mrb[0].mxu0
        %2226 = vmatprep.mubr.bf16.mxu0 0
        %2227 = vmatmul.mubr.bf16.gmra.mrb[0].mxu0 %v875
        %v2228 = vpop.f32.mrb[0].mxu0
        %v2229 = vadd.f32 %v2176, %v2228
        %v2230 = vpop.f32.mrb[0].mxu0
        %v2231 = vpop.f32.mrb[0].mxu0
        %v2232 = vadd.f32 %v2176, %v2231
        %v2233 = vpop.f32.mrb[0].mxu0
        %2234 = vmatprep.mubr.bf16.mxu0 0
        %2235 = vmatmul.mubr.bf16.gmra.mrb[0].mxu0 %v876
        %v2236 = vpop.f32.mrb[0].mxu0
        %v2237 = vadd.f32 %v2176, %v2236
        %v2238 = vpop.f32.mrb[0].mxu0
        %v2239 = vpop.f32.mrb[0].mxu0
        %v2240 = vadd.f32 %v2176, %v2239
        %v2241 = vpop.f32.mrb[0].mxu0
        %2242 = vmatprep.mubr.bf16.mxu0 0
        %2243 = vmatmul.mubr.bf16.gmra.mrb[0].mxu0 %v877
        %v2244 = vpop.f32.mrb[0].mxu0
        %v2245 = vadd.f32 %v2176, %v2244
        %v2246 = vpop.f32.mrb[0].mxu0
        %v2247 = vpop.f32.mrb[0].mxu0
        %v2248 = vadd.f32 %v2176, %v2247
        %v2249 = vpop.f32.mrb[0].mxu0
        %2250 = vmatprep.mubr.bf16.mxu0 0
        %2251 = vmatmul.mubr.bf16.gmra.mrb[0].mxu0 %v878
        %v2252 = vpop.f32.mrb[0].mxu0
        %v2253 = vadd.f32 %v2176, %v2252
        %v2254 = vpop.f32.mrb[0].mxu0
        %v2255 = vpop.f32.mrb[0].mxu0
        %v2256 = vadd.f32 %v2176, %v2255
        %v2257 = vpop.f32.mrb[0].mxu0
        %2258 = vmatprep.mubr.bf16.mxu0 0
        %2259 = vmatmul.mubr.bf16.gmra.mrb[0].mxu0 %v879
        %v2260 = vpop.f32.mrb[0].mxu0
        %v2261 = vadd.f32 %v2176, %v2260
        %v2262 = vpop.f32.mrb[0].mxu0
        %v2263 = vpop.f32.mrb[0].mxu0
        %v2264 = vadd.f32 %v2176, %v2263
        %v2265 = vpop.f32.mrb[0].mxu0
        %2266 = vmatprep.mubr.bf16.mxu0 0
        %2267 = vmatmul.mubr.bf16.gmra.mrb[0].mxu0 %v880
        %v2268 = vpop.f32.mrb[0].mxu0
        %v2269 = vadd.f32 %v2176, %v2268
        %v2270 = vpop.f32.mrb[0].mxu0
        %v2271 = vpop.f32.mrb[0].mxu0
        %v2272 = vadd.f32 %v2176, %v2271
        %v2273 = vpop.f32.mrb[0].mxu0
        %2274 = vdwg.mxu0
        %v2275 = vmax.f32 %v2213, 0.0
        %v2276 = vmax.f32 %v2216, 0.0
        %v2277 = vmax.f32 %v2221, 0.0
        %v2278 = vmax.f32 %v2224, 0.0
        %v2279 = vmax.f32 %v2229, 0.0
        %v2280 = vmax.f32 %v2232, 0.0
        %v2281 = vmax.f32 %v2237, 0.0
        %v2282 = vmax.f32 %v2240, 0.0
        %v2283 = vmax.f32 %v2245, 0.0
        %v2284 = vmax.f32 %v2248, 0.0
        %v2285 = vmax.f32 %v2253, 0.0
        %v2286 = vmax.f32 %v2256, 0.0
        %v2287 = vmax.f32 %v2261, 0.0
        %v2288 = vmax.f32 %v2264, 0.0
        %v2289 = vmax.f32 %v2269, 0.0
        %v2290 = vmax.f32 %v2272, 0.0
        %v2291 = vld [vmem:[%s12] sm:$0xff]
        %v2292 = vld [vmem:[%s13] sm:$0x1]
        %v2294 = vsel %vm1004, %v2275, 0
        %v2297 = vsel %vm1004, %v2276, 0
        %v2300 = vsel %vm1004, %v2277, 0
        %v2303 = vsel %vm1004, %v2278, 0
        %v2306 = vsel %vm1004, %v2279, 0
        %v2309 = vsel %vm1004, %v2280, 0
        %v2312 = vsel %vm1004, %v2281, 0
        %v2315 = vsel %vm1004, %v2282, 0
        %v2318 = vsel %vm1004, %v2283, 0
        %v2321 = vsel %vm1004, %v2284, 0
        %v2324 = vsel %vm1004, %v2285, 0
        %v2327 = vsel %vm1004, %v2286, 0
        %v2330 = vsel %vm1004, %v2287, 0
        %v2333 = vsel %vm1004, %v2288, 0
        %v2336 = vsel %vm1004, %v2289, 0
        %v2339 = vsel %vm1004, %v2290, 0
        %2341 = vmatprep.subr.mxu0 0.0
        %2342 = vmatpush1.msra.mxu0 %v2291
        %2343 = vmatprep.subr.mxu0 0.0
        %2344 = vmatpush1.msra.mxu0 0.0
        %2345 = vmatprep.subr.mxu0 0.0
        %2346 = vmatpush1.msra.mxu0 0.0
        %2347 = vmatprep.subr.mxu0 0.0
        %2348 = vmatpush1.msra.mxu0 0.0
        %2349 = vmatprep.subr.mxu0 0.0
        %2350 = vmatpush1.msra.mxu0 0.0
        %2351 = vmatprep.subr.mxu0 0.0
        %2352 = vmatpush1.msra.mxu0 0.0
        %2353 = vmatprep.subr.mxu0 0.0
        %2354 = vmatpush1.msra.mxu0 0.0
        %2355 = vmatprep.subr.mxu0 0.0
        %2356 = vmatpush1.msra.mxu0 0.0
        %2357 = vmatprep.subr.mxu0 0.0
        %2358 = vmatpush1.msra.mxu0 0.0
        %2359 = vmatprep.subr.mxu0 0.0
        %2360 = vmatpush1.msra.mxu0 0.0
        %2361 = vmatprep.subr.mxu0 0.0
        %2362 = vmatpush1.msra.mxu0 0.0
        %2363 = vmatprep.subr.mxu0 0.0
        %2364 = vmatpush1.msra.mxu0 0.0
        %2365 = vmatprep.subr.mxu0 0.0
        %2366 = vmatpush1.msra.mxu0 0.0
        %2367 = vmatprep.subr.mxu0 0.0
        %2368 = vmatpush1.msra.mxu0 0.0
        %2369 = vmatprep.subr.mxu0 0.0
        %2370 = vmatpush1.msra.mxu0 0.0
        %2371 = vmatprep.subr.mxu0 0.0
        %2372 = vmatpush1.msra.mxu0 0.0
        %2373 = vmatprep.subr.mxu0 0.0
        %2374 = vmatpush1.msra.mxu0 0.0
        %2375 = vmatprep.subr.mxu0 0.0
        %2376 = vmatpush1.msra.mxu0 0.0
        %2377 = vmatprep.subr.mxu0 0.0
        %2378 = vmatpush1.msra.mxu0 0.0
        %2379 = vmatprep.subr.mxu0 0.0
        %2380 = vmatpush1.msra.mxu0 0.0
        %2381 = vmatprep.subr.mxu0 0.0
        %2382 = vmatpush1.msra.mxu0 0.0
        %2383 = vmatprep.subr.mxu0 0.0
        %2384 = vmatpush1.msra.mxu0 0.0
        %2385 = vmatprep.subr.mxu0 0.0
        %2386 = vmatpush1.msra.mxu0 0.0
        %2387 = vmatprep.subr.mxu0 0.0
        %2388 = vmatpush1.msra.mxu0 0.0
        %2389 = vmatprep.subr.mxu0 0.0
        %2390 = vmatpush1.msra.mxu0 0.0
        %2391 = vmatprep.subr.mxu0 0.0
        %2392 = vmatpush1.msra.mxu0 0.0
        %2393 = vmatprep.subr.mxu0 0.0
        %2394 = vmatpush1.msra.mxu0 0.0
        %2395 = vmatprep.subr.mxu0 0.0
        %2396 = vmatpush1.msra.mxu0 0.0
        %2397 = vmatprep.subr.mxu0 0.0
        %2398 = vmatpush1.msra.mxu0 0.0
        %2399 = vmatprep.subr.mxu0 0.0
        %2400 = vmatpush1.msra.mxu0 0.0
        %2401 = vmatprep.subr.mxu0 0.0
        %2402 = vmatpush1.msra.mxu0 0.0
        %2403 = vmatprep.subr.mxu0 0.0
        %2404 = vmatpush1.msra.mxu0 0.0
        %2405 = vmatprep.mubr.f32.mxu0 0.0
        %2406 = vmatmul.mubr.f32.gmra.mrb[0].mxu0 %v2294
        %v2407 = vpop.f32.mrb[0].mxu0
        %v2408 = vadd.f32 0.0, %v2407
        %v2409 = vpop.f32.mrb[0].mxu0
        %2410 = vmatprep.mubr.f32.mxu0 0.0
        %2411 = vmatmul.mubr.f32.gmra.mrb[0].mxu0 %v2297
        %v2412 = vpop.f32.mrb[0].mxu0
        %v2413 = vadd.f32 0.0, %v2412
        %v2414 = vpop.f32.mrb[0].mxu0
        %2415 = vmatprep.mubr.f32.mxu0 0.0
        %2416 = vmatmul.mubr.f32.gmra.mrb[0].mxu0 %v2300
        %v2417 = vpop.f32.mrb[0].mxu0
        %v2418 = vadd.f32 0.0, %v2417
        %v2419 = vpop.f32.mrb[0].mxu0
        %2420 = vmatprep.mubr.f32.mxu0 0.0
        %2421 = vmatmul.mubr.f32.gmra.mrb[0].mxu0 %v2303
        %v2422 = vpop.f32.mrb[0].mxu0
        %v2423 = vadd.f32 0.0, %v2422
        %v2424 = vpop.f32.mrb[0].mxu0
        %2425 = vmatprep.mubr.f32.mxu0 0.0
        %2426 = vmatmul.mubr.f32.gmra.mrb[0].mxu0 %v2306
        %v2427 = vpop.f32.mrb[0].mxu0
        %v2428 = vadd.f32 0.0, %v2427
        %v2429 = vpop.f32.mrb[0].mxu0
        %2430 = vmatprep.mubr.f32.mxu0 0.0
        %2431 = vmatmul.mubr.f32.gmra.mrb[0].mxu0 %v2309
        %v2432 = vpop.f32.mrb[0].mxu0
        %v2433 = vadd.f32 0.0, %v2432
        %v2434 = vpop.f32.mrb[0].mxu0
        %2435 = vmatprep.mubr.f32.mxu0 0.0
        %2436 = vmatmul.mubr.f32.gmra.mrb[0].mxu0 %v2312
        %v2437 = vpop.f32.mrb[0].mxu0
        %v2438 = vadd.f32 0.0, %v2437
        %v2439 = vpop.f32.mrb[0].mxu0
        %2440 = vmatprep.mubr.f32.mxu0 0.0
        %2441 = vmatmul.mubr.f32.gmra.mrb[0].mxu0 %v2315
        %v2442 = vpop.f32.mrb[0].mxu0
        %v2443 = vadd.f32 0.0, %v2442
        %v2444 = vpop.f32.mrb[0].mxu0
        %2445 = vmatprep.mubr.f32.mxu0 0.0
        %2446 = vmatmul.mubr.f32.gmra.mrb[0].mxu0 %v2318
        %v2447 = vpop.f32.mrb[0].mxu0
        %v2448 = vadd.f32 0.0, %v2447
        %v2449 = vpop.f32.mrb[0].mxu0
        %2450 = vmatprep.mubr.f32.mxu0 0.0
        %2451 = vmatmul.mubr.f32.gmra.mrb[0].mxu0 %v2321
        %v2452 = vpop.f32.mrb[0].mxu0
        %v2453 = vadd.f32 0.0, %v2452
        %v2454 = vpop.f32.mrb[0].mxu0
        %2455 = vmatprep.mubr.f32.mxu0 0.0
        %2456 = vmatmul.mubr.f32.gmra.mrb[0].mxu0 %v2324
        %v2457 = vpop.f32.mrb[0].mxu0
        %v2458 = vadd.f32 0.0, %v2457
        %v2459 = vpop.f32.mrb[0].mxu0
        %2460 = vmatprep.mubr.f32.mxu0 0.0
        %2461 = vmatmul.mubr.f32.gmra.mrb[0].mxu0 %v2327
        %v2462 = vpop.f32.mrb[0].mxu0
        %v2463 = vadd.f32 0.0, %v2462
        %v2464 = vpop.f32.mrb[0].mxu0
        %2465 = vmatprep.mubr.f32.mxu0 0.0
        %2466 = vmatmul.mubr.f32.gmra.mrb[0].mxu0 %v2330
        %v2467 = vpop.f32.mrb[0].mxu0
        %v2468 = vadd.f32 0.0, %v2467
        %v2469 = vpop.f32.mrb[0].mxu0
        %2470 = vmatprep.mubr.f32.mxu0 0.0
        %2471 = vmatmul.mubr.f32.gmra.mrb[0].mxu0 %v2333
        %v2472 = vpop.f32.mrb[0].mxu0
        %v2473 = vadd.f32 0.0, %v2472
        %v2474 = vpop.f32.mrb[0].mxu0
        %2475 = vmatprep.mubr.f32.mxu0 0.0
        %2476 = vmatmul.mubr.f32.gmra.mrb[0].mxu0 %v2336
        %v2477 = vpop.f32.mrb[0].mxu0
        %v2478 = vadd.f32 0.0, %v2477
        %v2479 = vpop.f32.mrb[0].mxu0
        %2480 = vmatprep.mubr.f32.mxu0 0.0
        %2481 = vmatmul.mubr.f32.gmra.mrb[0].mxu0 %v2339
        %v2482 = vpop.f32.mrb[0].mxu0
        %v2483 = vadd.f32 0.0, %v2482
        %v2484 = vpop.f32.mrb[0].mxu0
        %2485 = vdwg.mxu0
        %v2486 = vpack.c.bf16 %v2413, %v2408
        %v2487 = vpack.c.bf16 %v2423, %v2418
        %v2488 = vpack.c.bf16 %v2433, %v2428
        %v2489 = vpack.c.bf16 %v2443, %v2438
        %v2490 = vpack.c.bf16 %v2453, %v2448
        %v2491 = vpack.c.bf16 %v2463, %v2458
        %v2492 = vpack.c.bf16 %v2473, %v2468
        %v2493 = vpack.c.bf16 %v2483, %v2478
        %v2495 = vlaneseq
        %v2496 = vshrl.u32 %v2495, 7
        %v2497 = vsub.s32 0, %v2496
        %v2498 = vrot.slane %v2292, %v2497
        %2500 = vmatprep.subr.bf16.mxu0 0
        %2501 = vmatpush1.bf16.msra.mxu0 %v2486
        %2502 = vmatprep.subr.bf16.mxu0 0
        %2503 = vmatpush1.bf16.msra.mxu0 %v2487
        %2504 = vmatprep.subr.bf16.mxu0 0
        %2505 = vmatpush1.bf16.msra.mxu0 %v2488
        %2506 = vmatprep.subr.bf16.mxu0 0
        %2507 = vmatpush1.bf16.msra.mxu0 %v2489
        %2508 = vmatprep.subr.bf16.mxu0 0
        %2509 = vmatpush1.bf16.msra.mxu0 %v2490
        %2510 = vmatprep.subr.bf16.mxu0 0
        %2511 = vmatpush1.bf16.msra.mxu0 %v2491
        %2512 = vmatprep.subr.bf16.mxu0 0
        %2513 = vmatpush1.bf16.msra.mxu0 %v2492
        %2514 = vmatprep.subr.bf16.mxu0 0
        %2515 = vmatpush1.bf16.msra.mxu0 %v2493
        %2516 = vmatprep.subr.bf16.mxu0 0
        %2517 = vmatpush1.bf16.msra.mxu0 0
        %2518 = vmatprep.subr.bf16.mxu0 0
        %2519 = vmatpush1.bf16.msra.mxu0 0
        %2520 = vmatprep.subr.bf16.mxu0 0
        %2521 = vmatpush1.bf16.msra.mxu0 0
        %2522 = vmatprep.subr.bf16.mxu0 0
        %2523 = vmatpush1.bf16.msra.mxu0 0
        %2524 = vmatprep.subr.bf16.mxu0 0
        %2525 = vmatpush1.bf16.msra.mxu0 0
        %2526 = vmatprep.subr.bf16.mxu0 0
        %2527 = vmatpush1.bf16.msra.mxu0 0
        %2528 = vmatprep.subr.bf16.mxu0 0
        %2529 = vmatpush1.bf16.msra.mxu0 0
        %2530 = vmatprep.subr.bf16.mxu0 0
        %2531 = vmatpush1.bf16.msra.mxu0 0
        %2532 = vmatprep.mubr.bf16.mxu0 0
        %2533 = vmatmul.mubr.bf16.gmra.mrb[0].mxu0 %v873
        %v2534 = vpop.f32.mrb[0].mxu0
        %v2535 = vadd.f32 %v2498, %v2534
        %v2536 = vpop.f32.mrb[0].mxu0
        %v2537 = vpop.f32.mrb[0].mxu0
        %v2538 = vadd.f32 %v2498, %v2537
        %v2539 = vpop.f32.mrb[0].mxu0
        %2540 = vmatprep.mubr.bf16.mxu0 0
        %2541 = vmatmul.mubr.bf16.gmra.mrb[0].mxu0 %v874
        %v2542 = vpop.f32.mrb[0].mxu0
        %v2543 = vadd.f32 %v2498, %v2542
        %v2544 = vpop.f32.mrb[0].mxu0
        %v2545 = vpop.f32.mrb[0].mxu0
        %v2546 = vadd.f32 %v2498, %v2545
        %v2547 = vpop.f32.mrb[0].mxu0
        %2548 = vmatprep.mubr.bf16.mxu0 0
        %2549 = vmatmul.mubr.bf16.gmra.mrb[0].mxu0 %v875
        %v2550 = vpop.f32.mrb[0].mxu0
        %v2551 = vadd.f32 %v2498, %v2550
        %v2552 = vpop.f32.mrb[0].mxu0
        %v2553 = vpop.f32.mrb[0].mxu0
        %v2554 = vadd.f32 %v2498, %v2553
        %v2555 = vpop.f32.mrb[0].mxu0
        %2556 = vmatprep.mubr.bf16.mxu0 0
        %2557 = vmatmul.mubr.bf16.gmra.mrb[0].mxu0 %v876
        %v2558 = vpop.f32.mrb[0].mxu0
        %v2559 = vadd.f32 %v2498, %v2558
        %v2560 = vpop.f32.mrb[0].mxu0
        %v2561 = vpop.f32.mrb[0].mxu0
        %v2562 = vadd.f32 %v2498, %v2561
        %v2563 = vpop.f32.mrb[0].mxu0
        %2564 = vmatprep.mubr.bf16.mxu0 0
        %2565 = vmatmul.mubr.bf16.gmra.mrb[0].mxu0 %v877
        %v2566 = vpop.f32.mrb[0].mxu0
        %v2567 = vadd.f32 %v2498, %v2566
        %v2568 = vpop.f32.mrb[0].mxu0
        %v2569 = vpop.f32.mrb[0].mxu0
        %v2570 = vadd.f32 %v2498, %v2569
        %v2571 = vpop.f32.mrb[0].mxu0
        %2572 = vmatprep.mubr.bf16.mxu0 0
        %2573 = vmatmul.mubr.bf16.gmra.mrb[0].mxu0 %v878
        %v2574 = vpop.f32.mrb[0].mxu0
        %v2575 = vadd.f32 %v2498, %v2574
        %v2576 = vpop.f32.mrb[0].mxu0
        %v2577 = vpop.f32.mrb[0].mxu0
        %v2578 = vadd.f32 %v2498, %v2577
        %v2579 = vpop.f32.mrb[0].mxu0
        %2580 = vmatprep.mubr.bf16.mxu0 0
        %2581 = vmatmul.mubr.bf16.gmra.mrb[0].mxu0 %v879
        %v2582 = vpop.f32.mrb[0].mxu0
        %v2583 = vadd.f32 %v2498, %v2582
        %v2584 = vpop.f32.mrb[0].mxu0
        %v2585 = vpop.f32.mrb[0].mxu0
        %v2586 = vadd.f32 %v2498, %v2585
        %v2587 = vpop.f32.mrb[0].mxu0
        %2588 = vmatprep.mubr.bf16.mxu0 0
        %2589 = vmatmul.mubr.bf16.gmra.mrb[0].mxu0 %v880
        %v2590 = vpop.f32.mrb[0].mxu0
        %v2591 = vadd.f32 %v2498, %v2590
        %v2592 = vpop.f32.mrb[0].mxu0
        %v2593 = vpop.f32.mrb[0].mxu0
        %v2594 = vadd.f32 %v2498, %v2593
        %v2595 = vpop.f32.mrb[0].mxu0
        %2596 = vdwg.mxu0
        %v2597 = vsel %vm1004, %v2535, -inf
        %v2598 = vrot.slane %v2597, 4
        %v2599 = vmax.f32 %v2597, %v2598
        %v2600 = vrot.slane %v2599, 2
        %v2601 = vmax.f32 %v2599, %v2600
        %v2602 = vrot.slane %v2601, 1
        %v2603 = vmax.f32 %v2601, %v2602
        %v2604 = vsel %vm1004, %v2538, -inf
        %v2605 = vrot.slane %v2604, 4
        %v2606 = vmax.f32 %v2604, %v2605
        %v2607 = vrot.slane %v2606, 2
        %v2608 = vmax.f32 %v2606, %v2607
        %v2609 = vrot.slane %v2608, 1
        %v2610 = vmax.f32 %v2608, %v2609
        %v2611 = vsel %vm1004, %v2543, -inf
        %v2612 = vrot.slane %v2611, 4
        %v2613 = vmax.f32 %v2611, %v2612
        %v2614 = vrot.slane %v2613, 2
        %v2615 = vmax.f32 %v2613, %v2614
        %v2616 = vrot.slane %v2615, 1
        %v2617 = vmax.f32 %v2615, %v2616
        %v2618 = vsel %vm1004, %v2546, -inf
        %v2619 = vrot.slane %v2618, 4
        %v2620 = vmax.f32 %v2618, %v2619
        %v2621 = vrot.slane %v2620, 2
        %v2622 = vmax.f32 %v2620, %v2621
        %v2623 = vrot.slane %v2622, 1
        %v2624 = vmax.f32 %v2622, %v2623
        %v2625 = vsel %vm1004, %v2551, -inf
        %v2626 = vrot.slane %v2625, 4
        %v2627 = vmax.f32 %v2625, %v2626
        %v2628 = vrot.slane %v2627, 2
        %v2629 = vmax.f32 %v2627, %v2628
        %v2630 = vrot.slane %v2629, 1
        %v2631 = vmax.f32 %v2629, %v2630
        %v2632 = vsel %vm1004, %v2554, -inf
        %v2633 = vrot.slane %v2632, 4
        %v2634 = vmax.f32 %v2632, %v2633
        %v2635 = vrot.slane %v2634, 2
        %v2636 = vmax.f32 %v2634, %v2635
        %v2637 = vrot.slane %v2636, 1
        %v2638 = vmax.f32 %v2636, %v2637
        %v2639 = vsel %vm1004, %v2559, -inf
        %v2640 = vrot.slane %v2639, 4
        %v2641 = vmax.f32 %v2639, %v2640
        %v2642 = vrot.slane %v2641, 2
        %v2643 = vmax.f32 %v2641, %v2642
        %v2644 = vrot.slane %v2643, 1
        %v2645 = vmax.f32 %v2643, %v2644
        %v2646 = vsel %vm1004, %v2562, -inf
        %v2647 = vrot.slane %v2646, 4
        %v2648 = vmax.f32 %v2646, %v2647
        %v2649 = vrot.slane %v2648, 2
        %v2650 = vmax.f32 %v2648, %v2649
        %v2651 = vrot.slane %v2650, 1
        %v2652 = vmax.f32 %v2650, %v2651
        %v2653 = vsel %vm1004, %v2567, -inf
        %v2654 = vrot.slane %v2653, 4
        %v2655 = vmax.f32 %v2653, %v2654
        %v2656 = vrot.slane %v2655, 2
        %v2657 = vmax.f32 %v2655, %v2656
        %v2658 = vrot.slane %v2657, 1
        %v2659 = vmax.f32 %v2657, %v2658
        %v2660 = vsel %vm1004, %v2570, -inf
        %v2661 = vrot.slane %v2660, 4
        %v2662 = vmax.f32 %v2660, %v2661
        %v2663 = vrot.slane %v2662, 2
        %v2664 = vmax.f32 %v2662, %v2663
        %v2665 = vrot.slane %v2664, 1
        %v2666 = vmax.f32 %v2664, %v2665
        %v2667 = vsel %vm1004, %v2575, -inf
        %v2668 = vrot.slane %v2667, 4
        %v2669 = vmax.f32 %v2667, %v2668
        %v2670 = vrot.slane %v2669, 2
        %v2671 = vmax.f32 %v2669, %v2670
        %v2672 = vrot.slane %v2671, 1
        %v2673 = vmax.f32 %v2671, %v2672
        %v2674 = vsel %vm1004, %v2578, -inf
        %v2675 = vrot.slane %v2674, 4
        %v2676 = vmax.f32 %v2674, %v2675
        %v2677 = vrot.slane %v2676, 2
        %v2678 = vmax.f32 %v2676, %v2677
        %v2679 = vrot.slane %v2678, 1
        %v2680 = vmax.f32 %v2678, %v2679
        %v2681 = vsel %vm1004, %v2583, -inf
        %v2682 = vrot.slane %v2681, 4
        %v2683 = vmax.f32 %v2681, %v2682
        %v2684 = vrot.slane %v2683, 2
        %v2685 = vmax.f32 %v2683, %v2684
        %v2686 = vrot.slane %v2685, 1
        %v2687 = vmax.f32 %v2685, %v2686
        %v2688 = vsel %vm1004, %v2586, -inf
        %v2689 = vrot.slane %v2688, 4
        %v2690 = vmax.f32 %v2688, %v2689
        %v2691 = vrot.slane %v2690, 2
        %v2692 = vmax.f32 %v2690, %v2691
        %v2693 = vrot.slane %v2692, 1
        %v2694 = vmax.f32 %v2692, %v2693
        %v2695 = vsel %vm1004, %v2591, -inf
        %v2696 = vrot.slane %v2695, 4
        %v2697 = vmax.f32 %v2695, %v2696
        %v2698 = vrot.slane %v2697, 2
        %v2699 = vmax.f32 %v2697, %v2698
        %v2700 = vrot.slane %v2699, 1
        %v2701 = vmax.f32 %v2699, %v2700
        %v2702 = vsel %vm1004, %v2594, -inf
        %v2703 = vrot.slane %v2702, 4
        %v2704 = vmax.f32 %v2702, %v2703
        %v2705 = vrot.slane %v2704, 2
        %v2706 = vmax.f32 %v2704, %v2705
        %v2707 = vrot.slane %v2706, 1
        %v2708 = vmax.f32 %v2706, %v2707
        %v2709 = vsel %vm1004, %v2535, 0.0
        %v2710 = vrot.slane %v2709, 4
        %v2711 = vadd.f32 %v2709, %v2710
        %v2712 = vrot.slane %v2711, 2
        %v2713 = vadd.f32 %v2711, %v2712
        %v2714 = vrot.slane %v2713, 1
        %v2715 = vadd.f32 %v2713, %v2714
        %v2716 = vsel %vm1004, %v2538, 0.0
        %v2717 = vrot.slane %v2716, 4
        %v2718 = vadd.f32 %v2716, %v2717
        %v2719 = vrot.slane %v2718, 2
        %v2720 = vadd.f32 %v2718, %v2719
        %v2721 = vrot.slane %v2720, 1
        %v2722 = vadd.f32 %v2720, %v2721
        %v2723 = vsel %vm1004, %v2543, 0.0
        %v2724 = vrot.slane %v2723, 4
        %v2725 = vadd.f32 %v2723, %v2724
        %v2726 = vrot.slane %v2725, 2
        %v2727 = vadd.f32 %v2725, %v2726
        %v2728 = vrot.slane %v2727, 1
        %v2729 = vadd.f32 %v2727, %v2728
        %v2730 = vsel %vm1004, %v2546, 0.0
        %v2731 = vrot.slane %v2730, 4
        %v2732 = vadd.f32 %v2730, %v2731
        %v2733 = vrot.slane %v2732, 2
        %v2734 = vadd.f32 %v2732, %v2733
        %v2735 = vrot.slane %v2734, 1
        %v2736 = vadd.f32 %v2734, %v2735
        %v2737 = vsel %vm1004, %v2551, 0.0
        %v2738 = vrot.slane %v2737, 4
        %v2739 = vadd.f32 %v2737, %v2738
        %v2740 = vrot.slane %v2739, 2
        %v2741 = vadd.f32 %v2739, %v2740
        %v2742 = vrot.slane %v2741, 1
        %v2743 = vadd.f32 %v2741, %v2742
        %v2744 = vsel %vm1004, %v2554, 0.0
        %v2745 = vrot.slane %v2744, 4
        %v2746 = vadd.f32 %v2744, %v2745
        %v2747 = vrot.slane %v2746, 2
        %v2748 = vadd.f32 %v2746, %v2747
        %v2749 = vrot.slane %v2748, 1
        %v2750 = vadd.f32 %v2748, %v2749
        %v2751 = vsel %vm1004, %v2559, 0.0
        %v2752 = vrot.slane %v2751, 4
        %v2753 = vadd.f32 %v2751, %v2752
        %v2754 = vrot.slane %v2753, 2
        %v2755 = vadd.f32 %v2753, %v2754
        %v2756 = vrot.slane %v2755, 1
        %v2757 = vadd.f32 %v2755, %v2756
        %v2758 = vsel %vm1004, %v2562, 0.0
        %v2759 = vrot.slane %v2758, 4
        %v2760 = vadd.f32 %v2758, %v2759
        %v2761 = vrot.slane %v2760, 2
        %v2762 = vadd.f32 %v2760, %v2761
        %v2763 = vrot.slane %v2762, 1
        %v2764 = vadd.f32 %v2762, %v2763
        %v2765 = vsel %vm1004, %v2567, 0.0
        %v2766 = vrot.slane %v2765, 4
        %v2767 = vadd.f32 %v2765, %v2766
        %v2768 = vrot.slane %v2767, 2
        %v2769 = vadd.f32 %v2767, %v2768
        %v2770 = vrot.slane %v2769, 1
        %v2771 = vadd.f32 %v2769, %v2770
        %v2772 = vsel %vm1004, %v2570, 0.0
        %v2773 = vrot.slane %v2772, 4
        %v2774 = vadd.f32 %v2772, %v2773
        %v2775 = vrot.slane %v2774, 2
        %v2776 = vadd.f32 %v2774, %v2775
        %v2777 = vrot.slane %v2776, 1
        %v2778 = vadd.f32 %v2776, %v2777
        %v2779 = vsel %vm1004, %v2575, 0.0
        %v2780 = vrot.slane %v2779, 4
        %v2781 = vadd.f32 %v2779, %v2780
        %v2782 = vrot.slane %v2781, 2
        %v2783 = vadd.f32 %v2781, %v2782
        %v2784 = vrot.slane %v2783, 1
        %v2785 = vadd.f32 %v2783, %v2784
        %v2786 = vsel %vm1004, %v2578, 0.0
        %v2787 = vrot.slane %v2786, 4
        %v2788 = vadd.f32 %v2786, %v2787
        %v2789 = vrot.slane %v2788, 2
        %v2790 = vadd.f32 %v2788, %v2789
        %v2791 = vrot.slane %v2790, 1
        %v2792 = vadd.f32 %v2790, %v2791
        %v2793 = vsel %vm1004, %v2583, 0.0
        %v2794 = vrot.slane %v2793, 4
        %v2795 = vadd.f32 %v2793, %v2794
        %v2796 = vrot.slane %v2795, 2
        %v2797 = vadd.f32 %v2795, %v2796
        %v2798 = vrot.slane %v2797, 1
        %v2799 = vadd.f32 %v2797, %v2798
        %v2800 = vsel %vm1004, %v2586, 0.0
        %v2801 = vrot.slane %v2800, 4
        %v2802 = vadd.f32 %v2800, %v2801
        %v2803 = vrot.slane %v2802, 2
        %v2804 = vadd.f32 %v2802, %v2803
        %v2805 = vrot.slane %v2804, 1
        %v2806 = vadd.f32 %v2804, %v2805
        %v2807 = vsel %vm1004, %v2591, 0.0
        %v2808 = vrot.slane %v2807, 4
        %v2809 = vadd.f32 %v2807, %v2808
        %v2810 = vrot.slane %v2809, 2
        %v2811 = vadd.f32 %v2809, %v2810
        %v2812 = vrot.slane %v2811, 1
        %v2813 = vadd.f32 %v2811, %v2812
        %v2814 = vsel %vm1004, %v2594, 0.0
        %v2815 = vrot.slane %v2814, 4
        %v2816 = vadd.f32 %v2814, %v2815
        %v2817 = vrot.slane %v2816, 2
        %v2818 = vadd.f32 %v2816, %v2817
        %v2819 = vrot.slane %v2818, 1
        %v2820 = vadd.f32 %v2818, %v2819
        %v2821 = vmul.f32 %v2715, 0.125
        %v2822 = vmul.f32 %v2722, 0.125
        %v2823 = vmul.f32 %v2729, 0.125
        %v2824 = vmul.f32 %v2736, 0.125
        %v2825 = vmul.f32 %v2743, 0.125
        %v2826 = vmul.f32 %v2750, 0.125
        %v2827 = vmul.f32 %v2757, 0.125
        %v2828 = vmul.f32 %v2764, 0.125
        %v2829 = vmul.f32 %v2771, 0.125
        %v2830 = vmul.f32 %v2778, 0.125
        %v2831 = vmul.f32 %v2785, 0.125
        %v2832 = vmul.f32 %v2792, 0.125
        %v2833 = vmul.f32 %v2799, 0.125
        %v2834 = vmul.f32 %v2806, 0.125
        %v2835 = vmul.f32 %v2813, 0.125
        %v2836 = vmul.f32 %v2820, 0.125
        %vm2853 = vcmask 1041409
        %v2854 = vsel %vm2853, %v2610, %v2603
        %vm2855 = vcmask 1042434
        %v2856 = vsel %vm2855, %v2617, %v2854
        %vm2857 = vcmask 1043459
        %v2858 = vsel %vm2857, %v2624, %v2856
        %vm2859 = vcmask 1044484
        %v2860 = vsel %vm2859, %v2631, %v2858
        %vm2861 = vcmask 1045509
        %v2862 = vsel %vm2861, %v2638, %v2860
        %vm2863 = vcmask 1046534
        %v2864 = vsel %vm2863, %v2645, %v2862
        %vm2865 = vcmask 1047559
        %v2866 = vsel %vm2865, %v2652, %v2864
        %v2867 = vsel %vm2853, %v2666, %v2659
        %v2868 = vsel %vm2855, %v2673, %v2867
        %v2869 = vsel %vm2857, %v2680, %v2868
        %v2870 = vsel %vm2859, %v2687, %v2869
        %v2871 = vsel %vm2861, %v2694, %v2870
        %v2872 = vsel %vm2863, %v2701, %v2871
        %v2873 = vsel %vm2865, %v2708, %v2872
        %v2892 = vsel %vm2853, %v2822, %v2821
        %v2893 = vsel %vm2855, %v2823, %v2892
        %v2894 = vsel %vm2857, %v2824, %v2893
        %v2895 = vsel %vm2859, %v2825, %v2894
        %v2896 = vsel %vm2861, %v2826, %v2895
        %v2897 = vsel %vm2863, %v2827, %v2896
        %v2898 = vsel %vm2865, %v2828, %v2897
        %v2899 = vsel %vm2853, %v2830, %v2829
        %v2900 = vsel %vm2855, %v2831, %v2899
        %v2901 = vsel %vm2857, %v2832, %v2900
        %v2902 = vsel %vm2859, %v2833, %v2901
        %v2903 = vsel %vm2861, %v2834, %v2902
        %v2904 = vsel %vm2863, %v2835, %v2903
        %v2905 = vsel %vm2865, %v2836, %v2904
        %2906 = vrot.lane.b32.xlu0 %v2898, 8
        %v2907 = vpop.permute.xlu0 %2906
        %2908 = vrot.lane.b32.xlu0 %v2905, 8
        %v2909 = vpop.permute.xlu0 %2908
        %v2912 = vsel %vm1004, %v2866, %v2907
        %v2913 = vsel %vm1004, %v2873, %v2909
        %v2914 = vmax.f32 %v2912, 0.0
        %v2915 = vmax.f32 %v2913, 0.0
        %v2916 = vld [vmem:[%s14] sm:$0xff]
        %v2917 = vld [vmem:[%s14 + $0x8] sm:$0xff]
        %v2918 = vld [vmem:[%s15] sm:$0x1]
        %v2920 = vlaneseq
        %v2921 = vshrl.u32 %v2920, 7
        %v2922 = vsub.s32 0, %v2921
        %v2923 = vrot.slane %v2918, %v2922
        %vm2925 = vcmask 130048
        %v2927 = vsel %vm2925, %v2914, 0
        %v2930 = vsel %vm2925, %v2915, 0
        %2932 = vmatprep.subr.mxu0 0.0
        %2933 = vmatpush1.msra.mxu0 %v2916
        %2934 = vmatprep.subr.mxu0 0.0
        %2935 = vmatpush1.msra.mxu0 %v2917
        %2936 = vmatprep.subr.mxu0 0.0
        %2937 = vmatpush1.msra.mxu0 0.0
        %2938 = vmatprep.subr.mxu0 0.0
        %2939 = vmatpush1.msra.mxu0 0.0
        %2940 = vmatprep.subr.mxu0 0.0
        %2941 = vmatpush1.msra.mxu0 0.0
        %2942 = vmatprep.subr.mxu0 0.0
        %2943 = vmatpush1.msra.mxu0 0.0
        %2944 = vmatprep.subr.mxu0 0.0
        %2945 = vmatpush1.msra.mxu0 0.0
        %2946 = vmatprep.subr.mxu0 0.0
        %2947 = vmatpush1.msra.mxu0 0.0
        %2948 = vmatprep.subr.mxu0 0.0
        %2949 = vmatpush1.msra.mxu0 0.0
        %2950 = vmatprep.subr.mxu0 0.0
        %2951 = vmatpush1.msra.mxu0 0.0
        %2952 = vmatprep.subr.mxu0 0.0
        %2953 = vmatpush1.msra.mxu0 0.0
        %2954 = vmatprep.subr.mxu0 0.0
        %2955 = vmatpush1.msra.mxu0 0.0
        %2956 = vmatprep.subr.mxu0 0.0
        %2957 = vmatpush1.msra.mxu0 0.0
        %2958 = vmatprep.subr.mxu0 0.0
        %2959 = vmatpush1.msra.mxu0 0.0
        %2960 = vmatprep.subr.mxu0 0.0
        %2961 = vmatpush1.msra.mxu0 0.0
        %2962 = vmatprep.subr.mxu0 0.0
        %2963 = vmatpush1.msra.mxu0 0.0
        %2964 = vmatprep.subr.mxu0 0.0
        %2965 = vmatpush1.msra.mxu0 0.0
        %2966 = vmatprep.subr.mxu0 0.0
        %2967 = vmatpush1.msra.mxu0 0.0
        %2968 = vmatprep.subr.mxu0 0.0
        %2969 = vmatpush1.msra.mxu0 0.0
        %2970 = vmatprep.subr.mxu0 0.0
        %2971 = vmatpush1.msra.mxu0 0.0
        %2972 = vmatprep.subr.mxu0 0.0
        %2973 = vmatpush1.msra.mxu0 0.0
        %2974 = vmatprep.subr.mxu0 0.0
        %2975 = vmatpush1.msra.mxu0 0.0
        %2976 = vmatprep.subr.mxu0 0.0
        %2977 = vmatpush1.msra.mxu0 0.0
        %2978 = vmatprep.subr.mxu0 0.0
        %2979 = vmatpush1.msra.mxu0 0.0
        %2980 = vmatprep.subr.mxu0 0.0
        %2981 = vmatpush1.msra.mxu0 0.0
        %2982 = vmatprep.subr.mxu0 0.0
        %2983 = vmatpush1.msra.mxu0 0.0
        %2984 = vmatprep.subr.mxu0 0.0
        %2985 = vmatpush1.msra.mxu0 0.0
        %2986 = vmatprep.subr.mxu0 0.0
        %2987 = vmatpush1.msra.mxu0 0.0
        %2988 = vmatprep.subr.mxu0 0.0
        %2989 = vmatpush1.msra.mxu0 0.0
        %2990 = vmatprep.subr.mxu0 0.0
        %2991 = vmatpush1.msra.mxu0 0.0
        %2992 = vmatprep.subr.mxu0 0.0
        %2993 = vmatpush1.msra.mxu0 0.0
        %2994 = vmatprep.subr.mxu0 0.0
        %2995 = vmatpush1.msra.mxu0 0.0
        %2996 = vmatprep.mubr.f32.mxu0 0.0
        %2997 = vmatmul.mubr.f32.gmra.mrb[0].mxu0 %v2927
        %v2998 = vpop.f32.mrb[0].mxu0
        %v2999 = vadd.f32 %v2923, %v2998
        %v3000 = vpop.f32.mrb[0].mxu0
        %3001 = vmatprep.mubr.f32.mxu0 0.0
        %3002 = vmatmul.mubr.f32.gmra.mrb[0].mxu0 %v2930
        %v3003 = vpop.f32.mrb[0].mxu0
        %v3004 = vadd.f32 %v2923, %v3003
        %v3005 = vpop.f32.mrb[0].mxu0
        %3006 = vdwg.mxu0
        %v3007 = vld [vmem:[%s16] sm:$0xf]
        %v3008 = vld [vmem:[%s17] sm:$0x1]
        %v3010 = vlaneseq
        %v3011 = vshrl.u32 %v3010, 7
        %v3012 = vsub.s32 0, %v3011
        %v3013 = vrot.slane %v3008, %v3012
        %v3016 = vsel %vm629, %v2999, 0
        %v3019 = vsel %vm629, %v3004, 0
        %v3022 = vsel %vm678, %v3007, 0
        %3024 = vmatprep.subr.mxu0 0.0
        %3025 = vmatpush1.msra.mxu0 %v3022
        %3026 = vmatprep.subr.mxu0 0.0
        %3027 = vmatpush1.msra.mxu0 0.0
        %3028 = vmatprep.subr.mxu0 0.0
        %3029 = vmatpush1.msra.mxu0 0.0
        %3030 = vmatprep.subr.mxu0 0.0
        %3031 = vmatpush1.msra.mxu0 0.0
        %3032 = vmatprep.subr.mxu0 0.0
        %3033 = vmatpush1.msra.mxu0 0.0
        %3034 = vmatprep.subr.mxu0 0.0
        %3035 = vmatpush1.msra.mxu0 0.0
        %3036 = vmatprep.subr.mxu0 0.0
        %3037 = vmatpush1.msra.mxu0 0.0
        %3038 = vmatprep.subr.mxu0 0.0
        %3039 = vmatpush1.msra.mxu0 0.0
        %3040 = vmatprep.subr.mxu0 0.0
        %3041 = vmatpush1.msra.mxu0 0.0
        %3042 = vmatprep.subr.mxu0 0.0
        %3043 = vmatpush1.msra.mxu0 0.0
        %3044 = vmatprep.subr.mxu0 0.0
        %3045 = vmatpush1.msra.mxu0 0.0
        %3046 = vmatprep.subr.mxu0 0.0
        %3047 = vmatpush1.msra.mxu0 0.0
        %3048 = vmatprep.subr.mxu0 0.0
        %3049 = vmatpush1.msra.mxu0 0.0
        %3050 = vmatprep.subr.mxu0 0.0
        %3051 = vmatpush1.msra.mxu0 0.0
        %3052 = vmatprep.subr.mxu0 0.0
        %3053 = vmatpush1.msra.mxu0 0.0
        %3054 = vmatprep.subr.mxu0 0.0
        %3055 = vmatpush1.msra.mxu0 0.0
        %3056 = vmatprep.subr.mxu0 0.0
        %3057 = vmatpush1.msra.mxu0 0.0
        %3058 = vmatprep.subr.mxu0 0.0
        %3059 = vmatpush1.msra.mxu0 0.0
        %3060 = vmatprep.subr.mxu0 0.0
        %3061 = vmatpush1.msra.mxu0 0.0
        %3062 = vmatprep.subr.mxu0 0.0
        %3063 = vmatpush1.msra.mxu0 0.0
        %3064 = vmatprep.subr.mxu0 0.0
        %3065 = vmatpush1.msra.mxu0 0.0
        %3066 = vmatprep.subr.mxu0 0.0
        %3067 = vmatpush1.msra.mxu0 0.0
        %3068 = vmatprep.subr.mxu0 0.0
        %3069 = vmatpush1.msra.mxu0 0.0
        %3070 = vmatprep.subr.mxu0 0.0
        %3071 = vmatpush1.msra.mxu0 0.0
        %3072 = vmatprep.subr.mxu0 0.0
        %3073 = vmatpush1.msra.mxu0 0.0
        %3074 = vmatprep.subr.mxu0 0.0
        %3075 = vmatpush1.msra.mxu0 0.0
        %3076 = vmatprep.subr.mxu0 0.0
        %3077 = vmatpush1.msra.mxu0 0.0
        %3078 = vmatprep.subr.mxu0 0.0
        %3079 = vmatpush1.msra.mxu0 0.0
        %3080 = vmatprep.subr.mxu0 0.0
        %3081 = vmatpush1.msra.mxu0 0.0
        %3082 = vmatprep.subr.mxu0 0.0
        %3083 = vmatpush1.msra.mxu0 0.0
        %3084 = vmatprep.subr.mxu0 0.0
        %3085 = vmatpush1.msra.mxu0 0.0
        %3086 = vmatprep.subr.mxu0 0.0
        %3087 = vmatpush1.msra.mxu0 0.0
        %3088 = vmatprep.mubr.f32.mxu0 0.0
        %3089 = vmatmul.mubr.f32.gmra.mrb[0].mxu0 %v3016
        %v3090 = vpop.f32.mrb[0].mxu0
        %v3091 = vadd.f32 %v3013, %v3090
        %v3092 = vpop.f32.mrb[0].mxu0
        %3093 = vmatprep.mubr.f32.mxu0 0.0
        %3094 = vmatmul.mubr.f32.gmra.mrb[0].mxu0 %v3019
        %v3095 = vpop.f32.mrb[0].mxu0
        %v3096 = vadd.f32 %v3013, %v3095
        %v3097 = vpop.f32.mrb[0].mxu0
        %3098 = vdwg.mxu0
        %v3099 = vmax.f32 %v3091, 0.0
        %v3100 = vmax.f32 %v3096, 0.0
        %3101 = vst [vmem:[%s583] sm:$0xff] %v3099
        %3102 = vst [vmem:[%s583 + $0x8] sm:$0xff] %v3100
        %s3103 = sand.u32 %s428, 1
        %s3104 = scalar_lea.sflag [#allocation3], %s3103
        %s3105 = sand.u32 %s428, 1
        %s3106 = smul.addr %s3105, 16
        %s3107 = scalar_lea.vmem [#allocation2], %s3106
        // Predicated region
        $region93: #{tpu_custom_call.1} parent=91 // pred_check
          %p3108 = pneg %p438
        $region94: #{tpu_custom_call.1} parent=91 // pred_check_branch
          %3110 = sbr.rel (%p3108) target = $region96
        $region95: #{tpu_custom_call.1} parent=91 // pred_region
          %s3112 = ssub.s32 256, 256
          %3113 = vsyncadd %s3104, %s3112
          %s3114 = smul.addr %s32, 2
          %s3115 = smul.addr %s3114, 128
          %s3116 = scalar_lea.hbm %s18, %s3115
          %s3117 = sshll.u32 %s3107, 4
          %s3118 = int_to_ptr.vmem [resolvable:$true] %s3117
          %3123 = dma.vmem_to_hbm [thread:$0]  %s3118, 256, %s3116, %s3104, 128, 128, 8
        $region96: #{tpu_custom_call.1} parent=91 // pred_fallthru
          _
      $region92: #{tpu_custom_call.1} parent=5 // pred_fallthru
        _
      %p3124 = scmp.le.s32.totalorder 2, %s27
      // Predicated region
      $region97: #{tpu_custom_call.1} parent=5 // pred_check
        %p3125 = pneg %p3124
      $region98: #{tpu_custom_call.1} parent=5 // pred_check_branch
        %3127 = sbr.rel (%p3125) target = $region100
      $region99: #{tpu_custom_call.1} parent=5 // pred_region
        %s3128 = ssub.s32 %s27, 2
        // Predicated region
        $region101: #{tpu_custom_call.1} parent=99 // pred_check
          %p3129 = pneg %p444
        $region102: #{tpu_custom_call.1} parent=99 // pred_check_branch
          %3131 = sbr.rel (%p3129) target = $region104
        $region103: #{tpu_custom_call.1} parent=99 // pred_region
          %s3132 = sand.u32 %s429, 1
          %s3133 = scalar_lea.sflag [#allocation3], %s3132
          %s3134 = sand.u32 %s429, 1
          %s3135 = smul.addr %s3134, 16
          %s3136 = scalar_lea.vmem [#allocation2], %s3135
          %3137 = dma.done %s3133, 256
        $region104: #{tpu_custom_call.1} parent=99 // pred_fallthru
          _
      $region100: #{tpu_custom_call.1} parent=5 // pred_fallthru
        _
    $region6: #{tpu_custom_call.1} parent=1 // loop_footer
      %s31 = sadd.s32 1, %s27
    $region7: #{tpu_custom_call.1} parent=1 // loop_footer_branch
      %26 = sbr.rel target = $region3
    $region8: #{tpu_custom_call.1} parent=1 // loop_exit
      _
    %3138 = vsyncpa [#allocation3], 1
    %s3139 = scalar_lea.sflag [#allocation3], 1
    %3140 = vsyncpa %s3139, 1

</llo_original>
